<compile_context>
chip_gen: v5e
topology: v5e:2x2
jax: 0.10.0
libtpu: 0.0.40
codegen_flags: <defaults>
</compile_context>

<pallas_src>
import jax
import jax.numpy as jnp
from jax.experimental import pallas as pl
from jax.experimental.pallas import tpu as pltpu

C_IN = 5      # input features per point
C1 = 64       # frame_feature_extractor conv1 channels
C2 = 128      # frame_feature_extractor conv2 channels / attention dim
C_HID = 64    # classifier hidden dim
EPS = 1e-5


def fused_kernel(x_ref, masks_ref, w1_ref, b1_ref, w2_ref, pool_ref, consts_ref,
                 wc1_ref, wc2_ref, out_ref):
    """G batch elements end-to-end: conv1/ReLU -> conv2 -> per-frame avg-pool ->
    softmax attention over frames (per element) -> weighted pooling -> classifier MLP."""
    GR = x_ref.shape[1]                       # G * T * L rows in this slab
    mlo = masks_ref[:, 0:1]                   # (GR, 1)  zero on first row of every frame
    mhi = masks_ref[:, 1:2]                   # (GR, 1)  zero on last  row of every frame

    x = x_ref[0]                              # (GR, 5)  raw input (BN folded into weights)
    xm = pltpu.roll(x, shift=1, axis=0) * mlo
    xp = pltpu.roll(x, shift=GR - 1, axis=0) * mhi
    # Conv1d(5,64,3,pad=1): input-BN scale + BN1 scale folded into taps; input-BN shift,
    # conv bias and BN1 shift live in the boundary-aware per-row bias b1_ref.
    y = (jnp.dot(xm, w1_ref[0], preferred_element_type=jnp.float32)
         + jnp.dot(x,  w1_ref[1], preferred_element_type=jnp.float32)
         + jnp.dot(xp, w1_ref[2], preferred_element_type=jnp.float32)
         + b1_ref[...])
    y = jnp.maximum(y, 0.0)                   # ReLU (Dropout = identity at inference)

    # Conv1d(64,128,3,pad=1): taps concatenated along K -> single (GR,192)@(192,128) matmul.
    ym = pltpu.roll(y, shift=1, axis=0) * mlo
    yp = pltpu.roll(y, shift=GR - 1, axis=0) * mhi
    y_cat = jnp.concatenate([ym, y, yp], axis=1)                      # (GR, 192)
    z = (jnp.dot(y_cat, w2_ref[...], preferred_element_type=jnp.float32)
         + consts_ref[0:1, :])                                        # (GR, 128)

    # AdaptiveAvgPool1d(1) for all G*T frames: block-diagonal pooling matmul on the MXU.
    feat = jnp.dot(pool_ref[...], z, preferred_element_type=jnp.float32)   # (G*T, 128)

    G = out_ref.shape[1]
    GT, C2_ = feat.shape
    T = GT // G
    f3 = feat.reshape(G, T, C2_)                                      # sublane split only
    wa = consts_ref[1:2, :].reshape(1, 1, C2_)
    # attention logits; the Linear(128,1) bias is dropped exactly (softmax shift-invariance)
    logits = jnp.sum(f3 * wa, axis=-1, keepdims=True)                 # (G, T, 1)
    m = jnp.max(logits, axis=1, keepdims=True)
    e = jnp.exp(logits - m)
    attn = e / jnp.sum(e, axis=1, keepdims=True)
    weighted = jnp.sum(f3 * attn, axis=1)                             # (G, 128)

    # classifier MLP (output padded to 128 lanes for dense stores; sliced host-side)
    ch = wc1_ref.shape[1]
    h = jnp.dot(weighted, wc1_ref[...], preferred_element_type=jnp.float32) + consts_ref[2:3, 0:ch]
    h = jnp.maximum(h, 0.0)
    out = jnp.dot(h, wc2_ref[...], preferred_element_type=jnp.float32) + consts_ref[3:4, :]
    out_ref[0] = out                                                  # (G, 128)


def fold_bn(gamma, beta, mean, var, eps=EPS):
    s = gamma / jnp.sqrt(var + eps)
    return s, beta - mean * s


def _choose_group(B, TL, target_rows=1024):
    """Largest divisor G of B with G*TL <= target_rows while keeping >=2 grid steps (v7x)."""
    best = 1
    for g in range(1, B + 1):
        if B % g:
            continue
        if g * TL > target_rows:
            break
        if B // g >= 2:
            best = g
    return best


def init_params(key, num_classes=2):
    def n(k, shape, scale):
        return scale * jax.random.normal(k, shape, dtype=jnp.float32)
    ks = iter(jax.random.split(key, 32))
    p = {}
    # input_bn: BatchNorm1d(5)
    p["in_g"] = 1.0 + n(next(ks), (C_IN,), 0.1)
    p["in_b"] = n(next(ks), (C_IN,), 0.1)
    p["in_m"] = n(next(ks), (C_IN,), 0.05)
    p["in_v"] = jnp.abs(1.0 + n(next(ks), (C_IN,), 0.1))
    # Conv1d(5, 64, 3) + BatchNorm1d(64)
    p["c1_w"] = n(next(ks), (C1, C_IN, 3), 0.2)       # torch layout (out, in, k)
    p["c1_b"] = n(next(ks), (C1,), 0.1)
    p["bn1_g"] = 1.0 + n(next(ks), (C1,), 0.1)
    p["bn1_b"] = n(next(ks), (C1,), 0.1)
    p["bn1_m"] = n(next(ks), (C1,), 0.05)
    p["bn1_v"] = jnp.abs(1.0 + n(next(ks), (C1,), 0.1))
    # Conv1d(64, 128, 3) + BatchNorm1d(128)
    p["c2_w"] = n(next(ks), (C2, C1, 3), 0.1)
    p["c2_b"] = n(next(ks), (C2,), 0.1)
    p["bn2_g"] = 1.0 + n(next(ks), (C2,), 0.1)
    p["bn2_b"] = n(next(ks), (C2,), 0.1)
    p["bn2_m"] = n(next(ks), (C2,), 0.05)
    p["bn2_v"] = jnp.abs(1.0 + n(next(ks), (C2,), 0.1))
    # attention: Linear(128, 1)
    p["att_w"] = n(next(ks), (1, C2), 0.1)
    p["att_b"] = n(next(ks), (1,), 0.1)
    # classifier: Linear(., 64) -> ReLU -> Linear(64, num_classes)
    # TODO(synk): original module declares Linear(512, 64), dimensionally inconsistent with
    # the forward pass (weighted features are 128-d); 128 -> 64 is used here.
    p["cl1_w"] = n(next(ks), (C_HID, C2), 0.1)
    p["cl1_b"] = n(next(ks), (C_HID,), 0.1)
    p["cl2_w"] = n(next(ks), (num_classes, C_HID), 0.1)
    p["cl2_b"] = n(next(ks), (num_classes,), 0.1)
    return p
# TODO(synk): temporal_conv is defined in __init__ but never used in forward(); omitted.


def enhanced_tcn2_forward(x, p, num_classes=2, group=None):
    B, T, L, F = x.shape
    assert F == C_IN
    TL = T * L
    G = group if group is not None else _choose_group(B, TL)
    assert B % G == 0
    NG = B // G
    GR = G * TL
    GT = G * T
    f32 = jnp.float32

    # ---- glue: fold eval-mode BatchNorms + conv biases into weights / shifts ----
    s_in, t_in = fold_bn(p["in_g"], p["in_b"], p["in_m"], p["in_v"])
    s1, t1 = fold_bn(p["bn1_g"], p["bn1_b"], p["bn1_m"], p["bn1_v"])
    s2, t2 = fold_bn(p["bn2_g"], p["bn2_b"], p["bn2_m"], p["bn2_v"])
    t1 = p["c1_b"] * s1 + t1
    t2 = p["c2_b"] * s2 + t2
    W1 = jnp.transpose(p["c1_w"], (2, 1, 0))          # (3, 5, 64)   taps x in x out (raw)
    W2 = jnp.transpose(p["c2_w"], (2, 1, 0))          # (3, 64, 128)
    w1f = W1 * s_in[None, :, None] * s1[None, None, :]   # input-BN scale + BN1 scale folded
    w2_cat = (W2 * s2[None, None, :]).reshape(3 * C1, C2)  # BN2 scale folded, taps stacked on K

    # frame-boundary masks (also zero the wrap between stacked elements / whole-slab wrap)
    ridx = jnp.arange(GR)
    mlo = (ridx % L != 0).astype(f32).reshape(GR, 1)
    mhi = (ridx % L != (L - 1)).astype(f32).reshape(GR, 1)
    masks = jnp.concatenate([mlo, mhi], axis=1)       # (GR, 2)

    # boundary-aware per-row bias for layer 1: input-BN shift pushed through the conv taps,
    # plus conv1 bias + BN1 shift (constant term uses raw taps, scaled by s1 only).
    tb = [(t_in @ W1[k]) * s1 for k in range(3)]      # each (64,)
    b1_rows = (t1 + tb[1])[None, :] + mlo * tb[0][None, :] + mhi * tb[2][None, :]   # (GR, 64)

    # block-diagonal per-frame avg-pool matrix for all G stacked elements
    pool = ((ridx[None, :] // L) == jnp.arange(GT)[:, None]).astype(f32) / L        # (GT, GR)

    # pack remaining small vectors into one (4, 128) array:
    #   row0 = conv2 shift, row1 = attention weight row (bias dropped: softmax-invariant),
    #   row2 = classifier b1 (padded), row3 = classifier b2 (padded to 128 output lanes)
    consts = jnp.zeros((4, C2), f32)
    consts = consts.at[0].set(t2)
    consts = consts.at[1].set(p["att_w"].reshape(C2))
    consts = consts.at[2, :C_HID].set(p["cl1_b"])
    consts = consts.at[3, :num_classes].set(p["cl2_b"])

    wc1 = p["cl1_w"].T                                                # (128, 64)
    wc2p = jnp.zeros((C_HID, C2), f32).at[:, :num_classes].set(p["cl2_w"].T)   # (64, 128)

    x_slab = x.reshape(NG, GR, F)     # G elements stacked per grid step, one (GR, 5) slab each

    zero2 = lambda b: (0, 0)
    zero3 = lambda b: (0, 0, 0)
    out_padded = pl.pallas_call(
        fused_kernel,
        out_shape=jax.ShapeDtypeStruct((NG, G, C2), f32),
        grid=(NG,),
        in_specs=[
            pl.BlockSpec((1, GR, F), lambda b: (b, 0, 0)),   # stacked input slab
            pl.BlockSpec((GR, 2), zero2),                    # boundary masks [mlo, mhi]
            pl.BlockSpec((3, F, C1), zero3),                 # conv1 taps (scales folded)
            pl.BlockSpec((GR, C1), zero2),                   # conv1 per-row bias
            pl.BlockSpec((3 * C1, C2), zero2),               # conv2 taps stacked on K
            pl.BlockSpec((GT, GR), zero2),                   # block-diagonal avg-pool matrix
            pl.BlockSpec((4, C2), zero2),                    # packed shifts / biases / attn w
            pl.BlockSpec((C2, C_HID), zero2),                # classifier W1
            pl.BlockSpec((C_HID, C2), zero2),                # classifier W2 (lane-padded)
        ],
        out_specs=pl.BlockSpec((1, G, C2), lambda b: (b, 0, 0)),
        compiler_params=pltpu.CompilerParams(dimension_semantics=("parallel",)),
    )(x_slab, masks, w1f, b1_rows, w2_cat, pool, consts, wc1, wc2p)

    return out_padded.reshape(B, C2)[:, :num_classes]


def reference_forward(x, p, num_classes=2):
    """Pure-JAX reference (eval-mode semantics) for correctness checking."""
    s_in, t_in = fold_bn(p["in_g"], p["in_b"], p["in_m"], p["in_v"])
    s1, t1 = fold_bn(p["bn1_g"], p["bn1_b"], p["bn1_m"], p["bn1_v"])
    s2, t2 = fold_bn(p["bn2_g"], p["bn2_b"], p["bn2_m"], p["bn2_v"])
    t1 = p["c1_b"] * s1 + t1
    t2 = p["c2_b"] * s2 + t2
    w1 = jnp.transpose(p["c1_w"], (2, 1, 0))
    w2 = jnp.transpose(p["c2_w"], (2, 1, 0))

    def conv3(h, w):   # h: (B,T,L,Cin), w: (3,Cin,Cout); k=3, pad=1 along L
        hm = jnp.pad(h, ((0, 0), (0, 0), (1, 0), (0, 0)))[:, :, :-1, :]
        hp = jnp.pad(h, ((0, 0), (0, 0), (0, 1), (0, 0)))[:, :, 1:, :]
        return (jnp.einsum('btlc,cd->btld', hm, w[0])
                + jnp.einsum('btlc,cd->btld', h, w[1])
                + jnp.einsum('btlc,cd->btld', hp, w[2]))

    xb = x * s_in + t_in
    y = jnp.maximum(conv3(xb, w1) * s1 + t1, 0.0)
    z = conv3(y, w2) * s2 + t2
    feat = jnp.mean(z, axis=2)                              # (B, T, 128)
    logits = feat @ p["att_w"].T + p["att_b"]               # (B, T, 1)
    attn = jax.nn.softmax(logits, axis=1)
    weighted = jnp.sum(feat * attn, axis=1)                 # (B, 128)
    h = jnp.maximum(weighted @ p["cl1_w"].T + p["cl1_b"], 0.0)
    return h @ p["cl2_w"].T + p["cl2_b"]


if __name__ == "__main__":
    num_classes = 2
    key = jax.random.PRNGKey(0)
    k_param, k_x = jax.random.split(key)
    params = init_params(k_param, num_classes=num_classes)
    # primary: B=8 -> G=4 elements per step (512 rows/step), 2 parallel grid steps;
    # secondary: B=2 -> G=1 (keeps 2 parallel steps), exercises the ungrouped path.
    for i, (B, T, L) in enumerate([(8, 8, 16), (2, 8, 16)]):
        x = jax.random.normal(jax.random.fold_in(k_x, i), (B, T, L, C_IN), dtype=jnp.float32)
        out = jax.block_until_ready(enhanced_tcn2_forward(x, params, num_classes=num_classes))
        ref = reference_forward(x, params, num_classes=num_classes)
        assert out.shape == (B, num_classes)
        assert bool(jnp.all(jnp.isfinite(out)))
        assert bool(jnp.allclose(out, ref, rtol=2e-3, atol=2e-3))
    print("KERNEL_OK")
</pallas_src>

<mosaic_0001>
module attributes {stable_mosaic.version = 11 : i64} {
  func.func @fused_kernel(%arg0: i32, %arg1: memref<1x512x5xf32, #tpu.memory_space<vmem>>, %arg2: memref<512x2xf32, #tpu.memory_space<vmem>>, %arg3: memref<3x5x64xf32, #tpu.memory_space<vmem>>, %arg4: memref<512x64xf32, #tpu.memory_space<vmem>>, %arg5: memref<192x128xf32, #tpu.memory_space<vmem>>, %arg6: memref<32x512xf32, #tpu.memory_space<vmem>>, %arg7: memref<4x128xf32, #tpu.memory_space<vmem>>, %arg8: memref<128x64xf32, #tpu.memory_space<vmem>>, %arg9: memref<64x128xf32, #tpu.memory_space<vmem>>, %arg10: memref<1x4x128xf32, #tpu.memory_space<vmem>>) attributes {dimension_semantics = [#tpu.dimension_semantics<parallel>], iteration_bounds = array<i64: 2>, scalar_prefetch = 0 : i64, scratch_operands = 0 : i64, tpu.core_type = #tpu.core_type<tc>, window_params = [{transform_indices = @transform_0, window_bounds = array<i64: 1, 512, 5>}, {pipeline_mode = #tpu.pipeline_mode<synchronous>, transform_indices = @transform_1, window_bounds = array<i64: 512, 2>}, {pipeline_mode = #tpu.pipeline_mode<synchronous>, transform_indices = @transform_2, window_bounds = array<i64: 3, 5, 64>}, {pipeline_mode = #tpu.pipeline_mode<synchronous>, transform_indices = @transform_3, window_bounds = array<i64: 512, 64>}, {pipeline_mode = #tpu.pipeline_mode<synchronous>, transform_indices = @transform_4, window_bounds = array<i64: 192, 128>}, {pipeline_mode = #tpu.pipeline_mode<synchronous>, transform_indices = @transform_5, window_bounds = array<i64: 32, 512>}, {pipeline_mode = #tpu.pipeline_mode<synchronous>, transform_indices = @transform_6, window_bounds = array<i64: 4, 128>}, {pipeline_mode = #tpu.pipeline_mode<synchronous>, transform_indices = @transform_7, window_bounds = array<i64: 128, 64>}, {pipeline_mode = #tpu.pipeline_mode<synchronous>, transform_indices = @transform_8, window_bounds = array<i64: 64, 128>}, {transform_indices = @transform_9, window_bounds = array<i64: 1, 4, 128>}]} {
    %c0 = arith.constant 0 : index
    %c0_0 = arith.constant 0 : index
    %0 = vector.load %arg2[%c0, %c0_0] : memref<512x2xf32, #tpu.memory_space<vmem>>, vector<512x1xf32>
    %c0_1 = arith.constant 0 : index
    %c1 = arith.constant 1 : index
    %1 = vector.load %arg2[%c0_1, %c1] : memref<512x2xf32, #tpu.memory_space<vmem>>, vector<512x1xf32>
    %c0_2 = arith.constant 0 : index
    %c0_3 = arith.constant 0 : index
    %c0_4 = arith.constant 0 : index
    %2 = vector.load %arg1[%c0_2, %c0_3, %c0_4] : memref<1x512x5xf32, #tpu.memory_space<vmem>>, vector<1x512x5xf32>
    %3 = vector.shape_cast %2 : vector<1x512x5xf32> to vector<512x5xf32>
    %c1_i32 = arith.constant 1 : i32
    %4 = tpu.dynamic_rotate %3 by %c1_i32 dim 0 : vector<512x5xf32>, i32 -> vector<512x5xf32>
    %5 = vector.broadcast %0 : vector<512x1xf32> to vector<512x5xf32>
    %6 = arith.mulf %4, %5 : vector<512x5xf32>
    %c511_i32 = arith.constant 511 : i32
    %7 = tpu.dynamic_rotate %3 by %c511_i32 dim 0 : vector<512x5xf32>, i32 -> vector<512x5xf32>
    %8 = vector.broadcast %1 : vector<512x1xf32> to vector<512x5xf32>
    %9 = arith.mulf %7, %8 : vector<512x5xf32>
    %c0_5 = arith.constant 0 : index
    %c0_6 = arith.constant 0 : index
    %c0_7 = arith.constant 0 : index
    %10 = vector.load %arg3[%c0_5, %c0_6, %c0_7] : memref<3x5x64xf32, #tpu.memory_space<vmem>>, vector<1x5x64xf32>
    %11 = vector.shape_cast %10 : vector<1x5x64xf32> to vector<5x64xf32>
    %cst = arith.constant dense<0.000000e+00> : vector<512x64xf32>
    %12 = tpu.matmul %6, %11, %cst {dimension_numbers = #tpu.dot_dimension_numbers<[1], [0], [0], [1], [0, 0, 1, 1], [], []>} : vector<512x5xf32>, vector<5x64xf32>, vector<512x64xf32> -> vector<512x64xf32>
    %c1_8 = arith.constant 1 : index
    %c0_9 = arith.constant 0 : index
    %c0_10 = arith.constant 0 : index
    %13 = vector.load %arg3[%c1_8, %c0_9, %c0_10] : memref<3x5x64xf32, #tpu.memory_space<vmem>>, vector<1x5x64xf32>
    %14 = vector.shape_cast %13 : vector<1x5x64xf32> to vector<5x64xf32>
    %cst_11 = arith.constant dense<0.000000e+00> : vector<512x64xf32>
    %15 = tpu.matmul %3, %14, %cst_11 {dimension_numbers = #tpu.dot_dimension_numbers<[1], [0], [0], [1], [0, 0, 1, 1], [], []>} : vector<512x5xf32>, vector<5x64xf32>, vector<512x64xf32> -> vector<512x64xf32>
    %16 = arith.addf %12, %15 : vector<512x64xf32>
    %c2 = arith.constant 2 : index
    %c0_12 = arith.constant 0 : index
    %c0_13 = arith.constant 0 : index
    %17 = vector.load %arg3[%c2, %c0_12, %c0_13] : memref<3x5x64xf32, #tpu.memory_space<vmem>>, vector<1x5x64xf32>
    %18 = vector.shape_cast %17 : vector<1x5x64xf32> to vector<5x64xf32>
    %cst_14 = arith.constant dense<0.000000e+00> : vector<512x64xf32>
    %19 = tpu.matmul %9, %18, %cst_14 {dimension_numbers = #tpu.dot_dimension_numbers<[1], [0], [0], [1], [0, 0, 1, 1], [], []>} : vector<512x5xf32>, vector<5x64xf32>, vector<512x64xf32> -> vector<512x64xf32>
    %20 = arith.addf %16, %19 : vector<512x64xf32>
    %c0_15 = arith.constant 0 : index
    %c0_16 = arith.constant 0 : index
    %21 = vector.load %arg4[%c0_15, %c0_16] : memref<512x64xf32, #tpu.memory_space<vmem>>, vector<512x64xf32>
    %22 = arith.addf %20, %21 : vector<512x64xf32>
    %cst_17 = arith.constant 0.000000e+00 : f32
    %23 = vector.broadcast %cst_17 : f32 to vector<512x64xf32>
    %24 = arith.maximumf %22, %23 : vector<512x64xf32>
    %c1_i32_18 = arith.constant 1 : i32
    %25 = tpu.dynamic_rotate %24 by %c1_i32_18 dim 0 : vector<512x64xf32>, i32 -> vector<512x64xf32>
    %26 = vector.broadcast %0 : vector<512x1xf32> to vector<512x64xf32>
    %27 = arith.mulf %25, %26 : vector<512x64xf32>
    %c511_i32_19 = arith.constant 511 : i32
    %28 = tpu.dynamic_rotate %24 by %c511_i32_19 dim 0 : vector<512x64xf32>, i32 -> vector<512x64xf32>
    %29 = vector.broadcast %1 : vector<512x1xf32> to vector<512x64xf32>
    %30 = arith.mulf %28, %29 : vector<512x64xf32>
    %31 = tpu.concatenate %27, %24, %30 in 1 : vector<512x64xf32>, vector<512x64xf32>, vector<512x64xf32> -> vector<512x192xf32>
    %c0_20 = arith.constant 0 : index
    %c0_21 = arith.constant 0 : index
    %32 = vector.load %arg5[%c0_20, %c0_21] : memref<192x128xf32, #tpu.memory_space<vmem>>, vector<192x128xf32>
    %cst_22 = arith.constant dense<0.000000e+00> : vector<512x128xf32>
    %33 = tpu.matmul %31, %32, %cst_22 {dimension_numbers = #tpu.dot_dimension_numbers<[1], [0], [0], [1], [0, 0, 1, 1], [], []>} : vector<512x192xf32>, vector<192x128xf32>, vector<512x128xf32> -> vector<512x128xf32>
    %c0_23 = arith.constant 0 : index
    %c0_24 = arith.constant 0 : index
    %34 = vector.load %arg7[%c0_23, %c0_24] : memref<4x128xf32, #tpu.memory_space<vmem>>, vector<1x128xf32>
    %35 = vector.broadcast %34 : vector<1x128xf32> to vector<512x128xf32>
    %36 = arith.addf %33, %35 : vector<512x128xf32>
    %c0_25 = arith.constant 0 : index
    %c0_26 = arith.constant 0 : index
    %37 = vector.load %arg6[%c0_25, %c0_26] : memref<32x512xf32, #tpu.memory_space<vmem>>, vector<32x512xf32>
    %cst_27 = arith.constant dense<0.000000e+00> : vector<32x128xf32>
    %38 = tpu.matmul %37, %36, %cst_27 {dimension_numbers = #tpu.dot_dimension_numbers<[1], [0], [0], [1], [0, 0, 1, 1], [], []>} : vector<32x512xf32>, vector<512x128xf32>, vector<32x128xf32> -> vector<32x128xf32>
    %39 = vector.shape_cast %38 : vector<32x128xf32> to vector<4x8x128xf32>
    %c1_28 = arith.constant 1 : index
    %c0_29 = arith.constant 0 : index
    %40 = vector.load %arg7[%c1_28, %c0_29] : memref<4x128xf32, #tpu.memory_space<vmem>>, vector<1x128xf32>
    %41 = vector.shape_cast %40 : vector<1x128xf32> to vector<1x1x128xf32>
    %42 = vector.broadcast %41 : vector<1x1x128xf32> to vector<4x8x128xf32>
    %43 = arith.mulf %39, %42 : vector<4x8x128xf32>
    %cst_30 = arith.constant dense<0.000000e+00> : vector<4x8xf32>
    %44 = vector.multi_reduction <add>, %43, %cst_30 [2] : vector<4x8x128xf32> to vector<4x8xf32>
    %45 = vector.shape_cast %44 : vector<4x8xf32> to vector<4x8x1xf32>
    %cst_31 = arith.constant dense<0xFF800000> : vector<4x1xf32>
    %46 = vector.multi_reduction <maximumf>, %45, %cst_31 [1] : vector<4x8x1xf32> to vector<4x1xf32>
    %47 = vector.shape_cast %46 : vector<4x1xf32> to vector<4x1x1xf32>
    %48 = vector.broadcast %47 : vector<4x1x1xf32> to vector<4x8x1xf32>
    %49 = arith.subf %45, %48 : vector<4x8x1xf32>
    %50 = math.exp %49 : vector<4x8x1xf32>
    %cst_32 = arith.constant dense<0.000000e+00> : vector<4x1xf32>
    %51 = vector.multi_reduction <add>, %50, %cst_32 [1] : vector<4x8x1xf32> to vector<4x1xf32>
    %52 = vector.shape_cast %51 : vector<4x1xf32> to vector<4x1x1xf32>
    %53 = vector.broadcast %52 : vector<4x1x1xf32> to vector<4x8x1xf32>
    %54 = arith.divf %50, %53 : vector<4x8x1xf32>
    %55 = vector.broadcast %54 : vector<4x8x1xf32> to vector<4x8x128xf32>
    %56 = arith.mulf %39, %55 : vector<4x8x128xf32>
    %cst_33 = arith.constant dense<0.000000e+00> : vector<4x128xf32>
    %57 = vector.multi_reduction <add>, %56, %cst_33 [1] : vector<4x8x128xf32> to vector<4x128xf32>
    %c0_34 = arith.constant 0 : index
    %c0_35 = arith.constant 0 : index
    %58 = vector.load %arg8[%c0_34, %c0_35] : memref<128x64xf32, #tpu.memory_space<vmem>>, vector<128x64xf32>
    %cst_36 = arith.constant dense<0.000000e+00> : vector<4x64xf32>
    %59 = tpu.matmul %57, %58, %cst_36 {dimension_numbers = #tpu.dot_dimension_numbers<[1], [0], [0], [1], [0, 0, 1, 1], [], []>} : vector<4x128xf32>, vector<128x64xf32>, vector<4x64xf32> -> vector<4x64xf32>
    %c2_37 = arith.constant 2 : index
    %c0_38 = arith.constant 0 : index
    %60 = vector.load %arg7[%c2_37, %c0_38] : memref<4x128xf32, #tpu.memory_space<vmem>>, vector<1x64xf32>
    %61 = vector.broadcast %60 : vector<1x64xf32> to vector<4x64xf32>
    %62 = arith.addf %59, %61 : vector<4x64xf32>
    %cst_39 = arith.constant 0.000000e+00 : f32
    %63 = vector.broadcast %cst_39 : f32 to vector<4x64xf32>
    %64 = arith.maximumf %62, %63 : vector<4x64xf32>
    %c0_40 = arith.constant 0 : index
    %c0_41 = arith.constant 0 : index
    %65 = vector.load %arg9[%c0_40, %c0_41] : memref<64x128xf32, #tpu.memory_space<vmem>>, vector<64x128xf32>
    %cst_42 = arith.constant dense<0.000000e+00> : vector<4x128xf32>
    %66 = tpu.matmul %64, %65, %cst_42 {dimension_numbers = #tpu.dot_dimension_numbers<[1], [0], [0], [1], [0, 0, 1, 1], [], []>} : vector<4x64xf32>, vector<64x128xf32>, vector<4x128xf32> -> vector<4x128xf32>
    %c3 = arith.constant 3 : index
    %c0_43 = arith.constant 0 : index
    %67 = vector.load %arg7[%c3, %c0_43] : memref<4x128xf32, #tpu.memory_space<vmem>>, vector<1x128xf32>
    %68 = vector.broadcast %67 : vector<1x128xf32> to vector<4x128xf32>
    %69 = arith.addf %66, %68 : vector<4x128xf32>
    %c0_44 = arith.constant 0 : index
    %c0_45 = arith.constant 0 : index
    %c0_46 = arith.constant 0 : index
    %70 = vector.load %arg10[%c0_44, %c0_45, %c0_46] : memref<1x4x128xf32, #tpu.memory_space<vmem>>, vector<1x4x128xf32>
    %71 = vector.shape_cast %70 : vector<1x4x128xf32> to vector<4x128xf32>
    %72 = vector.shape_cast %69 : vector<4x128xf32> to vector<1x4x128xf32>
    tpu.vector_store %arg10[%c0_44, %c0_45, %c0_46], %72 {strides = array<i32>} : memref<1x4x128xf32, #tpu.memory_space<vmem>>, vector<1x4x128xf32>,
    return
  }
  func.func @transform_0(%arg0: i32) -> (i32, i32, i32) {
    %c0_i32 = arith.constant 0 : i32
    %c0_i32_0 = arith.constant 0 : i32
    %c0_i32_1 = arith.constant 0 : i32
    return %arg0, %c0_i32, %c0_i32_0 : i32, i32, i32
  }
  func.func @transform_1(%arg0: i32) -> (i32, i32) {
    %c0_i32 = arith.constant 0 : i32
    %c0_i32_0 = arith.constant 0 : i32
    %c0_i32_1 = arith.constant 0 : i32
    return %c0_i32, %c0_i32_0 : i32, i32
  }
  func.func @transform_2(%arg0: i32) -> (i32, i32, i32) {
    %c0_i32 = arith.constant 0 : i32
    %c0_i32_0 = arith.constant 0 : i32
    %c0_i32_1 = arith.constant 0 : i32
    %c0_i32_2 = arith.constant 0 : i32
    return %c0_i32, %c0_i32_0, %c0_i32_1 : i32, i32, i32
  }
  func.func @transform_3(%arg0: i32) -> (i32, i32) {
    %c0_i32 = arith.constant 0 : i32
    %c0_i32_0 = arith.constant 0 : i32
    %c0_i32_1 = arith.constant 0 : i32
    return %c0_i32, %c0_i32_0 : i32, i32
  }
  func.func @transform_4(%arg0: i32) -> (i32, i32) {
    %c0_i32 = arith.constant 0 : i32
    %c0_i32_0 = arith.constant 0 : i32
    %c0_i32_1 = arith.constant 0 : i32
    return %c0_i32, %c0_i32_0 : i32, i32
  }
  func.func @transform_5(%arg0: i32) -> (i32, i32) {
    %c0_i32 = arith.constant 0 : i32
    %c0_i32_0 = arith.constant 0 : i32
    %c0_i32_1 = arith.constant 0 : i32
    return %c0_i32, %c0_i32_0 : i32, i32
  }
  func.func @transform_6(%arg0: i32) -> (i32, i32) {
    %c0_i32 = arith.constant 0 : i32
    %c0_i32_0 = arith.constant 0 : i32
    %c0_i32_1 = arith.constant 0 : i32
    return %c0_i32, %c0_i32_0 : i32, i32
  }
  func.func @transform_7(%arg0: i32) -> (i32, i32) {
    %c0_i32 = arith.constant 0 : i32
    %c0_i32_0 = arith.constant 0 : i32
    %c0_i32_1 = arith.constant 0 : i32
    return %c0_i32, %c0_i32_0 : i32, i32
  }
  func.func @transform_8(%arg0: i32) -> (i32, i32) {
    %c0_i32 = arith.constant 0 : i32
    %c0_i32_0 = arith.constant 0 : i32
    %c0_i32_1 = arith.constant 0 : i32
    return %c0_i32, %c0_i32_0 : i32, i32
  }
  func.func @transform_9(%arg0: i32) -> (i32, i32, i32) {
    %c0_i32 = arith.constant 0 : i32
    %c0_i32_0 = arith.constant 0 : i32
    %c0_i32_1 = arith.constant 0 : i32
    return %arg0, %c0_i32, %c0_i32_0 : i32, i32, i32
  }
}

</mosaic_0001>

<llo_original>
// kernel: tpu_custom_call.1
$region0: #{tpu_custom_call.1}
  #allocation0 [shape = 'u32[]', space=smem, size = 0x4, offset = 0x4, fixed_abs, tag = 'smem constant byte address 0x4 - core index']
  #allocation1 [shape = 'u32[72,128]{1,0:T(1,128)}', space=vmem, size = 0x9000, scoped, tag = 'internal scratch']
  %s0 = inlined_call_operand.vmem [shape: f32[2,512,5], index: 0, kind: input, shape index: {}]
  %s1 = inlined_call_operand.vmem [shape: f32[512,2], index: 1, kind: input, shape index: {}]
  %s2 = inlined_call_operand.vmem [shape: f32[3,5,64], index: 2, kind: input, shape index: {}]
  %s3 = inlined_call_operand.vmem [shape: f32[512,64], index: 3, kind: input, shape index: {}]
  %s4 = inlined_call_operand.vmem [shape: f32[192,128], index: 4, kind: input, shape index: {}]
  %s5 = inlined_call_operand.vmem [shape: f32[32,512], index: 5, kind: input, shape index: {}]
  %s6 = inlined_call_operand.vmem [shape: f32[4,128], index: 6, kind: input, shape index: {}]
  %s7 = inlined_call_operand.vmem [shape: f32[128,64], index: 7, kind: input, shape index: {}]
  %s8 = inlined_call_operand.vmem [shape: f32[64,128], index: 8, kind: input, shape index: {}]
  %s9 = inlined_call_operand.hbm [shape: f32[2,4,128], index: 9, kind: output, shape index: {}]
  %s10 = sld [smem:[#allocation0]]
  $region69: #{tpu_custom_call.1} parent=0
    _
  %s12 = ssub.s32 1, %s10
  %s13 = scalar_select 0, %s12, %s10
  $region1: #{tpu_custom_call.1} parent=0
    #allocation2 [shape = 'u8[4096]{0}', space=vmem, size = 0x1000, scoped, tag = 'output window, operand 0']
    #allocation3 [shape = 's32[2]{0}', space=sflag, size = 0x8, scoped, tag = 'scoped memory for tpu_custom_call.1']
    %14 = vsyncpa [#allocation3], 0
    %s15 = scalar_lea.sflag [#allocation3], 1
    %16 = vsyncpa %s15, 0
    loop: start=0, step=1, limit=4
    $region2: #{tpu_custom_call.1} parent=1 // loop_pre_header
      _
    $region3: #{tpu_custom_call.1} parent=1 // loop_header
      %s18 = sphi 0, %s22
      %p19 = scmp.ge.s32.totalorder %s18, 4
      %s28 = sphi 0, %s30
      %s31 = sphi 0, %s28
      %s32 = sphi 0, %s31
      %s48 = sphi 0, %s32
      %s52 = sphi 0, %s52
      %s54 = sphi 0, %s52
      %s55 = sphi 0, %s54
      %s69 = sphi 0, %s55
      %s73 = sphi 0, %s73
      %s75 = sphi 0, %s73
      %s76 = sphi 0, %s75
      %s90 = sphi 0, %s76
      %s94 = sphi 0, %s94
      %s96 = sphi 0, %s94
      %s97 = sphi 0, %s96
      %s111 = sphi 0, %s97
      %s115 = sphi 0, %s115
      %s117 = sphi 0, %s115
      %s118 = sphi 0, %s117
      %s132 = sphi 0, %s118
      %s136 = sphi 0, %s136
      %s138 = sphi 0, %s136
      %s139 = sphi 0, %s138
      %s153 = sphi 0, %s139
      %s157 = sphi 0, %s157
      %s159 = sphi 0, %s157
      %s160 = sphi 0, %s159
      %s174 = sphi 0, %s160
      %s178 = sphi 0, %s178
      %s180 = sphi 0, %s178
      %s181 = sphi 0, %s180
      %s195 = sphi 0, %s181
      %s199 = sphi 0, %s199
      %s201 = sphi 0, %s199
      %s202 = sphi 0, %s201
      %s216 = sphi 0, %s202
      %s222 = sphi 0, %s224
      %s225 = sphi 0, %s222
      %s226 = sphi 0, %s225
      %s242 = sphi 0, %s226
    $region4: #{tpu_custom_call.1} parent=1 // loop_header_branch
      %21 = sbr.rel (%p19) target = $region8
    $region5: #{tpu_custom_call.1} parent=1 // loop_body
      %s23 = ssub.s32 %s18, 1
      %s24 = ssub.s32 %s18, 2
      %s25 = sadd.s32 %s18, 1
      %s26 = ssub.s32 %s18, %s25
      %p27 = scmp.eq.s32.totalorder %s26, 0
      %s29 = sadd.s32 %s28, 1
      %s30 = scalar_select %p27, %s28, %s29
      %p33 = pneg %p27
      %p34 = scmp.eq.s32.totalorder %s18, 1
      %p35 = por %p33, %p34
      %p36 = scmp.ne.s32.totalorder %s28, %s31
      %p37 = scmp.eq.s32.totalorder %s18, 0
      %p38 = por %p36, %p37
      %p39 = scmp.ne.s32.totalorder %s28, %s31
      %p40 = scmp.eq.s32.totalorder %s23, 1
      %p41 = por %p39, %p40
      %p42 = scmp.ne.s32.totalorder %s31, %s32
      %p43 = scmp.eq.s32.totalorder %s23, 0
      %p44 = por %p42, %p43
      %p45 = scmp.ne.s32.totalorder %s31, %s32
      %p46 = scmp.eq.s32.totalorder %s24, 1
      %p47 = por %p45, %p46
      %p49 = scmp.ne.s32.totalorder %s32, %s48
      %p50 = scmp.eq.s32.totalorder %s24, 0
      %p51 = por %p49, %p50
      %s53 = sadd.s32 %s52, 1
      %p56 = scmp.eq.s32.totalorder %s18, 1
      %p57 = scmp.ne.s32.totalorder %s52, %s54
      %p58 = scmp.eq.s32.totalorder %s18, 0
      %p59 = por %p57, %p58
      %p60 = scmp.ne.s32.totalorder %s52, %s54
      %p61 = scmp.eq.s32.totalorder %s23, 1
      %p62 = por %p60, %p61
      %p63 = scmp.ne.s32.totalorder %s54, %s55
      %p64 = scmp.eq.s32.totalorder %s23, 0
      %p65 = por %p63, %p64
      %p66 = scmp.ne.s32.totalorder %s54, %s55
      %p67 = scmp.eq.s32.totalorder %s24, 1
      %p68 = por %p66, %p67
      %p70 = scmp.ne.s32.totalorder %s55, %s69
      %p71 = scmp.eq.s32.totalorder %s24, 0
      %p72 = por %p70, %p71
      %s74 = sadd.s32 %s73, 1
      %p77 = scmp.eq.s32.totalorder %s18, 1
      %p78 = scmp.ne.s32.totalorder %s73, %s75
      %p79 = scmp.eq.s32.totalorder %s18, 0
      %p80 = por %p78, %p79
      %p81 = scmp.ne.s32.totalorder %s73, %s75
      %p82 = scmp.eq.s32.totalorder %s23, 1
      %p83 = por %p81, %p82
      %p84 = scmp.ne.s32.totalorder %s75, %s76
      %p85 = scmp.eq.s32.totalorder %s23, 0
      %p86 = por %p84, %p85
      %p87 = scmp.ne.s32.totalorder %s75, %s76
      %p88 = scmp.eq.s32.totalorder %s24, 1
      %p89 = por %p87, %p88
      %p91 = scmp.ne.s32.totalorder %s76, %s90
      %p92 = scmp.eq.s32.totalorder %s24, 0
      %p93 = por %p91, %p92
      %s95 = sadd.s32 %s94, 1
      %p98 = scmp.eq.s32.totalorder %s18, 1
      %p99 = scmp.ne.s32.totalorder %s94, %s96
      %p100 = scmp.eq.s32.totalorder %s18, 0
      %p101 = por %p99, %p100
      %p102 = scmp.ne.s32.totalorder %s94, %s96
      %p103 = scmp.eq.s32.totalorder %s23, 1
      %p104 = por %p102, %p103
      %p105 = scmp.ne.s32.totalorder %s96, %s97
      %p106 = scmp.eq.s32.totalorder %s23, 0
      %p107 = por %p105, %p106
      %p108 = scmp.ne.s32.totalorder %s96, %s97
      %p109 = scmp.eq.s32.totalorder %s24, 1
      %p110 = por %p108, %p109
      %p112 = scmp.ne.s32.totalorder %s97, %s111
      %p113 = scmp.eq.s32.totalorder %s24, 0
      %p114 = por %p112, %p113
      %s116 = sadd.s32 %s115, 1
      %p119 = scmp.eq.s32.totalorder %s18, 1
      %p120 = scmp.ne.s32.totalorder %s115, %s117
      %p121 = scmp.eq.s32.totalorder %s18, 0
      %p122 = por %p120, %p121
      %p123 = scmp.ne.s32.totalorder %s115, %s117
      %p124 = scmp.eq.s32.totalorder %s23, 1
      %p125 = por %p123, %p124
      %p126 = scmp.ne.s32.totalorder %s117, %s118
      %p127 = scmp.eq.s32.totalorder %s23, 0
      %p128 = por %p126, %p127
      %p129 = scmp.ne.s32.totalorder %s117, %s118
      %p130 = scmp.eq.s32.totalorder %s24, 1
      %p131 = por %p129, %p130
      %p133 = scmp.ne.s32.totalorder %s118, %s132
      %p134 = scmp.eq.s32.totalorder %s24, 0
      %p135 = por %p133, %p134
      %s137 = sadd.s32 %s136, 1
      %p140 = scmp.eq.s32.totalorder %s18, 1
      %p141 = scmp.ne.s32.totalorder %s136, %s138
      %p142 = scmp.eq.s32.totalorder %s18, 0
      %p143 = por %p141, %p142
      %p144 = scmp.ne.s32.totalorder %s136, %s138
      %p145 = scmp.eq.s32.totalorder %s23, 1
      %p146 = por %p144, %p145
      %p147 = scmp.ne.s32.totalorder %s138, %s139
      %p148 = scmp.eq.s32.totalorder %s23, 0
      %p149 = por %p147, %p148
      %p150 = scmp.ne.s32.totalorder %s138, %s139
      %p151 = scmp.eq.s32.totalorder %s24, 1
      %p152 = por %p150, %p151
      %p154 = scmp.ne.s32.totalorder %s139, %s153
      %p155 = scmp.eq.s32.totalorder %s24, 0
      %p156 = por %p154, %p155
      %s158 = sadd.s32 %s157, 1
      %p161 = scmp.eq.s32.totalorder %s18, 1
      %p162 = scmp.ne.s32.totalorder %s157, %s159
      %p163 = scmp.eq.s32.totalorder %s18, 0
      %p164 = por %p162, %p163
      %p165 = scmp.ne.s32.totalorder %s157, %s159
      %p166 = scmp.eq.s32.totalorder %s23, 1
      %p167 = por %p165, %p166
      %p168 = scmp.ne.s32.totalorder %s159, %s160
      %p169 = scmp.eq.s32.totalorder %s23, 0
      %p170 = por %p168, %p169
      %p171 = scmp.ne.s32.totalorder %s159, %s160
      %p172 = scmp.eq.s32.totalorder %s24, 1
      %p173 = por %p171, %p172
      %p175 = scmp.ne.s32.totalorder %s160, %s174
      %p176 = scmp.eq.s32.totalorder %s24, 0
      %p177 = por %p175, %p176
      %s179 = sadd.s32 %s178, 1
      %p182 = scmp.eq.s32.totalorder %s18, 1
      %p183 = scmp.ne.s32.totalorder %s178, %s180
      %p184 = scmp.eq.s32.totalorder %s18, 0
      %p185 = por %p183, %p184
      %p186 = scmp.ne.s32.totalorder %s178, %s180
      %p187 = scmp.eq.s32.totalorder %s23, 1
      %p188 = por %p186, %p187
      %p189 = scmp.ne.s32.totalorder %s180, %s181
      %p190 = scmp.eq.s32.totalorder %s23, 0
      %p191 = por %p189, %p190
      %p192 = scmp.ne.s32.totalorder %s180, %s181
      %p193 = scmp.eq.s32.totalorder %s24, 1
      %p194 = por %p192, %p193
      %p196 = scmp.ne.s32.totalorder %s181, %s195
      %p197 = scmp.eq.s32.totalorder %s24, 0
      %p198 = por %p196, %p197
      %s200 = sadd.s32 %s199, 1
      %p203 = scmp.eq.s32.totalorder %s18, 1
      %p204 = scmp.ne.s32.totalorder %s199, %s201
      %p205 = scmp.eq.s32.totalorder %s18, 0
      %p206 = por %p204, %p205
      %p207 = scmp.ne.s32.totalorder %s199, %s201
      %p208 = scmp.eq.s32.totalorder %s23, 1
      %p209 = por %p207, %p208
      %p210 = scmp.ne.s32.totalorder %s201, %s202
      %p211 = scmp.eq.s32.totalorder %s23, 0
      %p212 = por %p210, %p211
      %p213 = scmp.ne.s32.totalorder %s201, %s202
      %p214 = scmp.eq.s32.totalorder %s24, 1
      %p215 = por %p213, %p214
      %p217 = scmp.ne.s32.totalorder %s202, %s216
      %p218 = scmp.eq.s32.totalorder %s24, 0
      %p219 = por %p217, %p218
      %s220 = ssub.s32 %s18, %s25
      %p221 = scmp.eq.s32.totalorder %s220, 0
      %s223 = sadd.s32 %s222, 1
      %s224 = scalar_select %p221, %s222, %s223
      %p227 = pneg %p221
      %p228 = scmp.eq.s32.totalorder %s18, 1
      %p229 = por %p227, %p228
      %p230 = scmp.ne.s32.totalorder %s222, %s225
      %p231 = scmp.eq.s32.totalorder %s18, 0
      %p232 = por %p230, %p231
      %p233 = scmp.ne.s32.totalorder %s222, %s225
      %p234 = scmp.eq.s32.totalorder %s23, 1
      %p235 = por %p233, %p234
      %p236 = scmp.ne.s32.totalorder %s225, %s226
      %p237 = scmp.eq.s32.totalorder %s23, 0
      %p238 = por %p236, %p237
      %p239 = scmp.ne.s32.totalorder %s225, %s226
      %p240 = scmp.eq.s32.totalorder %s24, 1
      %p241 = por %p239, %p240
      %p243 = scmp.ne.s32.totalorder %s226, %s242
      %p244 = scmp.eq.s32.totalorder %s24, 0
      %p245 = por %p243, %p244
      %p246 = scmp.le.s32.totalorder 1, %s18
      %p247 = scmp.lt.s32.totalorder %s18, 3
      %p248 = pnand %p246, %p247
      %p249 = pneg %p248
      // Predicated region
      $region9: #{tpu_custom_call.1} parent=5 // pred_check
        _
      $region10: #{tpu_custom_call.1} parent=5 // pred_check_branch
        %251 = sbr.rel (%p248) target = $region12
      $region11: #{tpu_custom_call.1} parent=5 // pred_region
        %s252 = ssub.s32 %s18, 1
        // Predicated region
        $region13: #{tpu_custom_call.1} parent=11 // pred_check
          %p253 = pneg %p65
        $region14: #{tpu_custom_call.1} parent=11 // pred_check_branch
          %255 = sbr.rel (%p253) target = $region16
        $region15: #{tpu_custom_call.1} parent=11 // pred_region
          _
        $region16: #{tpu_custom_call.1} parent=11 // pred_fallthru
          _
        // Predicated region
        $region17: #{tpu_custom_call.1} parent=11 // pred_check
          %p256 = pneg %p86
        $region18: #{tpu_custom_call.1} parent=11 // pred_check_branch
          %258 = sbr.rel (%p256) target = $region20
        $region19: #{tpu_custom_call.1} parent=11 // pred_region
          _
        $region20: #{tpu_custom_call.1} parent=11 // pred_fallthru
          _
        // Predicated region
        $region21: #{tpu_custom_call.1} parent=11 // pred_check
          %p259 = pneg %p107
        $region22: #{tpu_custom_call.1} parent=11 // pred_check_branch
          %261 = sbr.rel (%p259) target = $region24
        $region23: #{tpu_custom_call.1} parent=11 // pred_region
          _
        $region24: #{tpu_custom_call.1} parent=11 // pred_fallthru
          _
        // Predicated region
        $region25: #{tpu_custom_call.1} parent=11 // pred_check
          %p262 = pneg %p128
        $region26: #{tpu_custom_call.1} parent=11 // pred_check_branch
          %264 = sbr.rel (%p262) target = $region28
        $region27: #{tpu_custom_call.1} parent=11 // pred_region
          _
        $region28: #{tpu_custom_call.1} parent=11 // pred_fallthru
          _
        // Predicated region
        $region29: #{tpu_custom_call.1} parent=11 // pred_check
          %p265 = pneg %p149
        $region30: #{tpu_custom_call.1} parent=11 // pred_check_branch
          %267 = sbr.rel (%p265) target = $region32
        $region31: #{tpu_custom_call.1} parent=11 // pred_region
          _
        $region32: #{tpu_custom_call.1} parent=11 // pred_fallthru
          _
        // Predicated region
        $region33: #{tpu_custom_call.1} parent=11 // pred_check
          %p268 = pneg %p170
        $region34: #{tpu_custom_call.1} parent=11 // pred_check_branch
          %270 = sbr.rel (%p268) target = $region36
        $region35: #{tpu_custom_call.1} parent=11 // pred_region
          _
        $region36: #{tpu_custom_call.1} parent=11 // pred_fallthru
          _
        // Predicated region
        $region37: #{tpu_custom_call.1} parent=11 // pred_check
          %p271 = pneg %p191
        $region38: #{tpu_custom_call.1} parent=11 // pred_check_branch
          %273 = sbr.rel (%p271) target = $region40
        $region39: #{tpu_custom_call.1} parent=11 // pred_region
          _
        $region40: #{tpu_custom_call.1} parent=11 // pred_fallthru
          _
        // Predicated region
        $region41: #{tpu_custom_call.1} parent=11 // pred_check
          %p274 = pneg %p212
        $region42: #{tpu_custom_call.1} parent=11 // pred_check_branch
          %276 = sbr.rel (%p274) target = $region44
        $region43: #{tpu_custom_call.1} parent=11 // pred_region
          _
        $region44: #{tpu_custom_call.1} parent=11 // pred_fallthru
          _
      $region12: #{tpu_custom_call.1} parent=5 // pred_fallthru
        _
      %p277 = scmp.lt.s32.totalorder %s18, 2
      // Predicated region
      $region45: #{tpu_custom_call.1} parent=5 // pred_check
        %p278 = pneg %p277
      $region46: #{tpu_custom_call.1} parent=5 // pred_check_branch
        %280 = sbr.rel (%p278) target = $region48
      $region47: #{tpu_custom_call.1} parent=5 // pred_region
        // Predicated region
        $region49: #{tpu_custom_call.1} parent=47 // pred_check
          %p281 = pneg %p38
        $region50: #{tpu_custom_call.1} parent=47 // pred_check_branch
          %283 = sbr.rel (%p281) target = $region52
        $region51: #{tpu_custom_call.1} parent=47 // pred_region
          %p284 = scmp.lt.s32.totalorder %s18, 1
          %s285 = scalar_select %p284, %s18, 1
          %s286 = smul.addr %s285, 64
          %s287 = smul.addr %s286, 8
          %s288 = scalar_lea.vmem %s0, %s287
        $region52: #{tpu_custom_call.1} parent=47 // pred_fallthru
          _
      $region48: #{tpu_custom_call.1} parent=5 // pred_fallthru
        _
      %p289 = scmp.le.s32.totalorder 1, %s18
      %p290 = scmp.lt.s32.totalorder %s18, 3
      %p291 = pnand %p289, %p290
      %p292 = pneg %p291
      // Predicated region
      $region53: #{tpu_custom_call.1} parent=5 // pred_check
        _
      $region54: #{tpu_custom_call.1} parent=5 // pred_check_branch
        %294 = sbr.rel (%p291) target = $region56
      $region55: #{tpu_custom_call.1} parent=5 // pred_region
        %s295 = ssub.s32 %s18, 1
        %p296 = scmp.lt.s32.totalorder %s23, 1
        %s297 = scalar_select %p296, %s23, 1
        %s298 = smul.addr %s297, 64
        %s299 = smul.addr %s298, 8
        %s300 = scalar_lea.vmem %s0, %s299
        %p301 = pneg %p44
        %p302 = pneg %p41
        %p303 = pneg %p65
        %p304 = pneg %p62
        %p305 = pneg %p86
        %p306 = pneg %p83
        %p307 = pneg %p107
        %p308 = pneg %p104
        %p309 = pneg %p128
        %p310 = pneg %p125
        %p311 = pneg %p149
        %p312 = pneg %p146
        %p313 = pneg %p170
        %p314 = pneg %p167
        %p315 = pneg %p191
        %p316 = pneg %p188
        %p317 = pneg %p212
        %p318 = pneg %p209
        %p319 = pneg %p238
        %p320 = pneg %p235
        %s321 = sand.u32 %s225, 1
        %s322 = scalar_lea.sflag [#allocation3], %s321
        %s323 = sand.u32 %s225, 1
        %s324 = smul.addr %s323, 4
        %s325 = scalar_lea.vmem [#allocation2], %s324
        %p326 = scmp.lt.s32.totalorder %s23, 1
        %s327 = scalar_select %p326, %s23, 1
        %s328 = smul.addr %s327, 64
        %s329 = smul.addr %s328, 8
        %s330 = scalar_lea.vmem %s0, %s329
        %v331 = vld [vmem:[%s1] sm:$0xff]
        %v332 = vld [vmem:[%s1 + $0x8] sm:$0xff]
        %v333 = vld [vmem:[%s1 + $0x10] sm:$0xff]
        %v334 = vld [vmem:[%s1 + $0x18] sm:$0xff]
        %v335 = vld [vmem:[%s1 + $0x20] sm:$0xff]
        %v336 = vld [vmem:[%s1 + $0x28] sm:$0xff]
        %v337 = vld [vmem:[%s1 + $0x30] sm:$0xff]
        %v338 = vld [vmem:[%s1 + $0x38] sm:$0xff]
        %v339 = vld [vmem:[%s1 + $0x40] sm:$0xff]
        %v340 = vld [vmem:[%s1 + $0x48] sm:$0xff]
        %v341 = vld [vmem:[%s1 + $0x50] sm:$0xff]
        %v342 = vld [vmem:[%s1 + $0x58] sm:$0xff]
        %v343 = vld [vmem:[%s1 + $0x60] sm:$0xff]
        %v344 = vld [vmem:[%s1 + $0x68] sm:$0xff]
        %v345 = vld [vmem:[%s1 + $0x70] sm:$0xff]
        %v346 = vld [vmem:[%s1 + $0x78] sm:$0xff]
        %v347 = vld [vmem:[%s1 + $0x80] sm:$0xff]
        %v348 = vld [vmem:[%s1 + $0x88] sm:$0xff]
        %v349 = vld [vmem:[%s1 + $0x90] sm:$0xff]
        %v350 = vld [vmem:[%s1 + $0x98] sm:$0xff]
        %v351 = vld [vmem:[%s1 + $0xa0] sm:$0xff]
        %v352 = vld [vmem:[%s1 + $0xa8] sm:$0xff]
        %v353 = vld [vmem:[%s1 + $0xb0] sm:$0xff]
        %v354 = vld [vmem:[%s1 + $0xb8] sm:$0xff]
        %v355 = vld [vmem:[%s1 + $0xc0] sm:$0xff]
        %v356 = vld [vmem:[%s1 + $0xc8] sm:$0xff]
        %v357 = vld [vmem:[%s1 + $0xd0] sm:$0xff]
        %v358 = vld [vmem:[%s1 + $0xd8] sm:$0xff]
        %v359 = vld [vmem:[%s1 + $0xe0] sm:$0xff]
        %v360 = vld [vmem:[%s1 + $0xe8] sm:$0xff]
        %v361 = vld [vmem:[%s1 + $0xf0] sm:$0xff]
        %v362 = vld [vmem:[%s1 + $0xf8] sm:$0xff]
        %v363 = vld [vmem:[%s1 + $0x100] sm:$0xff]
        %v364 = vld [vmem:[%s1 + $0x108] sm:$0xff]
        %v365 = vld [vmem:[%s1 + $0x110] sm:$0xff]
        %v366 = vld [vmem:[%s1 + $0x118] sm:$0xff]
        %v367 = vld [vmem:[%s1 + $0x120] sm:$0xff]
        %v368 = vld [vmem:[%s1 + $0x128] sm:$0xff]
        %v369 = vld [vmem:[%s1 + $0x130] sm:$0xff]
        %v370 = vld [vmem:[%s1 + $0x138] sm:$0xff]
        %v371 = vld [vmem:[%s1 + $0x140] sm:$0xff]
        %v372 = vld [vmem:[%s1 + $0x148] sm:$0xff]
        %v373 = vld [vmem:[%s1 + $0x150] sm:$0xff]
        %v374 = vld [vmem:[%s1 + $0x158] sm:$0xff]
        %v375 = vld [vmem:[%s1 + $0x160] sm:$0xff]
        %v376 = vld [vmem:[%s1 + $0x168] sm:$0xff]
        %v377 = vld [vmem:[%s1 + $0x170] sm:$0xff]
        %v378 = vld [vmem:[%s1 + $0x178] sm:$0xff]
        %v379 = vld [vmem:[%s1 + $0x180] sm:$0xff]
        %v380 = vld [vmem:[%s1 + $0x188] sm:$0xff]
        %v381 = vld [vmem:[%s1 + $0x190] sm:$0xff]
        %v382 = vld [vmem:[%s1 + $0x198] sm:$0xff]
        %v383 = vld [vmem:[%s1 + $0x1a0] sm:$0xff]
        %v384 = vld [vmem:[%s1 + $0x1a8] sm:$0xff]
        %v385 = vld [vmem:[%s1 + $0x1b0] sm:$0xff]
        %v386 = vld [vmem:[%s1 + $0x1b8] sm:$0xff]
        %v387 = vld [vmem:[%s1 + $0x1c0] sm:$0xff]
        %v388 = vld [vmem:[%s1 + $0x1c8] sm:$0xff]
        %v389 = vld [vmem:[%s1 + $0x1d0] sm:$0xff]
        %v390 = vld [vmem:[%s1 + $0x1d8] sm:$0xff]
        %v391 = vld [vmem:[%s1 + $0x1e0] sm:$0xff]
        %v392 = vld [vmem:[%s1 + $0x1e8] sm:$0xff]
        %v393 = vld [vmem:[%s1 + $0x1f0] sm:$0xff]
        %v394 = vld [vmem:[%s1 + $0x1f8] sm:$0xff]
        %v395 = vld [vmem:[%s330] sm:$0xff]
        %v396 = vld [vmem:[%s330 + $0x8] sm:$0xff]
        %v397 = vld [vmem:[%s330 + $0x10] sm:$0xff]
        %v398 = vld [vmem:[%s330 + $0x18] sm:$0xff]
        %v399 = vld [vmem:[%s330 + $0x20] sm:$0xff]
        %v400 = vld [vmem:[%s330 + $0x28] sm:$0xff]
        %v401 = vld [vmem:[%s330 + $0x30] sm:$0xff]
        %v402 = vld [vmem:[%s330 + $0x38] sm:$0xff]
        %v403 = vld [vmem:[%s330 + $0x40] sm:$0xff]
        %v404 = vld [vmem:[%s330 + $0x48] sm:$0xff]
        %v405 = vld [vmem:[%s330 + $0x50] sm:$0xff]
        %v406 = vld [vmem:[%s330 + $0x58] sm:$0xff]
        %v407 = vld [vmem:[%s330 + $0x60] sm:$0xff]
        %v408 = vld [vmem:[%s330 + $0x68] sm:$0xff]
        %v409 = vld [vmem:[%s330 + $0x70] sm:$0xff]
        %v410 = vld [vmem:[%s330 + $0x78] sm:$0xff]
        %v411 = vld [vmem:[%s330 + $0x80] sm:$0xff]
        %v412 = vld [vmem:[%s330 + $0x88] sm:$0xff]
        %v413 = vld [vmem:[%s330 + $0x90] sm:$0xff]
        %v414 = vld [vmem:[%s330 + $0x98] sm:$0xff]
        %v415 = vld [vmem:[%s330 + $0xa0] sm:$0xff]
        %v416 = vld [vmem:[%s330 + $0xa8] sm:$0xff]
        %v417 = vld [vmem:[%s330 + $0xb0] sm:$0xff]
        %v418 = vld [vmem:[%s330 + $0xb8] sm:$0xff]
        %v419 = vld [vmem:[%s330 + $0xc0] sm:$0xff]
        %v420 = vld [vmem:[%s330 + $0xc8] sm:$0xff]
        %v421 = vld [vmem:[%s330 + $0xd0] sm:$0xff]
        %v422 = vld [vmem:[%s330 + $0xd8] sm:$0xff]
        %v423 = vld [vmem:[%s330 + $0xe0] sm:$0xff]
        %v424 = vld [vmem:[%s330 + $0xe8] sm:$0xff]
        %v425 = vld [vmem:[%s330 + $0xf0] sm:$0xff]
        %v426 = vld [vmem:[%s330 + $0xf8] sm:$0xff]
        %v427 = vld [vmem:[%s330 + $0x100] sm:$0xff]
        %v428 = vld [vmem:[%s330 + $0x108] sm:$0xff]
        %v429 = vld [vmem:[%s330 + $0x110] sm:$0xff]
        %v430 = vld [vmem:[%s330 + $0x118] sm:$0xff]
        %v431 = vld [vmem:[%s330 + $0x120] sm:$0xff]
        %v432 = vld [vmem:[%s330 + $0x128] sm:$0xff]
        %v433 = vld [vmem:[%s330 + $0x130] sm:$0xff]
        %v434 = vld [vmem:[%s330 + $0x138] sm:$0xff]
        %v435 = vld [vmem:[%s330 + $0x140] sm:$0xff]
        %v436 = vld [vmem:[%s330 + $0x148] sm:$0xff]
        %v437 = vld [vmem:[%s330 + $0x150] sm:$0xff]
        %v438 = vld [vmem:[%s330 + $0x158] sm:$0xff]
        %v439 = vld [vmem:[%s330 + $0x160] sm:$0xff]
        %v440 = vld [vmem:[%s330 + $0x168] sm:$0xff]
        %v441 = vld [vmem:[%s330 + $0x170] sm:$0xff]
        %v442 = vld [vmem:[%s330 + $0x178] sm:$0xff]
        %v443 = vld [vmem:[%s330 + $0x180] sm:$0xff]
        %v444 = vld [vmem:[%s330 + $0x188] sm:$0xff]
        %v445 = vld [vmem:[%s330 + $0x190] sm:$0xff]
        %v446 = vld [vmem:[%s330 + $0x198] sm:$0xff]
        %v447 = vld [vmem:[%s330 + $0x1a0] sm:$0xff]
        %v448 = vld [vmem:[%s330 + $0x1a8] sm:$0xff]
        %v449 = vld [vmem:[%s330 + $0x1b0] sm:$0xff]
        %v450 = vld [vmem:[%s330 + $0x1b8] sm:$0xff]
        %v451 = vld [vmem:[%s330 + $0x1c0] sm:$0xff]
        %v452 = vld [vmem:[%s330 + $0x1c8] sm:$0xff]
        %v453 = vld [vmem:[%s330 + $0x1d0] sm:$0xff]
        %v454 = vld [vmem:[%s330 + $0x1d8] sm:$0xff]
        %v455 = vld [vmem:[%s330 + $0x1e0] sm:$0xff]
        %v456 = vld [vmem:[%s330 + $0x1e8] sm:$0xff]
        %v457 = vld [vmem:[%s330 + $0x1f0] sm:$0xff]
        %v458 = vld [vmem:[%s330 + $0x1f8] sm:$0xff]
        %v459 = vrot.slane %v395, 7
        %v460 = vrot.slane %v396, 7
        %v461 = vrot.slane %v397, 7
        %v462 = vrot.slane %v398, 7
        %v463 = vrot.slane %v399, 7
        %v464 = vrot.slane %v400, 7
        %v465 = vrot.slane %v401, 7
        %v466 = vrot.slane %v402, 7
        %v467 = vrot.slane %v403, 7
        %v468 = vrot.slane %v404, 7
        %v469 = vrot.slane %v405, 7
        %v470 = vrot.slane %v406, 7
        %v471 = vrot.slane %v407, 7
        %v472 = vrot.slane %v408, 7
        %v473 = vrot.slane %v409, 7
        %v474 = vrot.slane %v410, 7
        %v475 = vrot.slane %v411, 7
        %v476 = vrot.slane %v412, 7
        %v477 = vrot.slane %v413, 7
        %v478 = vrot.slane %v414, 7
        %v479 = vrot.slane %v415, 7
        %v480 = vrot.slane %v416, 7
        %v481 = vrot.slane %v417, 7
        %v482 = vrot.slane %v418, 7
        %v483 = vrot.slane %v419, 7
        %v484 = vrot.slane %v420, 7
        %v485 = vrot.slane %v421, 7
        %v486 = vrot.slane %v422, 7
        %v487 = vrot.slane %v423, 7
        %v488 = vrot.slane %v424, 7
        %v489 = vrot.slane %v425, 7
        %v490 = vrot.slane %v426, 7
        %v491 = vrot.slane %v427, 7
        %v492 = vrot.slane %v428, 7
        %v493 = vrot.slane %v429, 7
        %v494 = vrot.slane %v430, 7
        %v495 = vrot.slane %v431, 7
        %v496 = vrot.slane %v432, 7
        %v497 = vrot.slane %v433, 7
        %v498 = vrot.slane %v434, 7
        %v499 = vrot.slane %v435, 7
        %v500 = vrot.slane %v436, 7
        %v501 = vrot.slane %v437, 7
        %v502 = vrot.slane %v438, 7
        %v503 = vrot.slane %v439, 7
        %v504 = vrot.slane %v440, 7
        %v505 = vrot.slane %v441, 7
        %v506 = vrot.slane %v442, 7
        %v507 = vrot.slane %v443, 7
        %v508 = vrot.slane %v444, 7
        %v509 = vrot.slane %v445, 7
        %v510 = vrot.slane %v446, 7
        %v511 = vrot.slane %v447, 7
        %v512 = vrot.slane %v448, 7
        %v513 = vrot.slane %v449, 7
        %v514 = vrot.slane %v450, 7
        %v515 = vrot.slane %v451, 7
        %v516 = vrot.slane %v452, 7
        %v517 = vrot.slane %v453, 7
        %v518 = vrot.slane %v454, 7
        %v519 = vrot.slane %v455, 7
        %v520 = vrot.slane %v456, 7
        %v521 = vrot.slane %v457, 7
        %v522 = vrot.slane %v458, 7
        %v523 = vlaneseq
        %v524 = vshrl.u32 %v523, 7
        %vm525 = vcmp.lt.s32.totalorder %v524, 1
        %v526 = vsel %vm525, %v521, %v522
        %v527 = vsel %vm525, %v520, %v521
        %v528 = vsel %vm525, %v519, %v520
        %v529 = vsel %vm525, %v518, %v519
        %v530 = vsel %vm525, %v517, %v518
        %v531 = vsel %vm525, %v516, %v517
        %v532 = vsel %vm525, %v515, %v516
        %v533 = vsel %vm525, %v514, %v515
        %v534 = vsel %vm525, %v513, %v514
        %v535 = vsel %vm525, %v512, %v513
        %v536 = vsel %vm525, %v511, %v512
        %v537 = vsel %vm525, %v510, %v511
        %v538 = vsel %vm525, %v509, %v510
        %v539 = vsel %vm525, %v508, %v509
        %v540 = vsel %vm525, %v507, %v508
        %v541 = vsel %vm525, %v506, %v507
        %v542 = vsel %vm525, %v505, %v506
        %v543 = vsel %vm525, %v504, %v505
        %v544 = vsel %vm525, %v503, %v504
        %v545 = vsel %vm525, %v502, %v503
        %v546 = vsel %vm525, %v501, %v502
        %v547 = vsel %vm525, %v500, %v501
        %v548 = vsel %vm525, %v499, %v500
        %v549 = vsel %vm525, %v498, %v499
        %v550 = vsel %vm525, %v497, %v498
        %v551 = vsel %vm525, %v496, %v497
        %v552 = vsel %vm525, %v495, %v496
        %v553 = vsel %vm525, %v494, %v495
        %v554 = vsel %vm525, %v493, %v494
        %v555 = vsel %vm525, %v492, %v493
        %v556 = vsel %vm525, %v491, %v492
        %v557 = vsel %vm525, %v490, %v491
        %v558 = vsel %vm525, %v489, %v490
        %v559 = vsel %vm525, %v488, %v489
        %v560 = vsel %vm525, %v487, %v488
        %v561 = vsel %vm525, %v486, %v487
        %v562 = vsel %vm525, %v485, %v486
        %v563 = vsel %vm525, %v484, %v485
        %v564 = vsel %vm525, %v483, %v484
        %v565 = vsel %vm525, %v482, %v483
        %v566 = vsel %vm525, %v481, %v482
        %v567 = vsel %vm525, %v480, %v481
        %v568 = vsel %vm525, %v479, %v480
        %v569 = vsel %vm525, %v478, %v479
        %v570 = vsel %vm525, %v477, %v478
        %v571 = vsel %vm525, %v476, %v477
        %v572 = vsel %vm525, %v475, %v476
        %v573 = vsel %vm525, %v474, %v475
        %v574 = vsel %vm525, %v473, %v474
        %v575 = vsel %vm525, %v472, %v473
        %v576 = vsel %vm525, %v471, %v472
        %v577 = vsel %vm525, %v470, %v471
        %v578 = vsel %vm525, %v469, %v470
        %v579 = vsel %vm525, %v468, %v469
        %v580 = vsel %vm525, %v467, %v468
        %v581 = vsel %vm525, %v466, %v467
        %v582 = vsel %vm525, %v465, %v466
        %v583 = vsel %vm525, %v464, %v465
        %v584 = vsel %vm525, %v463, %v464
        %v585 = vsel %vm525, %v462, %v463
        %v586 = vsel %vm525, %v461, %v462
        %v587 = vsel %vm525, %v460, %v461
        %v588 = vsel %vm525, %v459, %v460
        %v589 = vsel %vm525, %v522, %v459
        %591 = vset.pattern.permute.xlu0 0
        %592 = vperm.xlu0 %591, %v331
        %v593 = vpop.permute.xlu0 %592
        %596 = vset.pattern.permute.xlu0 0
        %597 = vperm.xlu0 %596, %v332
        %v598 = vpop.permute.xlu0 %597
        %601 = vset.pattern.permute.xlu0 0
        %602 = vperm.xlu0 %601, %v333
        %v603 = vpop.permute.xlu0 %602
        %606 = vset.pattern.permute.xlu0 0
        %607 = vperm.xlu0 %606, %v334
        %v608 = vpop.permute.xlu0 %607
        %611 = vset.pattern.permute.xlu0 0
        %612 = vperm.xlu0 %611, %v335
        %v613 = vpop.permute.xlu0 %612
        %616 = vset.pattern.permute.xlu0 0
        %617 = vperm.xlu0 %616, %v336
        %v618 = vpop.permute.xlu0 %617
        %621 = vset.pattern.permute.xlu0 0
        %622 = vperm.xlu0 %621, %v337
        %v623 = vpop.permute.xlu0 %622
        %626 = vset.pattern.permute.xlu0 0
        %627 = vperm.xlu0 %626, %v338
        %v628 = vpop.permute.xlu0 %627
        %631 = vset.pattern.permute.xlu0 0
        %632 = vperm.xlu0 %631, %v339
        %v633 = vpop.permute.xlu0 %632
        %636 = vset.pattern.permute.xlu0 0
        %637 = vperm.xlu0 %636, %v340
        %v638 = vpop.permute.xlu0 %637
        %641 = vset.pattern.permute.xlu0 0
        %642 = vperm.xlu0 %641, %v341
        %v643 = vpop.permute.xlu0 %642
        %646 = vset.pattern.permute.xlu0 0
        %647 = vperm.xlu0 %646, %v342
        %v648 = vpop.permute.xlu0 %647
        %651 = vset.pattern.permute.xlu0 0
        %652 = vperm.xlu0 %651, %v343
        %v653 = vpop.permute.xlu0 %652
        %656 = vset.pattern.permute.xlu0 0
        %657 = vperm.xlu0 %656, %v344
        %v658 = vpop.permute.xlu0 %657
        %661 = vset.pattern.permute.xlu0 0
        %662 = vperm.xlu0 %661, %v345
        %v663 = vpop.permute.xlu0 %662
        %666 = vset.pattern.permute.xlu0 0
        %667 = vperm.xlu0 %666, %v346
        %v668 = vpop.permute.xlu0 %667
        %671 = vset.pattern.permute.xlu0 0
        %672 = vperm.xlu0 %671, %v347
        %v673 = vpop.permute.xlu0 %672
        %676 = vset.pattern.permute.xlu0 0
        %677 = vperm.xlu0 %676, %v348
        %v678 = vpop.permute.xlu0 %677
        %681 = vset.pattern.permute.xlu0 0
        %682 = vperm.xlu0 %681, %v349
        %v683 = vpop.permute.xlu0 %682
        %686 = vset.pattern.permute.xlu0 0
        %687 = vperm.xlu0 %686, %v350
        %v688 = vpop.permute.xlu0 %687
        %691 = vset.pattern.permute.xlu0 0
        %692 = vperm.xlu0 %691, %v351
        %v693 = vpop.permute.xlu0 %692
        %696 = vset.pattern.permute.xlu0 0
        %697 = vperm.xlu0 %696, %v352
        %v698 = vpop.permute.xlu0 %697
        %701 = vset.pattern.permute.xlu0 0
        %702 = vperm.xlu0 %701, %v353
        %v703 = vpop.permute.xlu0 %702
        %706 = vset.pattern.permute.xlu0 0
        %707 = vperm.xlu0 %706, %v354
        %v708 = vpop.permute.xlu0 %707
        %711 = vset.pattern.permute.xlu0 0
        %712 = vperm.xlu0 %711, %v355
        %v713 = vpop.permute.xlu0 %712
        %716 = vset.pattern.permute.xlu0 0
        %717 = vperm.xlu0 %716, %v356
        %v718 = vpop.permute.xlu0 %717
        %721 = vset.pattern.permute.xlu0 0
        %722 = vperm.xlu0 %721, %v357
        %v723 = vpop.permute.xlu0 %722
        %726 = vset.pattern.permute.xlu0 0
        %727 = vperm.xlu0 %726, %v358
        %v728 = vpop.permute.xlu0 %727
        %731 = vset.pattern.permute.xlu0 0
        %732 = vperm.xlu0 %731, %v359
        %v733 = vpop.permute.xlu0 %732
        %736 = vset.pattern.permute.xlu0 0
        %737 = vperm.xlu0 %736, %v360
        %v738 = vpop.permute.xlu0 %737
        %741 = vset.pattern.permute.xlu0 0
        %742 = vperm.xlu0 %741, %v361
        %v743 = vpop.permute.xlu0 %742
        %746 = vset.pattern.permute.xlu0 0
        %747 = vperm.xlu0 %746, %v362
        %v748 = vpop.permute.xlu0 %747
        %751 = vset.pattern.permute.xlu0 0
        %752 = vperm.xlu0 %751, %v363
        %v753 = vpop.permute.xlu0 %752
        %756 = vset.pattern.permute.xlu0 0
        %757 = vperm.xlu0 %756, %v364
        %v758 = vpop.permute.xlu0 %757
        %761 = vset.pattern.permute.xlu0 0
        %762 = vperm.xlu0 %761, %v365
        %v763 = vpop.permute.xlu0 %762
        %766 = vset.pattern.permute.xlu0 0
        %767 = vperm.xlu0 %766, %v366
        %v768 = vpop.permute.xlu0 %767
        %771 = vset.pattern.permute.xlu0 0
        %772 = vperm.xlu0 %771, %v367
        %v773 = vpop.permute.xlu0 %772
        %776 = vset.pattern.permute.xlu0 0
        %777 = vperm.xlu0 %776, %v368
        %v778 = vpop.permute.xlu0 %777
        %781 = vset.pattern.permute.xlu0 0
        %782 = vperm.xlu0 %781, %v369
        %v783 = vpop.permute.xlu0 %782
        %786 = vset.pattern.permute.xlu0 0
        %787 = vperm.xlu0 %786, %v370
        %v788 = vpop.permute.xlu0 %787
        %791 = vset.pattern.permute.xlu0 0
        %792 = vperm.xlu0 %791, %v371
        %v793 = vpop.permute.xlu0 %792
        %796 = vset.pattern.permute.xlu0 0
        %797 = vperm.xlu0 %796, %v372
        %v798 = vpop.permute.xlu0 %797
        %801 = vset.pattern.permute.xlu0 0
        %802 = vperm.xlu0 %801, %v373
        %v803 = vpop.permute.xlu0 %802
        %806 = vset.pattern.permute.xlu0 0
        %807 = vperm.xlu0 %806, %v374
        %v808 = vpop.permute.xlu0 %807
        %811 = vset.pattern.permute.xlu0 0
        %812 = vperm.xlu0 %811, %v375
        %v813 = vpop.permute.xlu0 %812
        %816 = vset.pattern.permute.xlu0 0
        %817 = vperm.xlu0 %816, %v376
        %v818 = vpop.permute.xlu0 %817
        %821 = vset.pattern.permute.xlu0 0
        %822 = vperm.xlu0 %821, %v377
        %v823 = vpop.permute.xlu0 %822
        %826 = vset.pattern.permute.xlu0 0
        %827 = vperm.xlu0 %826, %v378
        %v828 = vpop.permute.xlu0 %827
        %831 = vset.pattern.permute.xlu0 0
        %832 = vperm.xlu0 %831, %v379
        %v833 = vpop.permute.xlu0 %832
        %836 = vset.pattern.permute.xlu0 0
        %837 = vperm.xlu0 %836, %v380
        %v838 = vpop.permute.xlu0 %837
        %841 = vset.pattern.permute.xlu0 0
        %842 = vperm.xlu0 %841, %v381
        %v843 = vpop.permute.xlu0 %842
        %846 = vset.pattern.permute.xlu0 0
        %847 = vperm.xlu0 %846, %v382
        %v848 = vpop.permute.xlu0 %847
        %851 = vset.pattern.permute.xlu0 0
        %852 = vperm.xlu0 %851, %v383
        %v853 = vpop.permute.xlu0 %852
        %856 = vset.pattern.permute.xlu0 0
        %857 = vperm.xlu0 %856, %v384
        %v858 = vpop.permute.xlu0 %857
        %861 = vset.pattern.permute.xlu0 0
        %862 = vperm.xlu0 %861, %v385
        %v863 = vpop.permute.xlu0 %862
        %866 = vset.pattern.permute.xlu0 0
        %867 = vperm.xlu0 %866, %v386
        %v868 = vpop.permute.xlu0 %867
        %871 = vset.pattern.permute.xlu0 0
        %872 = vperm.xlu0 %871, %v387
        %v873 = vpop.permute.xlu0 %872
        %876 = vset.pattern.permute.xlu0 0
        %877 = vperm.xlu0 %876, %v388
        %v878 = vpop.permute.xlu0 %877
        %881 = vset.pattern.permute.xlu0 0
        %882 = vperm.xlu0 %881, %v389
        %v883 = vpop.permute.xlu0 %882
        %886 = vset.pattern.permute.xlu0 0
        %887 = vperm.xlu0 %886, %v390
        %v888 = vpop.permute.xlu0 %887
        %891 = vset.pattern.permute.xlu0 0
        %892 = vperm.xlu0 %891, %v391
        %v893 = vpop.permute.xlu0 %892
        %896 = vset.pattern.permute.xlu0 0
        %897 = vperm.xlu0 %896, %v392
        %v898 = vpop.permute.xlu0 %897
        %901 = vset.pattern.permute.xlu0 0
        %902 = vperm.xlu0 %901, %v393
        %v903 = vpop.permute.xlu0 %902
        %906 = vset.pattern.permute.xlu0 0
        %907 = vperm.xlu0 %906, %v394
        %v908 = vpop.permute.xlu0 %907
        %v910 = vmul.f32 %v589, %v593
        %v911 = vmul.f32 %v588, %v598
        %v912 = vmul.f32 %v587, %v603
        %v913 = vmul.f32 %v586, %v608
        %v914 = vmul.f32 %v585, %v613
        %v915 = vmul.f32 %v584, %v618
        %v916 = vmul.f32 %v583, %v623
        %v917 = vmul.f32 %v582, %v628
        %v918 = vmul.f32 %v581, %v633
        %v919 = vmul.f32 %v580, %v638
        %v920 = vmul.f32 %v579, %v643
        %v921 = vmul.f32 %v578, %v648
        %v922 = vmul.f32 %v577, %v653
        %v923 = vmul.f32 %v576, %v658
        %v924 = vmul.f32 %v575, %v663
        %v925 = vmul.f32 %v574, %v668
        %v926 = vmul.f32 %v573, %v673
        %v927 = vmul.f32 %v572, %v678
        %v928 = vmul.f32 %v571, %v683
        %v929 = vmul.f32 %v570, %v688
        %v930 = vmul.f32 %v569, %v693
        %v931 = vmul.f32 %v568, %v698
        %v932 = vmul.f32 %v567, %v703
        %v933 = vmul.f32 %v566, %v708
        %v934 = vmul.f32 %v565, %v713
        %v935 = vmul.f32 %v564, %v718
        %v936 = vmul.f32 %v563, %v723
        %v937 = vmul.f32 %v562, %v728
        %v938 = vmul.f32 %v561, %v733
        %v939 = vmul.f32 %v560, %v738
        %v940 = vmul.f32 %v559, %v743
        %v941 = vmul.f32 %v558, %v748
        %v942 = vmul.f32 %v557, %v753
        %v943 = vmul.f32 %v556, %v758
        %v944 = vmul.f32 %v555, %v763
        %v945 = vmul.f32 %v554, %v768
        %v946 = vmul.f32 %v553, %v773
        %v947 = vmul.f32 %v552, %v778
        %v948 = vmul.f32 %v551, %v783
        %v949 = vmul.f32 %v550, %v788
        %v950 = vmul.f32 %v549, %v793
        %v951 = vmul.f32 %v548, %v798
        %v952 = vmul.f32 %v547, %v803
        %v953 = vmul.f32 %v546, %v808
        %v954 = vmul.f32 %v545, %v813
        %v955 = vmul.f32 %v544, %v818
        %v956 = vmul.f32 %v543, %v823
        %v957 = vmul.f32 %v542, %v828
        %v958 = vmul.f32 %v541, %v833
        %v959 = vmul.f32 %v540, %v838
        %v960 = vmul.f32 %v539, %v843
        %v961 = vmul.f32 %v538, %v848
        %v962 = vmul.f32 %v537, %v853
        %v963 = vmul.f32 %v536, %v858
        %v964 = vmul.f32 %v535, %v863
        %v965 = vmul.f32 %v534, %v868
        %v966 = vmul.f32 %v533, %v873
        %v967 = vmul.f32 %v532, %v878
        %v968 = vmul.f32 %v531, %v883
        %v969 = vmul.f32 %v530, %v888
        %v970 = vmul.f32 %v529, %v893
        %v971 = vmul.f32 %v528, %v898
        %v972 = vmul.f32 %v527, %v903
        %v973 = vmul.f32 %v526, %v908
        %v974 = vrot.slane %v395, 1
        %v975 = vrot.slane %v396, 1
        %v976 = vrot.slane %v397, 1
        %v977 = vrot.slane %v398, 1
        %v978 = vrot.slane %v399, 1
        %v979 = vrot.slane %v400, 1
        %v980 = vrot.slane %v401, 1
        %v981 = vrot.slane %v402, 1
        %v982 = vrot.slane %v403, 1
        %v983 = vrot.slane %v404, 1
        %v984 = vrot.slane %v405, 1
        %v985 = vrot.slane %v406, 1
        %v986 = vrot.slane %v407, 1
        %v987 = vrot.slane %v408, 1
        %v988 = vrot.slane %v409, 1
        %v989 = vrot.slane %v410, 1
        %v990 = vrot.slane %v411, 1
        %v991 = vrot.slane %v412, 1
        %v992 = vrot.slane %v413, 1
        %v993 = vrot.slane %v414, 1
        %v994 = vrot.slane %v415, 1
        %v995 = vrot.slane %v416, 1
        %v996 = vrot.slane %v417, 1
        %v997 = vrot.slane %v418, 1
        %v998 = vrot.slane %v419, 1
        %v999 = vrot.slane %v420, 1
        %v1000 = vrot.slane %v421, 1
        %v1001 = vrot.slane %v422, 1
        %v1002 = vrot.slane %v423, 1
        %v1003 = vrot.slane %v424, 1
        %v1004 = vrot.slane %v425, 1
        %v1005 = vrot.slane %v426, 1
        %v1006 = vrot.slane %v427, 1
        %v1007 = vrot.slane %v428, 1
        %v1008 = vrot.slane %v429, 1
        %v1009 = vrot.slane %v430, 1
        %v1010 = vrot.slane %v431, 1
        %v1011 = vrot.slane %v432, 1
        %v1012 = vrot.slane %v433, 1
        %v1013 = vrot.slane %v434, 1
        %v1014 = vrot.slane %v435, 1
        %v1015 = vrot.slane %v436, 1
        %v1016 = vrot.slane %v437, 1
        %v1017 = vrot.slane %v438, 1
        %v1018 = vrot.slane %v439, 1
        %v1019 = vrot.slane %v440, 1
        %v1020 = vrot.slane %v441, 1
        %v1021 = vrot.slane %v442, 1
        %v1022 = vrot.slane %v443, 1
        %v1023 = vrot.slane %v444, 1
        %v1024 = vrot.slane %v445, 1
        %v1025 = vrot.slane %v446, 1
        %v1026 = vrot.slane %v447, 1
        %v1027 = vrot.slane %v448, 1
        %v1028 = vrot.slane %v449, 1
        %v1029 = vrot.slane %v450, 1
        %v1030 = vrot.slane %v451, 1
        %v1031 = vrot.slane %v452, 1
        %v1032 = vrot.slane %v453, 1
        %v1033 = vrot.slane %v454, 1
        %v1034 = vrot.slane %v455, 1
        %v1035 = vrot.slane %v456, 1
        %v1036 = vrot.slane %v457, 1
        %v1037 = vrot.slane %v458, 1
        %vm1038 = vcmp.lt.s32.totalorder %v524, 7
        %v1039 = vsel %vm1038, %v1036, %v1037
        %v1040 = vsel %vm1038, %v1035, %v1036
        %v1041 = vsel %vm1038, %v1034, %v1035
        %v1042 = vsel %vm1038, %v1033, %v1034
        %v1043 = vsel %vm1038, %v1032, %v1033
        %v1044 = vsel %vm1038, %v1031, %v1032
        %v1045 = vsel %vm1038, %v1030, %v1031
        %v1046 = vsel %vm1038, %v1029, %v1030
        %v1047 = vsel %vm1038, %v1028, %v1029
        %v1048 = vsel %vm1038, %v1027, %v1028
        %v1049 = vsel %vm1038, %v1026, %v1027
        %v1050 = vsel %vm1038, %v1025, %v1026
        %v1051 = vsel %vm1038, %v1024, %v1025
        %v1052 = vsel %vm1038, %v1023, %v1024
        %v1053 = vsel %vm1038, %v1022, %v1023
        %v1054 = vsel %vm1038, %v1021, %v1022
        %v1055 = vsel %vm1038, %v1020, %v1021
        %v1056 = vsel %vm1038, %v1019, %v1020
        %v1057 = vsel %vm1038, %v1018, %v1019
        %v1058 = vsel %vm1038, %v1017, %v1018
        %v1059 = vsel %vm1038, %v1016, %v1017
        %v1060 = vsel %vm1038, %v1015, %v1016
        %v1061 = vsel %vm1038, %v1014, %v1015
        %v1062 = vsel %vm1038, %v1013, %v1014
        %v1063 = vsel %vm1038, %v1012, %v1013
        %v1064 = vsel %vm1038, %v1011, %v1012
        %v1065 = vsel %vm1038, %v1010, %v1011
        %v1066 = vsel %vm1038, %v1009, %v1010
        %v1067 = vsel %vm1038, %v1008, %v1009
        %v1068 = vsel %vm1038, %v1007, %v1008
        %v1069 = vsel %vm1038, %v1006, %v1007
        %v1070 = vsel %vm1038, %v1005, %v1006
        %v1071 = vsel %vm1038, %v1004, %v1005
        %v1072 = vsel %vm1038, %v1003, %v1004
        %v1073 = vsel %vm1038, %v1002, %v1003
        %v1074 = vsel %vm1038, %v1001, %v1002
        %v1075 = vsel %vm1038, %v1000, %v1001
        %v1076 = vsel %vm1038, %v999, %v1000
        %v1077 = vsel %vm1038, %v998, %v999
        %v1078 = vsel %vm1038, %v997, %v998
        %v1079 = vsel %vm1038, %v996, %v997
        %v1080 = vsel %vm1038, %v995, %v996
        %v1081 = vsel %vm1038, %v994, %v995
        %v1082 = vsel %vm1038, %v993, %v994
        %v1083 = vsel %vm1038, %v992, %v993
        %v1084 = vsel %vm1038, %v991, %v992
        %v1085 = vsel %vm1038, %v990, %v991
        %v1086 = vsel %vm1038, %v989, %v990
        %v1087 = vsel %vm1038, %v988, %v989
        %v1088 = vsel %vm1038, %v987, %v988
        %v1089 = vsel %vm1038, %v986, %v987
        %v1090 = vsel %vm1038, %v985, %v986
        %v1091 = vsel %vm1038, %v984, %v985
        %v1092 = vsel %vm1038, %v983, %v984
        %v1093 = vsel %vm1038, %v982, %v983
        %v1094 = vsel %vm1038, %v981, %v982
        %v1095 = vsel %vm1038, %v980, %v981
        %v1096 = vsel %vm1038, %v979, %v980
        %v1097 = vsel %vm1038, %v978, %v979
        %v1098 = vsel %vm1038, %v977, %v978
        %v1099 = vsel %vm1038, %v976, %v977
        %v1100 = vsel %vm1038, %v975, %v976
        %v1101 = vsel %vm1038, %v974, %v975
        %v1102 = vsel %vm1038, %v1037, %v974
        %1103 = vset.pattern.permute.xlu0 1
        %1104 = vperm.xlu0 %1103, %v331
        %v1105 = vpop.permute.xlu0 %1104
        %1107 = vset.pattern.permute.xlu0 1
        %1108 = vperm.xlu0 %1107, %v332
        %v1109 = vpop.permute.xlu0 %1108
        %1111 = vset.pattern.permute.xlu0 1
        %1112 = vperm.xlu0 %1111, %v333
        %v1113 = vpop.permute.xlu0 %1112
        %1115 = vset.pattern.permute.xlu0 1
        %1116 = vperm.xlu0 %1115, %v334
        %v1117 = vpop.permute.xlu0 %1116
        %1119 = vset.pattern.permute.xlu0 1
        %1120 = vperm.xlu0 %1119, %v335
        %v1121 = vpop.permute.xlu0 %1120
        %1123 = vset.pattern.permute.xlu0 1
        %1124 = vperm.xlu0 %1123, %v336
        %v1125 = vpop.permute.xlu0 %1124
        %1127 = vset.pattern.permute.xlu0 1
        %1128 = vperm.xlu0 %1127, %v337
        %v1129 = vpop.permute.xlu0 %1128
        %1131 = vset.pattern.permute.xlu0 1
        %1132 = vperm.xlu0 %1131, %v338
        %v1133 = vpop.permute.xlu0 %1132
        %1135 = vset.pattern.permute.xlu0 1
        %1136 = vperm.xlu0 %1135, %v339
        %v1137 = vpop.permute.xlu0 %1136
        %1139 = vset.pattern.permute.xlu0 1
        %1140 = vperm.xlu0 %1139, %v340
        %v1141 = vpop.permute.xlu0 %1140
        %1143 = vset.pattern.permute.xlu0 1
        %1144 = vperm.xlu0 %1143, %v341
        %v1145 = vpop.permute.xlu0 %1144
        %1147 = vset.pattern.permute.xlu0 1
        %1148 = vperm.xlu0 %1147, %v342
        %v1149 = vpop.permute.xlu0 %1148
        %1151 = vset.pattern.permute.xlu0 1
        %1152 = vperm.xlu0 %1151, %v343
        %v1153 = vpop.permute.xlu0 %1152
        %1155 = vset.pattern.permute.xlu0 1
        %1156 = vperm.xlu0 %1155, %v344
        %v1157 = vpop.permute.xlu0 %1156
        %1159 = vset.pattern.permute.xlu0 1
        %1160 = vperm.xlu0 %1159, %v345
        %v1161 = vpop.permute.xlu0 %1160
        %1163 = vset.pattern.permute.xlu0 1
        %1164 = vperm.xlu0 %1163, %v346
        %v1165 = vpop.permute.xlu0 %1164
        %1167 = vset.pattern.permute.xlu0 1
        %1168 = vperm.xlu0 %1167, %v347
        %v1169 = vpop.permute.xlu0 %1168
        %1171 = vset.pattern.permute.xlu0 1
        %1172 = vperm.xlu0 %1171, %v348
        %v1173 = vpop.permute.xlu0 %1172
        %1175 = vset.pattern.permute.xlu0 1
        %1176 = vperm.xlu0 %1175, %v349
        %v1177 = vpop.permute.xlu0 %1176
        %1179 = vset.pattern.permute.xlu0 1
        %1180 = vperm.xlu0 %1179, %v350
        %v1181 = vpop.permute.xlu0 %1180
        %1183 = vset.pattern.permute.xlu0 1
        %1184 = vperm.xlu0 %1183, %v351
        %v1185 = vpop.permute.xlu0 %1184
        %1187 = vset.pattern.permute.xlu0 1
        %1188 = vperm.xlu0 %1187, %v352
        %v1189 = vpop.permute.xlu0 %1188
        %1191 = vset.pattern.permute.xlu0 1
        %1192 = vperm.xlu0 %1191, %v353
        %v1193 = vpop.permute.xlu0 %1192
        %1195 = vset.pattern.permute.xlu0 1
        %1196 = vperm.xlu0 %1195, %v354
        %v1197 = vpop.permute.xlu0 %1196
        %1199 = vset.pattern.permute.xlu0 1
        %1200 = vperm.xlu0 %1199, %v355
        %v1201 = vpop.permute.xlu0 %1200
        %1203 = vset.pattern.permute.xlu0 1
        %1204 = vperm.xlu0 %1203, %v356
        %v1205 = vpop.permute.xlu0 %1204
        %1207 = vset.pattern.permute.xlu0 1
        %1208 = vperm.xlu0 %1207, %v357
        %v1209 = vpop.permute.xlu0 %1208
        %1211 = vset.pattern.permute.xlu0 1
        %1212 = vperm.xlu0 %1211, %v358
        %v1213 = vpop.permute.xlu0 %1212
        %1215 = vset.pattern.permute.xlu0 1
        %1216 = vperm.xlu0 %1215, %v359
        %v1217 = vpop.permute.xlu0 %1216
        %1219 = vset.pattern.permute.xlu0 1
        %1220 = vperm.xlu0 %1219, %v360
        %v1221 = vpop.permute.xlu0 %1220
        %1223 = vset.pattern.permute.xlu0 1
        %1224 = vperm.xlu0 %1223, %v361
        %v1225 = vpop.permute.xlu0 %1224
        %1227 = vset.pattern.permute.xlu0 1
        %1228 = vperm.xlu0 %1227, %v362
        %v1229 = vpop.permute.xlu0 %1228
        %1231 = vset.pattern.permute.xlu0 1
        %1232 = vperm.xlu0 %1231, %v363
        %v1233 = vpop.permute.xlu0 %1232
        %1235 = vset.pattern.permute.xlu0 1
        %1236 = vperm.xlu0 %1235, %v364
        %v1237 = vpop.permute.xlu0 %1236
        %1239 = vset.pattern.permute.xlu0 1
        %1240 = vperm.xlu0 %1239, %v365
        %v1241 = vpop.permute.xlu0 %1240
        %1243 = vset.pattern.permute.xlu0 1
        %1244 = vperm.xlu0 %1243, %v366
        %v1245 = vpop.permute.xlu0 %1244
        %1247 = vset.pattern.permute.xlu0 1
        %1248 = vperm.xlu0 %1247, %v367
        %v1249 = vpop.permute.xlu0 %1248
        %1251 = vset.pattern.permute.xlu0 1
        %1252 = vperm.xlu0 %1251, %v368
        %v1253 = vpop.permute.xlu0 %1252
        %1255 = vset.pattern.permute.xlu0 1
        %1256 = vperm.xlu0 %1255, %v369
        %v1257 = vpop.permute.xlu0 %1256
        %1259 = vset.pattern.permute.xlu0 1
        %1260 = vperm.xlu0 %1259, %v370
        %v1261 = vpop.permute.xlu0 %1260
        %1263 = vset.pattern.permute.xlu0 1
        %1264 = vperm.xlu0 %1263, %v371
        %v1265 = vpop.permute.xlu0 %1264
        %1267 = vset.pattern.permute.xlu0 1
        %1268 = vperm.xlu0 %1267, %v372
        %v1269 = vpop.permute.xlu0 %1268
        %1271 = vset.pattern.permute.xlu0 1
        %1272 = vperm.xlu0 %1271, %v373
        %v1273 = vpop.permute.xlu0 %1272
        %1275 = vset.pattern.permute.xlu0 1
        %1276 = vperm.xlu0 %1275, %v374
        %v1277 = vpop.permute.xlu0 %1276
        %1279 = vset.pattern.permute.xlu0 1
        %1280 = vperm.xlu0 %1279, %v375
        %v1281 = vpop.permute.xlu0 %1280
        %1283 = vset.pattern.permute.xlu0 1
        %1284 = vperm.xlu0 %1283, %v376
        %v1285 = vpop.permute.xlu0 %1284
        %1287 = vset.pattern.permute.xlu0 1
        %1288 = vperm.xlu0 %1287, %v377
        %v1289 = vpop.permute.xlu0 %1288
        %1291 = vset.pattern.permute.xlu0 1
        %1292 = vperm.xlu0 %1291, %v378
        %v1293 = vpop.permute.xlu0 %1292
        %1295 = vset.pattern.permute.xlu0 1
        %1296 = vperm.xlu0 %1295, %v379
        %v1297 = vpop.permute.xlu0 %1296
        %1299 = vset.pattern.permute.xlu0 1
        %1300 = vperm.xlu0 %1299, %v380
        %v1301 = vpop.permute.xlu0 %1300
        %1303 = vset.pattern.permute.xlu0 1
        %1304 = vperm.xlu0 %1303, %v381
        %v1305 = vpop.permute.xlu0 %1304
        %1307 = vset.pattern.permute.xlu0 1
        %1308 = vperm.xlu0 %1307, %v382
        %v1309 = vpop.permute.xlu0 %1308
        %1311 = vset.pattern.permute.xlu0 1
        %1312 = vperm.xlu0 %1311, %v383
        %v1313 = vpop.permute.xlu0 %1312
        %1315 = vset.pattern.permute.xlu0 1
        %1316 = vperm.xlu0 %1315, %v384
        %v1317 = vpop.permute.xlu0 %1316
        %1319 = vset.pattern.permute.xlu0 1
        %1320 = vperm.xlu0 %1319, %v385
        %v1321 = vpop.permute.xlu0 %1320
        %1323 = vset.pattern.permute.xlu0 1
        %1324 = vperm.xlu0 %1323, %v386
        %v1325 = vpop.permute.xlu0 %1324
        %1327 = vset.pattern.permute.xlu0 1
        %1328 = vperm.xlu0 %1327, %v387
        %v1329 = vpop.permute.xlu0 %1328
        %1331 = vset.pattern.permute.xlu0 1
        %1332 = vperm.xlu0 %1331, %v388
        %v1333 = vpop.permute.xlu0 %1332
        %1335 = vset.pattern.permute.xlu0 1
        %1336 = vperm.xlu0 %1335, %v389
        %v1337 = vpop.permute.xlu0 %1336
        %1339 = vset.pattern.permute.xlu0 1
        %1340 = vperm.xlu0 %1339, %v390
        %v1341 = vpop.permute.xlu0 %1340
        %1343 = vset.pattern.permute.xlu0 1
        %1344 = vperm.xlu0 %1343, %v391
        %v1345 = vpop.permute.xlu0 %1344
        %1347 = vset.pattern.permute.xlu0 1
        %1348 = vperm.xlu0 %1347, %v392
        %v1349 = vpop.permute.xlu0 %1348
        %1351 = vset.pattern.permute.xlu0 1
        %1352 = vperm.xlu0 %1351, %v393
        %v1353 = vpop.permute.xlu0 %1352
        %1355 = vset.pattern.permute.xlu0 1
        %1356 = vperm.xlu0 %1355, %v394
        %v1357 = vpop.permute.xlu0 %1356
        %v1359 = vmul.f32 %v1101, %v1105
        %v1360 = vmul.f32 %v1100, %v1109
        %v1361 = vmul.f32 %v1099, %v1113
        %v1362 = vmul.f32 %v1098, %v1117
        %v1363 = vmul.f32 %v1097, %v1121
        %v1364 = vmul.f32 %v1096, %v1125
        %v1365 = vmul.f32 %v1095, %v1129
        %v1366 = vmul.f32 %v1094, %v1133
        %v1367 = vmul.f32 %v1093, %v1137
        %v1368 = vmul.f32 %v1092, %v1141
        %v1369 = vmul.f32 %v1091, %v1145
        %v1370 = vmul.f32 %v1090, %v1149
        %v1371 = vmul.f32 %v1089, %v1153
        %v1372 = vmul.f32 %v1088, %v1157
        %v1373 = vmul.f32 %v1087, %v1161
        %v1374 = vmul.f32 %v1086, %v1165
        %v1375 = vmul.f32 %v1085, %v1169
        %v1376 = vmul.f32 %v1084, %v1173
        %v1377 = vmul.f32 %v1083, %v1177
        %v1378 = vmul.f32 %v1082, %v1181
        %v1379 = vmul.f32 %v1081, %v1185
        %v1380 = vmul.f32 %v1080, %v1189
        %v1381 = vmul.f32 %v1079, %v1193
        %v1382 = vmul.f32 %v1078, %v1197
        %v1383 = vmul.f32 %v1077, %v1201
        %v1384 = vmul.f32 %v1076, %v1205
        %v1385 = vmul.f32 %v1075, %v1209
        %v1386 = vmul.f32 %v1074, %v1213
        %v1387 = vmul.f32 %v1073, %v1217
        %v1388 = vmul.f32 %v1072, %v1221
        %v1389 = vmul.f32 %v1071, %v1225
        %v1390 = vmul.f32 %v1070, %v1229
        %v1391 = vmul.f32 %v1069, %v1233
        %v1392 = vmul.f32 %v1068, %v1237
        %v1393 = vmul.f32 %v1067, %v1241
        %v1394 = vmul.f32 %v1066, %v1245
        %v1395 = vmul.f32 %v1065, %v1249
        %v1396 = vmul.f32 %v1064, %v1253
        %v1397 = vmul.f32 %v1063, %v1257
        %v1398 = vmul.f32 %v1062, %v1261
        %v1399 = vmul.f32 %v1061, %v1265
        %v1400 = vmul.f32 %v1060, %v1269
        %v1401 = vmul.f32 %v1059, %v1273
        %v1402 = vmul.f32 %v1058, %v1277
        %v1403 = vmul.f32 %v1057, %v1281
        %v1404 = vmul.f32 %v1056, %v1285
        %v1405 = vmul.f32 %v1055, %v1289
        %v1406 = vmul.f32 %v1054, %v1293
        %v1407 = vmul.f32 %v1053, %v1297
        %v1408 = vmul.f32 %v1052, %v1301
        %v1409 = vmul.f32 %v1051, %v1305
        %v1410 = vmul.f32 %v1050, %v1309
        %v1411 = vmul.f32 %v1049, %v1313
        %v1412 = vmul.f32 %v1048, %v1317
        %v1413 = vmul.f32 %v1047, %v1321
        %v1414 = vmul.f32 %v1046, %v1325
        %v1415 = vmul.f32 %v1045, %v1329
        %v1416 = vmul.f32 %v1044, %v1333
        %v1417 = vmul.f32 %v1043, %v1337
        %v1418 = vmul.f32 %v1042, %v1341
        %v1419 = vmul.f32 %v1041, %v1345
        %v1420 = vmul.f32 %v1040, %v1349
        %v1421 = vmul.f32 %v1039, %v1353
        %v1422 = vmul.f32 %v1102, %v1357
        %v1423 = vld [vmem:[%s2] sm:$0x1f]
        %s1424 = scalar_lea.vmem %s2, 8
        %v1425 = vld [vmem:[%s1424] sm:$0x1f]
        %vm1426 = vcmask 39936
        %v1428 = vsel %vm1426, %v395, 0
        %v1431 = vsel %vm1426, %v396, 0
        %v1434 = vsel %vm1426, %v397, 0
        %v1437 = vsel %vm1426, %v398, 0
        %v1440 = vsel %vm1426, %v399, 0
        %v1443 = vsel %vm1426, %v400, 0
        %v1446 = vsel %vm1426, %v401, 0
        %v1449 = vsel %vm1426, %v402, 0
        %v1452 = vsel %vm1426, %v403, 0
        %v1455 = vsel %vm1426, %v404, 0
        %v1458 = vsel %vm1426, %v405, 0
        %v1461 = vsel %vm1426, %v406, 0
        %v1464 = vsel %vm1426, %v407, 0
        %v1467 = vsel %vm1426, %v408, 0
        %v1470 = vsel %vm1426, %v409, 0
        %v1473 = vsel %vm1426, %v410, 0
        %v1476 = vsel %vm1426, %v411, 0
        %v1479 = vsel %vm1426, %v412, 0
        %v1482 = vsel %vm1426, %v413, 0
        %v1485 = vsel %vm1426, %v414, 0
        %v1488 = vsel %vm1426, %v415, 0
        %v1491 = vsel %vm1426, %v416, 0
        %v1494 = vsel %vm1426, %v417, 0
        %v1497 = vsel %vm1426, %v418, 0
        %v1500 = vsel %vm1426, %v419, 0
        %v1503 = vsel %vm1426, %v420, 0
        %v1506 = vsel %vm1426, %v421, 0
        %v1509 = vsel %vm1426, %v422, 0
        %v1512 = vsel %vm1426, %v423, 0
        %v1515 = vsel %vm1426, %v424, 0
        %v1518 = vsel %vm1426, %v425, 0
        %v1521 = vsel %vm1426, %v426, 0
        %v1524 = vsel %vm1426, %v427, 0
        %v1527 = vsel %vm1426, %v428, 0
        %v1530 = vsel %vm1426, %v429, 0
        %v1533 = vsel %vm1426, %v430, 0
        %v1536 = vsel %vm1426, %v431, 0
        %v1539 = vsel %vm1426, %v432, 0
        %v1542 = vsel %vm1426, %v433, 0
        %v1545 = vsel %vm1426, %v434, 0
        %v1548 = vsel %vm1426, %v435, 0
        %v1551 = vsel %vm1426, %v436, 0
        %v1554 = vsel %vm1426, %v437, 0
        %v1557 = vsel %vm1426, %v438, 0
        %v1560 = vsel %vm1426, %v439, 0
        %v1563 = vsel %vm1426, %v440, 0
        %v1566 = vsel %vm1426, %v441, 0
        %v1569 = vsel %vm1426, %v442, 0
        %v1572 = vsel %vm1426, %v443, 0
        %v1575 = vsel %vm1426, %v444, 0
        %v1578 = vsel %vm1426, %v445, 0
        %v1581 = vsel %vm1426, %v446, 0
        %v1584 = vsel %vm1426, %v447, 0
        %v1587 = vsel %vm1426, %v448, 0
        %v1590 = vsel %vm1426, %v449, 0
        %v1593 = vsel %vm1426, %v450, 0
        %v1596 = vsel %vm1426, %v451, 0
        %v1599 = vsel %vm1426, %v452, 0
        %v1602 = vsel %vm1426, %v453, 0
        %v1605 = vsel %vm1426, %v454, 0
        %v1608 = vsel %vm1426, %v455, 0
        %v1611 = vsel %vm1426, %v456, 0
        %v1614 = vsel %vm1426, %v457, 0
        %v1617 = vsel %vm1426, %v458, 0
        %vm1619 = vcmask 1044480
        %v1621 = vsel %vm1619, %v1425, 0
        %1623 = vmatpush.msra.mxu0 0.0
        %1624 = vmatpush.msra.mxu0 0.0
        %1625 = vmatpush.msra.mxu0 0.0
        %1626 = vmatpush.msra.mxu0 0.0
        %1627 = vmatpush.msra.mxu0 0.0
        %1628 = vmatpush.msra.mxu0 0.0
        %1629 = vmatpush.msra.mxu0 0.0
        %1630 = vmatpush.msra.mxu0 0.0
        %1631 = vmatpush.msra.mxu0 0.0
        %1632 = vmatpush.msra.mxu0 0.0
        %1633 = vmatpush.msra.mxu0 0.0
        %1634 = vmatpush.msra.mxu0 0.0
        %1635 = vmatpush.msra.mxu0 0.0
        %1636 = vmatpush.msra.mxu0 0.0
        %1637 = vmatpush.msra.mxu0 0.0
        %1638 = vmatpush.msra.mxu0 %v1621
        %1639 = vmatmul.f32.gmra.mxu0 %v1428
        %v1640 = vpop.f32.mrf.mxu0
        %v1641 = vadd.f32 0.0, %v1640
        %1642 = vmatmul.f32.gmra.mxu0 %v1431
        %v1643 = vpop.f32.mrf.mxu0
        %v1644 = vadd.f32 0.0, %v1643
        %1645 = vmatmul.f32.gmra.mxu0 %v1434
        %v1646 = vpop.f32.mrf.mxu0
        %v1647 = vadd.f32 0.0, %v1646
        %1648 = vmatmul.f32.gmra.mxu0 %v1437
        %v1649 = vpop.f32.mrf.mxu0
        %v1650 = vadd.f32 0.0, %v1649
        %1651 = vmatmul.f32.gmra.mxu0 %v1440
        %v1652 = vpop.f32.mrf.mxu0
        %v1653 = vadd.f32 0.0, %v1652
        %1654 = vmatmul.f32.gmra.mxu0 %v1443
        %v1655 = vpop.f32.mrf.mxu0
        %v1656 = vadd.f32 0.0, %v1655
        %1657 = vmatmul.f32.gmra.mxu0 %v1446
        %v1658 = vpop.f32.mrf.mxu0
        %v1659 = vadd.f32 0.0, %v1658
        %1660 = vmatmul.f32.gmra.mxu0 %v1449
        %v1661 = vpop.f32.mrf.mxu0
        %v1662 = vadd.f32 0.0, %v1661
        %1663 = vmatmul.f32.gmra.mxu0 %v1452
        %v1664 = vpop.f32.mrf.mxu0
        %v1665 = vadd.f32 0.0, %v1664
        %1666 = vmatmul.f32.gmra.mxu0 %v1455
        %v1667 = vpop.f32.mrf.mxu0
        %v1668 = vadd.f32 0.0, %v1667
        %1669 = vmatmul.f32.gmra.mxu0 %v1458
        %v1670 = vpop.f32.mrf.mxu0
        %v1671 = vadd.f32 0.0, %v1670
        %1672 = vmatmul.f32.gmra.mxu0 %v1461
        %v1673 = vpop.f32.mrf.mxu0
        %v1674 = vadd.f32 0.0, %v1673
        %1675 = vmatmul.f32.gmra.mxu0 %v1464
        %v1676 = vpop.f32.mrf.mxu0
        %v1677 = vadd.f32 0.0, %v1676
        %1678 = vmatmul.f32.gmra.mxu0 %v1467
        %v1679 = vpop.f32.mrf.mxu0
        %v1680 = vadd.f32 0.0, %v1679
        %1681 = vmatmul.f32.gmra.mxu0 %v1470
        %v1682 = vpop.f32.mrf.mxu0
        %v1683 = vadd.f32 0.0, %v1682
        %1684 = vmatmul.f32.gmra.mxu0 %v1473
        %v1685 = vpop.f32.mrf.mxu0
        %v1686 = vadd.f32 0.0, %v1685
        %1687 = vmatmul.f32.gmra.mxu0 %v1476
        %v1688 = vpop.f32.mrf.mxu0
        %v1689 = vadd.f32 0.0, %v1688
        %1690 = vmatmul.f32.gmra.mxu0 %v1479
        %v1691 = vpop.f32.mrf.mxu0
        %v1692 = vadd.f32 0.0, %v1691
        %1693 = vmatmul.f32.gmra.mxu0 %v1482
        %v1694 = vpop.f32.mrf.mxu0
        %v1695 = vadd.f32 0.0, %v1694
        %1696 = vmatmul.f32.gmra.mxu0 %v1485
        %v1697 = vpop.f32.mrf.mxu0
        %v1698 = vadd.f32 0.0, %v1697
        %1699 = vmatmul.f32.gmra.mxu0 %v1488
        %v1700 = vpop.f32.mrf.mxu0
        %v1701 = vadd.f32 0.0, %v1700
        %1702 = vmatmul.f32.gmra.mxu0 %v1491
        %v1703 = vpop.f32.mrf.mxu0
        %v1704 = vadd.f32 0.0, %v1703
        %1705 = vmatmul.f32.gmra.mxu0 %v1494
        %v1706 = vpop.f32.mrf.mxu0
        %v1707 = vadd.f32 0.0, %v1706
        %1708 = vmatmul.f32.gmra.mxu0 %v1497
        %v1709 = vpop.f32.mrf.mxu0
        %v1710 = vadd.f32 0.0, %v1709
        %1711 = vmatmul.f32.gmra.mxu0 %v1500
        %v1712 = vpop.f32.mrf.mxu0
        %v1713 = vadd.f32 0.0, %v1712
        %1714 = vmatmul.f32.gmra.mxu0 %v1503
        %v1715 = vpop.f32.mrf.mxu0
        %v1716 = vadd.f32 0.0, %v1715
        %1717 = vmatmul.f32.gmra.mxu0 %v1506
        %v1718 = vpop.f32.mrf.mxu0
        %v1719 = vadd.f32 0.0, %v1718
        %1720 = vmatmul.f32.gmra.mxu0 %v1509
        %v1721 = vpop.f32.mrf.mxu0
        %v1722 = vadd.f32 0.0, %v1721
        %1723 = vmatmul.f32.gmra.mxu0 %v1512
        %v1724 = vpop.f32.mrf.mxu0
        %v1725 = vadd.f32 0.0, %v1724
        %1726 = vmatmul.f32.gmra.mxu0 %v1515
        %v1727 = vpop.f32.mrf.mxu0
        %v1728 = vadd.f32 0.0, %v1727
        %1729 = vmatmul.f32.gmra.mxu0 %v1518
        %v1730 = vpop.f32.mrf.mxu0
        %v1731 = vadd.f32 0.0, %v1730
        %1732 = vmatmul.f32.gmra.mxu0 %v1521
        %v1733 = vpop.f32.mrf.mxu0
        %v1734 = vadd.f32 0.0, %v1733
        %1735 = vmatmul.f32.gmra.mxu0 %v1524
        %v1736 = vpop.f32.mrf.mxu0
        %v1737 = vadd.f32 0.0, %v1736
        %1738 = vmatmul.f32.gmra.mxu0 %v1527
        %v1739 = vpop.f32.mrf.mxu0
        %v1740 = vadd.f32 0.0, %v1739
        %1741 = vmatmul.f32.gmra.mxu0 %v1530
        %v1742 = vpop.f32.mrf.mxu0
        %v1743 = vadd.f32 0.0, %v1742
        %1744 = vmatmul.f32.gmra.mxu0 %v1533
        %v1745 = vpop.f32.mrf.mxu0
        %v1746 = vadd.f32 0.0, %v1745
        %1747 = vmatmul.f32.gmra.mxu0 %v1536
        %v1748 = vpop.f32.mrf.mxu0
        %v1749 = vadd.f32 0.0, %v1748
        %1750 = vmatmul.f32.gmra.mxu0 %v1539
        %v1751 = vpop.f32.mrf.mxu0
        %v1752 = vadd.f32 0.0, %v1751
        %1753 = vmatmul.f32.gmra.mxu0 %v1542
        %v1754 = vpop.f32.mrf.mxu0
        %v1755 = vadd.f32 0.0, %v1754
        %1756 = vmatmul.f32.gmra.mxu0 %v1545
        %v1757 = vpop.f32.mrf.mxu0
        %v1758 = vadd.f32 0.0, %v1757
        %1759 = vmatmul.f32.gmra.mxu0 %v1548
        %v1760 = vpop.f32.mrf.mxu0
        %v1761 = vadd.f32 0.0, %v1760
        %1762 = vmatmul.f32.gmra.mxu0 %v1551
        %v1763 = vpop.f32.mrf.mxu0
        %v1764 = vadd.f32 0.0, %v1763
        %1765 = vmatmul.f32.gmra.mxu0 %v1554
        %v1766 = vpop.f32.mrf.mxu0
        %v1767 = vadd.f32 0.0, %v1766
        %1768 = vmatmul.f32.gmra.mxu0 %v1557
        %v1769 = vpop.f32.mrf.mxu0
        %v1770 = vadd.f32 0.0, %v1769
        %1771 = vmatmul.f32.gmra.mxu0 %v1560
        %v1772 = vpop.f32.mrf.mxu0
        %v1773 = vadd.f32 0.0, %v1772
        %1774 = vmatmul.f32.gmra.mxu0 %v1563
        %v1775 = vpop.f32.mrf.mxu0
        %v1776 = vadd.f32 0.0, %v1775
        %1777 = vmatmul.f32.gmra.mxu0 %v1566
        %v1778 = vpop.f32.mrf.mxu0
        %v1779 = vadd.f32 0.0, %v1778
        %1780 = vmatmul.f32.gmra.mxu0 %v1569
        %v1781 = vpop.f32.mrf.mxu0
        %v1782 = vadd.f32 0.0, %v1781
        %1783 = vmatmul.f32.gmra.mxu0 %v1572
        %v1784 = vpop.f32.mrf.mxu0
        %v1785 = vadd.f32 0.0, %v1784
        %1786 = vmatmul.f32.gmra.mxu0 %v1575
        %v1787 = vpop.f32.mrf.mxu0
        %v1788 = vadd.f32 0.0, %v1787
        %1789 = vmatmul.f32.gmra.mxu0 %v1578
        %v1790 = vpop.f32.mrf.mxu0
        %v1791 = vadd.f32 0.0, %v1790
        %1792 = vmatmul.f32.gmra.mxu0 %v1581
        %v1793 = vpop.f32.mrf.mxu0
        %v1794 = vadd.f32 0.0, %v1793
        %1795 = vmatmul.f32.gmra.mxu0 %v1584
        %v1796 = vpop.f32.mrf.mxu0
        %v1797 = vadd.f32 0.0, %v1796
        %1798 = vmatmul.f32.gmra.mxu0 %v1587
        %v1799 = vpop.f32.mrf.mxu0
        %v1800 = vadd.f32 0.0, %v1799
        %1801 = vmatmul.f32.gmra.mxu0 %v1590
        %v1802 = vpop.f32.mrf.mxu0
        %v1803 = vadd.f32 0.0, %v1802
        %1804 = vmatmul.f32.gmra.mxu0 %v1593
        %v1805 = vpop.f32.mrf.mxu0
        %v1806 = vadd.f32 0.0, %v1805
        %1807 = vmatmul.f32.gmra.mxu0 %v1596
        %v1808 = vpop.f32.mrf.mxu0
        %v1809 = vadd.f32 0.0, %v1808
        %1810 = vmatmul.f32.gmra.mxu0 %v1599
        %v1811 = vpop.f32.mrf.mxu0
        %v1812 = vadd.f32 0.0, %v1811
        %1813 = vmatmul.f32.gmra.mxu0 %v1602
        %v1814 = vpop.f32.mrf.mxu0
        %v1815 = vadd.f32 0.0, %v1814
        %1816 = vmatmul.f32.gmra.mxu0 %v1605
        %v1817 = vpop.f32.mrf.mxu0
        %v1818 = vadd.f32 0.0, %v1817
        %1819 = vmatmul.f32.gmra.mxu0 %v1608
        %v1820 = vpop.f32.mrf.mxu0
        %v1821 = vadd.f32 0.0, %v1820
        %1822 = vmatmul.f32.gmra.mxu0 %v1611
        %v1823 = vpop.f32.mrf.mxu0
        %v1824 = vadd.f32 0.0, %v1823
        %1825 = vmatmul.f32.gmra.mxu0 %v1614
        %v1826 = vpop.f32.mrf.mxu0
        %v1827 = vadd.f32 0.0, %v1826
        %1828 = vmatmul.f32.gmra.mxu0 %v1617
        %v1829 = vpop.f32.mrf.mxu0
        %v1830 = vadd.f32 0.0, %v1829
        %1831 = vdwg.mxu0
        %v1833 = vsel %vm1426, %v910, 0
        %v1836 = vsel %vm1426, %v911, 0
        %v1839 = vsel %vm1426, %v912, 0
        %v1842 = vsel %vm1426, %v913, 0
        %v1845 = vsel %vm1426, %v914, 0
        %v1848 = vsel %vm1426, %v915, 0
        %v1851 = vsel %vm1426, %v916, 0
        %v1854 = vsel %vm1426, %v917, 0
        %v1857 = vsel %vm1426, %v918, 0
        %v1860 = vsel %vm1426, %v919, 0
        %v1863 = vsel %vm1426, %v920, 0
        %v1866 = vsel %vm1426, %v921, 0
        %v1869 = vsel %vm1426, %v922, 0
        %v1872 = vsel %vm1426, %v923, 0
        %v1875 = vsel %vm1426, %v924, 0
        %v1878 = vsel %vm1426, %v925, 0
        %v1881 = vsel %vm1426, %v926, 0
        %v1884 = vsel %vm1426, %v927, 0
        %v1887 = vsel %vm1426, %v928, 0
        %v1890 = vsel %vm1426, %v929, 0
        %v1893 = vsel %vm1426, %v930, 0
        %v1896 = vsel %vm1426, %v931, 0
        %v1899 = vsel %vm1426, %v932, 0
        %v1902 = vsel %vm1426, %v933, 0
        %v1905 = vsel %vm1426, %v934, 0
        %v1908 = vsel %vm1426, %v935, 0
        %v1911 = vsel %vm1426, %v936, 0
        %v1914 = vsel %vm1426, %v937, 0
        %v1917 = vsel %vm1426, %v938, 0
        %v1920 = vsel %vm1426, %v939, 0
        %v1923 = vsel %vm1426, %v940, 0
        %v1926 = vsel %vm1426, %v941, 0
        %v1929 = vsel %vm1426, %v942, 0
        %v1932 = vsel %vm1426, %v943, 0
        %v1935 = vsel %vm1426, %v944, 0
        %v1938 = vsel %vm1426, %v945, 0
        %v1941 = vsel %vm1426, %v946, 0
        %v1944 = vsel %vm1426, %v947, 0
        %v1947 = vsel %vm1426, %v948, 0
        %v1950 = vsel %vm1426, %v949, 0
        %v1953 = vsel %vm1426, %v950, 0
        %v1956 = vsel %vm1426, %v951, 0
        %v1959 = vsel %vm1426, %v952, 0
        %v1962 = vsel %vm1426, %v953, 0
        %v1965 = vsel %vm1426, %v954, 0
        %v1968 = vsel %vm1426, %v955, 0
        %v1971 = vsel %vm1426, %v956, 0
        %v1974 = vsel %vm1426, %v957, 0
        %v1977 = vsel %vm1426, %v958, 0
        %v1980 = vsel %vm1426, %v959, 0
        %v1983 = vsel %vm1426, %v960, 0
        %v1986 = vsel %vm1426, %v961, 0
        %v1989 = vsel %vm1426, %v962, 0
        %v1992 = vsel %vm1426, %v963, 0
        %v1995 = vsel %vm1426, %v964, 0
        %v1998 = vsel %vm1426, %v965, 0
        %v2001 = vsel %vm1426, %v966, 0
        %v2004 = vsel %vm1426, %v967, 0
        %v2007 = vsel %vm1426, %v968, 0
        %v2010 = vsel %vm1426, %v969, 0
        %v2013 = vsel %vm1426, %v970, 0
        %v2016 = vsel %vm1426, %v971, 0
        %v2019 = vsel %vm1426, %v972, 0
        %v2022 = vsel %vm1426, %v973, 0
        %v2025 = vsel %vm1619, %v1423, 0
        %2027 = vmatpush.msra.mxu0 0.0
        %2028 = vmatpush.msra.mxu0 0.0
        %2029 = vmatpush.msra.mxu0 0.0
        %2030 = vmatpush.msra.mxu0 0.0
        %2031 = vmatpush.msra.mxu0 0.0
        %2032 = vmatpush.msra.mxu0 0.0
        %2033 = vmatpush.msra.mxu0 0.0
        %2034 = vmatpush.msra.mxu0 0.0
        %2035 = vmatpush.msra.mxu0 0.0
        %2036 = vmatpush.msra.mxu0 0.0
        %2037 = vmatpush.msra.mxu0 0.0
        %2038 = vmatpush.msra.mxu0 0.0
        %2039 = vmatpush.msra.mxu0 0.0
        %2040 = vmatpush.msra.mxu0 0.0
        %2041 = vmatpush.msra.mxu0 0.0
        %2042 = vmatpush.msra.mxu0 %v2025
        %2043 = vmatmul.f32.gmra.mxu0 %v1833
        %v2044 = vpop.f32.mrf.mxu0
        %v2045 = vadd.f32 %v1641, %v2044
        %2046 = vmatmul.f32.gmra.mxu0 %v1836
        %v2047 = vpop.f32.mrf.mxu0
        %v2048 = vadd.f32 %v1644, %v2047
        %2049 = vmatmul.f32.gmra.mxu0 %v1839
        %v2050 = vpop.f32.mrf.mxu0
        %v2051 = vadd.f32 %v1647, %v2050
        %2052 = vmatmul.f32.gmra.mxu0 %v1842
        %v2053 = vpop.f32.mrf.mxu0
        %v2054 = vadd.f32 %v1650, %v2053
        %2055 = vmatmul.f32.gmra.mxu0 %v1845
        %v2056 = vpop.f32.mrf.mxu0
        %v2057 = vadd.f32 %v1653, %v2056
        %2058 = vmatmul.f32.gmra.mxu0 %v1848
        %v2059 = vpop.f32.mrf.mxu0
        %v2060 = vadd.f32 %v1656, %v2059
        %2061 = vmatmul.f32.gmra.mxu0 %v1851
        %v2062 = vpop.f32.mrf.mxu0
        %v2063 = vadd.f32 %v1659, %v2062
        %2064 = vmatmul.f32.gmra.mxu0 %v1854
        %v2065 = vpop.f32.mrf.mxu0
        %v2066 = vadd.f32 %v1662, %v2065
        %2067 = vmatmul.f32.gmra.mxu0 %v1857
        %v2068 = vpop.f32.mrf.mxu0
        %v2069 = vadd.f32 %v1665, %v2068
        %2070 = vmatmul.f32.gmra.mxu0 %v1860
        %v2071 = vpop.f32.mrf.mxu0
        %v2072 = vadd.f32 %v1668, %v2071
        %2073 = vmatmul.f32.gmra.mxu0 %v1863
        %v2074 = vpop.f32.mrf.mxu0
        %v2075 = vadd.f32 %v1671, %v2074
        %2076 = vmatmul.f32.gmra.mxu0 %v1866
        %v2077 = vpop.f32.mrf.mxu0
        %v2078 = vadd.f32 %v1674, %v2077
        %2079 = vmatmul.f32.gmra.mxu0 %v1869
        %v2080 = vpop.f32.mrf.mxu0
        %v2081 = vadd.f32 %v1677, %v2080
        %2082 = vmatmul.f32.gmra.mxu0 %v1872
        %v2083 = vpop.f32.mrf.mxu0
        %v2084 = vadd.f32 %v1680, %v2083
        %2085 = vmatmul.f32.gmra.mxu0 %v1875
        %v2086 = vpop.f32.mrf.mxu0
        %v2087 = vadd.f32 %v1683, %v2086
        %2088 = vmatmul.f32.gmra.mxu0 %v1878
        %v2089 = vpop.f32.mrf.mxu0
        %v2090 = vadd.f32 %v1686, %v2089
        %2091 = vmatmul.f32.gmra.mxu0 %v1881
        %v2092 = vpop.f32.mrf.mxu0
        %v2093 = vadd.f32 %v1689, %v2092
        %2094 = vmatmul.f32.gmra.mxu0 %v1884
        %v2095 = vpop.f32.mrf.mxu0
        %v2096 = vadd.f32 %v1692, %v2095
        %2097 = vmatmul.f32.gmra.mxu0 %v1887
        %v2098 = vpop.f32.mrf.mxu0
        %v2099 = vadd.f32 %v1695, %v2098
        %2100 = vmatmul.f32.gmra.mxu0 %v1890
        %v2101 = vpop.f32.mrf.mxu0
        %v2102 = vadd.f32 %v1698, %v2101
        %2103 = vmatmul.f32.gmra.mxu0 %v1893
        %v2104 = vpop.f32.mrf.mxu0
        %v2105 = vadd.f32 %v1701, %v2104
        %2106 = vmatmul.f32.gmra.mxu0 %v1896
        %v2107 = vpop.f32.mrf.mxu0
        %v2108 = vadd.f32 %v1704, %v2107
        %2109 = vmatmul.f32.gmra.mxu0 %v1899
        %v2110 = vpop.f32.mrf.mxu0
        %v2111 = vadd.f32 %v1707, %v2110
        %2112 = vmatmul.f32.gmra.mxu0 %v1902
        %v2113 = vpop.f32.mrf.mxu0
        %v2114 = vadd.f32 %v1710, %v2113
        %2115 = vmatmul.f32.gmra.mxu0 %v1905
        %v2116 = vpop.f32.mrf.mxu0
        %v2117 = vadd.f32 %v1713, %v2116
        %2118 = vmatmul.f32.gmra.mxu0 %v1908
        %v2119 = vpop.f32.mrf.mxu0
        %v2120 = vadd.f32 %v1716, %v2119
        %2121 = vmatmul.f32.gmra.mxu0 %v1911
        %v2122 = vpop.f32.mrf.mxu0
        %v2123 = vadd.f32 %v1719, %v2122
        %2124 = vmatmul.f32.gmra.mxu0 %v1914
        %v2125 = vpop.f32.mrf.mxu0
        %v2126 = vadd.f32 %v1722, %v2125
        %2127 = vmatmul.f32.gmra.mxu0 %v1917
        %v2128 = vpop.f32.mrf.mxu0
        %v2129 = vadd.f32 %v1725, %v2128
        %2130 = vmatmul.f32.gmra.mxu0 %v1920
        %v2131 = vpop.f32.mrf.mxu0
        %v2132 = vadd.f32 %v1728, %v2131
        %2133 = vmatmul.f32.gmra.mxu0 %v1923
        %v2134 = vpop.f32.mrf.mxu0
        %v2135 = vadd.f32 %v1731, %v2134
        %2136 = vmatmul.f32.gmra.mxu0 %v1926
        %v2137 = vpop.f32.mrf.mxu0
        %v2138 = vadd.f32 %v1734, %v2137
        %2139 = vmatmul.f32.gmra.mxu0 %v1929
        %v2140 = vpop.f32.mrf.mxu0
        %v2141 = vadd.f32 %v1737, %v2140
        %2142 = vmatmul.f32.gmra.mxu0 %v1932
        %v2143 = vpop.f32.mrf.mxu0
        %v2144 = vadd.f32 %v1740, %v2143
        %2145 = vmatmul.f32.gmra.mxu0 %v1935
        %v2146 = vpop.f32.mrf.mxu0
        %v2147 = vadd.f32 %v1743, %v2146
        %2148 = vmatmul.f32.gmra.mxu0 %v1938
        %v2149 = vpop.f32.mrf.mxu0
        %v2150 = vadd.f32 %v1746, %v2149
        %2151 = vmatmul.f32.gmra.mxu0 %v1941
        %v2152 = vpop.f32.mrf.mxu0
        %v2153 = vadd.f32 %v1749, %v2152
        %2154 = vmatmul.f32.gmra.mxu0 %v1944
        %v2155 = vpop.f32.mrf.mxu0
        %v2156 = vadd.f32 %v1752, %v2155
        %2157 = vmatmul.f32.gmra.mxu0 %v1947
        %v2158 = vpop.f32.mrf.mxu0
        %v2159 = vadd.f32 %v1755, %v2158
        %2160 = vmatmul.f32.gmra.mxu0 %v1950
        %v2161 = vpop.f32.mrf.mxu0
        %v2162 = vadd.f32 %v1758, %v2161
        %2163 = vmatmul.f32.gmra.mxu0 %v1953
        %v2164 = vpop.f32.mrf.mxu0
        %v2165 = vadd.f32 %v1761, %v2164
        %2166 = vmatmul.f32.gmra.mxu0 %v1956
        %v2167 = vpop.f32.mrf.mxu0
        %v2168 = vadd.f32 %v1764, %v2167
        %2169 = vmatmul.f32.gmra.mxu0 %v1959
        %v2170 = vpop.f32.mrf.mxu0
        %v2171 = vadd.f32 %v1767, %v2170
        %2172 = vmatmul.f32.gmra.mxu0 %v1962
        %v2173 = vpop.f32.mrf.mxu0
        %v2174 = vadd.f32 %v1770, %v2173
        %2175 = vmatmul.f32.gmra.mxu0 %v1965
        %v2176 = vpop.f32.mrf.mxu0
        %v2177 = vadd.f32 %v1773, %v2176
        %2178 = vmatmul.f32.gmra.mxu0 %v1968
        %v2179 = vpop.f32.mrf.mxu0
        %v2180 = vadd.f32 %v1776, %v2179
        %2181 = vmatmul.f32.gmra.mxu0 %v1971
        %v2182 = vpop.f32.mrf.mxu0
        %v2183 = vadd.f32 %v1779, %v2182
        %2184 = vmatmul.f32.gmra.mxu0 %v1974
        %v2185 = vpop.f32.mrf.mxu0
        %v2186 = vadd.f32 %v1782, %v2185
        %2187 = vmatmul.f32.gmra.mxu0 %v1977
        %v2188 = vpop.f32.mrf.mxu0
        %v2189 = vadd.f32 %v1785, %v2188
        %2190 = vmatmul.f32.gmra.mxu0 %v1980
        %v2191 = vpop.f32.mrf.mxu0
        %v2192 = vadd.f32 %v1788, %v2191
        %2193 = vmatmul.f32.gmra.mxu0 %v1983
        %v2194 = vpop.f32.mrf.mxu0
        %v2195 = vadd.f32 %v1791, %v2194
        %2196 = vmatmul.f32.gmra.mxu0 %v1986
        %v2197 = vpop.f32.mrf.mxu0
        %v2198 = vadd.f32 %v1794, %v2197
        %2199 = vmatmul.f32.gmra.mxu0 %v1989
        %v2200 = vpop.f32.mrf.mxu0
        %v2201 = vadd.f32 %v1797, %v2200
        %2202 = vmatmul.f32.gmra.mxu0 %v1992
        %v2203 = vpop.f32.mrf.mxu0
        %v2204 = vadd.f32 %v1800, %v2203
        %2205 = vmatmul.f32.gmra.mxu0 %v1995
        %v2206 = vpop.f32.mrf.mxu0
        %v2207 = vadd.f32 %v1803, %v2206
        %2208 = vmatmul.f32.gmra.mxu0 %v1998
        %v2209 = vpop.f32.mrf.mxu0
        %v2210 = vadd.f32 %v1806, %v2209
        %2211 = vmatmul.f32.gmra.mxu0 %v2001
        %v2212 = vpop.f32.mrf.mxu0
        %v2213 = vadd.f32 %v1809, %v2212
        %2214 = vmatmul.f32.gmra.mxu0 %v2004
        %v2215 = vpop.f32.mrf.mxu0
        %v2216 = vadd.f32 %v1812, %v2215
        %2217 = vmatmul.f32.gmra.mxu0 %v2007
        %v2218 = vpop.f32.mrf.mxu0
        %v2219 = vadd.f32 %v1815, %v2218
        %2220 = vmatmul.f32.gmra.mxu0 %v2010
        %v2221 = vpop.f32.mrf.mxu0
        %v2222 = vadd.f32 %v1818, %v2221
        %2223 = vmatmul.f32.gmra.mxu0 %v2013
        %v2224 = vpop.f32.mrf.mxu0
        %v2225 = vadd.f32 %v1821, %v2224
        %2226 = vmatmul.f32.gmra.mxu0 %v2016
        %v2227 = vpop.f32.mrf.mxu0
        %v2228 = vadd.f32 %v1824, %v2227
        %2229 = vmatmul.f32.gmra.mxu0 %v2019
        %v2230 = vpop.f32.mrf.mxu0
        %v2231 = vadd.f32 %v1827, %v2230
        %2232 = vmatmul.f32.gmra.mxu0 %v2022
        %v2233 = vpop.f32.mrf.mxu0
        %v2234 = vadd.f32 %v1830, %v2233
        %2235 = vdwg.mxu0
        %s2236 = scalar_lea.vmem %s2, 16
        %v2237 = vld [vmem:[%s2236] sm:$0x1f]
        %v2239 = vsel %vm1426, %v1359, 0
        %v2242 = vsel %vm1426, %v1360, 0
        %v2245 = vsel %vm1426, %v1361, 0
        %v2248 = vsel %vm1426, %v1362, 0
        %v2251 = vsel %vm1426, %v1363, 0
        %v2254 = vsel %vm1426, %v1364, 0
        %v2257 = vsel %vm1426, %v1365, 0
        %v2260 = vsel %vm1426, %v1366, 0
        %v2263 = vsel %vm1426, %v1367, 0
        %v2266 = vsel %vm1426, %v1368, 0
        %v2269 = vsel %vm1426, %v1369, 0
        %v2272 = vsel %vm1426, %v1370, 0
        %v2275 = vsel %vm1426, %v1371, 0
        %v2278 = vsel %vm1426, %v1372, 0
        %v2281 = vsel %vm1426, %v1373, 0
        %v2284 = vsel %vm1426, %v1374, 0
        %v2287 = vsel %vm1426, %v1375, 0
        %v2290 = vsel %vm1426, %v1376, 0
        %v2293 = vsel %vm1426, %v1377, 0
        %v2296 = vsel %vm1426, %v1378, 0
        %v2299 = vsel %vm1426, %v1379, 0
        %v2302 = vsel %vm1426, %v1380, 0
        %v2305 = vsel %vm1426, %v1381, 0
        %v2308 = vsel %vm1426, %v1382, 0
        %v2311 = vsel %vm1426, %v1383, 0
        %v2314 = vsel %vm1426, %v1384, 0
        %v2317 = vsel %vm1426, %v1385, 0
        %v2320 = vsel %vm1426, %v1386, 0
        %v2323 = vsel %vm1426, %v1387, 0
        %v2326 = vsel %vm1426, %v1388, 0
        %v2329 = vsel %vm1426, %v1389, 0
        %v2332 = vsel %vm1426, %v1390, 0
        %v2335 = vsel %vm1426, %v1391, 0
        %v2338 = vsel %vm1426, %v1392, 0
        %v2341 = vsel %vm1426, %v1393, 0
        %v2344 = vsel %vm1426, %v1394, 0
        %v2347 = vsel %vm1426, %v1395, 0
        %v2350 = vsel %vm1426, %v1396, 0
        %v2353 = vsel %vm1426, %v1397, 0
        %v2356 = vsel %vm1426, %v1398, 0
        %v2359 = vsel %vm1426, %v1399, 0
        %v2362 = vsel %vm1426, %v1400, 0
        %v2365 = vsel %vm1426, %v1401, 0
        %v2368 = vsel %vm1426, %v1402, 0
        %v2371 = vsel %vm1426, %v1403, 0
        %v2374 = vsel %vm1426, %v1404, 0
        %v2377 = vsel %vm1426, %v1405, 0
        %v2380 = vsel %vm1426, %v1406, 0
        %v2383 = vsel %vm1426, %v1407, 0
        %v2386 = vsel %vm1426, %v1408, 0
        %v2389 = vsel %vm1426, %v1409, 0
        %v2392 = vsel %vm1426, %v1410, 0
        %v2395 = vsel %vm1426, %v1411, 0
        %v2398 = vsel %vm1426, %v1412, 0
        %v2401 = vsel %vm1426, %v1413, 0
        %v2404 = vsel %vm1426, %v1414, 0
        %v2407 = vsel %vm1426, %v1415, 0
        %v2410 = vsel %vm1426, %v1416, 0
        %v2413 = vsel %vm1426, %v1417, 0
        %v2416 = vsel %vm1426, %v1418, 0
        %v2419 = vsel %vm1426, %v1419, 0
        %v2422 = vsel %vm1426, %v1420, 0
        %v2425 = vsel %vm1426, %v1421, 0
        %v2428 = vsel %vm1426, %v1422, 0
        %v2431 = vsel %vm1619, %v2237, 0
        %2433 = vmatpush.msra.mxu0 0.0
        %2434 = vmatpush.msra.mxu0 0.0
        %2435 = vmatpush.msra.mxu0 0.0
        %2436 = vmatpush.msra.mxu0 0.0
        %2437 = vmatpush.msra.mxu0 0.0
        %2438 = vmatpush.msra.mxu0 0.0
        %2439 = vmatpush.msra.mxu0 0.0
        %2440 = vmatpush.msra.mxu0 0.0
        %2441 = vmatpush.msra.mxu0 0.0
        %2442 = vmatpush.msra.mxu0 0.0
        %2443 = vmatpush.msra.mxu0 0.0
        %2444 = vmatpush.msra.mxu0 0.0
        %2445 = vmatpush.msra.mxu0 0.0
        %2446 = vmatpush.msra.mxu0 0.0
        %2447 = vmatpush.msra.mxu0 0.0
        %2448 = vmatpush.msra.mxu0 %v2431
        %2449 = vmatmul.f32.gmra.mxu0 %v2239
        %v2450 = vpop.f32.mrf.mxu0
        %v2451 = vadd.f32 0.0, %v2450
        %2452 = vmatmul.f32.gmra.mxu0 %v2242
        %v2453 = vpop.f32.mrf.mxu0
        %v2454 = vadd.f32 0.0, %v2453
        %2455 = vmatmul.f32.gmra.mxu0 %v2245
        %v2456 = vpop.f32.mrf.mxu0
        %v2457 = vadd.f32 0.0, %v2456
        %2458 = vmatmul.f32.gmra.mxu0 %v2248
        %v2459 = vpop.f32.mrf.mxu0
        %v2460 = vadd.f32 0.0, %v2459
        %2461 = vmatmul.f32.gmra.mxu0 %v2251
        %v2462 = vpop.f32.mrf.mxu0
        %v2463 = vadd.f32 0.0, %v2462
        %2464 = vmatmul.f32.gmra.mxu0 %v2254
        %v2465 = vpop.f32.mrf.mxu0
        %v2466 = vadd.f32 0.0, %v2465
        %2467 = vmatmul.f32.gmra.mxu0 %v2257
        %v2468 = vpop.f32.mrf.mxu0
        %v2469 = vadd.f32 0.0, %v2468
        %2470 = vmatmul.f32.gmra.mxu0 %v2260
        %v2471 = vpop.f32.mrf.mxu0
        %v2472 = vadd.f32 0.0, %v2471
        %2473 = vmatmul.f32.gmra.mxu0 %v2263
        %v2474 = vpop.f32.mrf.mxu0
        %v2475 = vadd.f32 0.0, %v2474
        %2476 = vmatmul.f32.gmra.mxu0 %v2266
        %v2477 = vpop.f32.mrf.mxu0
        %v2478 = vadd.f32 0.0, %v2477
        %2479 = vmatmul.f32.gmra.mxu0 %v2269
        %v2480 = vpop.f32.mrf.mxu0
        %v2481 = vadd.f32 0.0, %v2480
        %2482 = vmatmul.f32.gmra.mxu0 %v2272
        %v2483 = vpop.f32.mrf.mxu0
        %v2484 = vadd.f32 0.0, %v2483
        %2485 = vmatmul.f32.gmra.mxu0 %v2275
        %v2486 = vpop.f32.mrf.mxu0
        %v2487 = vadd.f32 0.0, %v2486
        %2488 = vmatmul.f32.gmra.mxu0 %v2278
        %v2489 = vpop.f32.mrf.mxu0
        %v2490 = vadd.f32 0.0, %v2489
        %2491 = vmatmul.f32.gmra.mxu0 %v2281
        %v2492 = vpop.f32.mrf.mxu0
        %v2493 = vadd.f32 0.0, %v2492
        %2494 = vmatmul.f32.gmra.mxu0 %v2284
        %v2495 = vpop.f32.mrf.mxu0
        %v2496 = vadd.f32 0.0, %v2495
        %2497 = vmatmul.f32.gmra.mxu0 %v2287
        %v2498 = vpop.f32.mrf.mxu0
        %v2499 = vadd.f32 0.0, %v2498
        %2500 = vmatmul.f32.gmra.mxu0 %v2290
        %v2501 = vpop.f32.mrf.mxu0
        %v2502 = vadd.f32 0.0, %v2501
        %2503 = vmatmul.f32.gmra.mxu0 %v2293
        %v2504 = vpop.f32.mrf.mxu0
        %v2505 = vadd.f32 0.0, %v2504
        %2506 = vmatmul.f32.gmra.mxu0 %v2296
        %v2507 = vpop.f32.mrf.mxu0
        %v2508 = vadd.f32 0.0, %v2507
        %2509 = vmatmul.f32.gmra.mxu0 %v2299
        %v2510 = vpop.f32.mrf.mxu0
        %v2511 = vadd.f32 0.0, %v2510
        %2512 = vmatmul.f32.gmra.mxu0 %v2302
        %v2513 = vpop.f32.mrf.mxu0
        %v2514 = vadd.f32 0.0, %v2513
        %2515 = vmatmul.f32.gmra.mxu0 %v2305
        %v2516 = vpop.f32.mrf.mxu0
        %v2517 = vadd.f32 0.0, %v2516
        %2518 = vmatmul.f32.gmra.mxu0 %v2308
        %v2519 = vpop.f32.mrf.mxu0
        %v2520 = vadd.f32 0.0, %v2519
        %2521 = vmatmul.f32.gmra.mxu0 %v2311
        %v2522 = vpop.f32.mrf.mxu0
        %v2523 = vadd.f32 0.0, %v2522
        %2524 = vmatmul.f32.gmra.mxu0 %v2314
        %v2525 = vpop.f32.mrf.mxu0
        %v2526 = vadd.f32 0.0, %v2525
        %2527 = vmatmul.f32.gmra.mxu0 %v2317
        %v2528 = vpop.f32.mrf.mxu0
        %v2529 = vadd.f32 0.0, %v2528
        %2530 = vmatmul.f32.gmra.mxu0 %v2320
        %v2531 = vpop.f32.mrf.mxu0
        %v2532 = vadd.f32 0.0, %v2531
        %2533 = vmatmul.f32.gmra.mxu0 %v2323
        %v2534 = vpop.f32.mrf.mxu0
        %v2535 = vadd.f32 0.0, %v2534
        %2536 = vmatmul.f32.gmra.mxu0 %v2326
        %v2537 = vpop.f32.mrf.mxu0
        %v2538 = vadd.f32 0.0, %v2537
        %2539 = vmatmul.f32.gmra.mxu0 %v2329
        %v2540 = vpop.f32.mrf.mxu0
        %v2541 = vadd.f32 0.0, %v2540
        %2542 = vmatmul.f32.gmra.mxu0 %v2332
        %v2543 = vpop.f32.mrf.mxu0
        %v2544 = vadd.f32 0.0, %v2543
        %2545 = vmatmul.f32.gmra.mxu0 %v2335
        %v2546 = vpop.f32.mrf.mxu0
        %v2547 = vadd.f32 0.0, %v2546
        %2548 = vmatmul.f32.gmra.mxu0 %v2338
        %v2549 = vpop.f32.mrf.mxu0
        %v2550 = vadd.f32 0.0, %v2549
        %2551 = vmatmul.f32.gmra.mxu0 %v2341
        %v2552 = vpop.f32.mrf.mxu0
        %v2553 = vadd.f32 0.0, %v2552
        %2554 = vmatmul.f32.gmra.mxu0 %v2344
        %v2555 = vpop.f32.mrf.mxu0
        %v2556 = vadd.f32 0.0, %v2555
        %2557 = vmatmul.f32.gmra.mxu0 %v2347
        %v2558 = vpop.f32.mrf.mxu0
        %v2559 = vadd.f32 0.0, %v2558
        %2560 = vmatmul.f32.gmra.mxu0 %v2350
        %v2561 = vpop.f32.mrf.mxu0
        %v2562 = vadd.f32 0.0, %v2561
        %2563 = vmatmul.f32.gmra.mxu0 %v2353
        %v2564 = vpop.f32.mrf.mxu0
        %v2565 = vadd.f32 0.0, %v2564
        %2566 = vmatmul.f32.gmra.mxu0 %v2356
        %v2567 = vpop.f32.mrf.mxu0
        %v2568 = vadd.f32 0.0, %v2567
        %2569 = vmatmul.f32.gmra.mxu0 %v2359
        %v2570 = vpop.f32.mrf.mxu0
        %v2571 = vadd.f32 0.0, %v2570
        %2572 = vmatmul.f32.gmra.mxu0 %v2362
        %v2573 = vpop.f32.mrf.mxu0
        %v2574 = vadd.f32 0.0, %v2573
        %2575 = vmatmul.f32.gmra.mxu0 %v2365
        %v2576 = vpop.f32.mrf.mxu0
        %v2577 = vadd.f32 0.0, %v2576
        %2578 = vmatmul.f32.gmra.mxu0 %v2368
        %v2579 = vpop.f32.mrf.mxu0
        %v2580 = vadd.f32 0.0, %v2579
        %2581 = vmatmul.f32.gmra.mxu0 %v2371
        %v2582 = vpop.f32.mrf.mxu0
        %v2583 = vadd.f32 0.0, %v2582
        %2584 = vmatmul.f32.gmra.mxu0 %v2374
        %v2585 = vpop.f32.mrf.mxu0
        %v2586 = vadd.f32 0.0, %v2585
        %2587 = vmatmul.f32.gmra.mxu0 %v2377
        %v2588 = vpop.f32.mrf.mxu0
        %v2589 = vadd.f32 0.0, %v2588
        %2590 = vmatmul.f32.gmra.mxu0 %v2380
        %v2591 = vpop.f32.mrf.mxu0
        %v2592 = vadd.f32 0.0, %v2591
        %2593 = vmatmul.f32.gmra.mxu0 %v2383
        %v2594 = vpop.f32.mrf.mxu0
        %v2595 = vadd.f32 0.0, %v2594
        %2596 = vmatmul.f32.gmra.mxu0 %v2386
        %v2597 = vpop.f32.mrf.mxu0
        %v2598 = vadd.f32 0.0, %v2597
        %2599 = vmatmul.f32.gmra.mxu0 %v2389
        %v2600 = vpop.f32.mrf.mxu0
        %v2601 = vadd.f32 0.0, %v2600
        %2602 = vmatmul.f32.gmra.mxu0 %v2392
        %v2603 = vpop.f32.mrf.mxu0
        %v2604 = vadd.f32 0.0, %v2603
        %2605 = vmatmul.f32.gmra.mxu0 %v2395
        %v2606 = vpop.f32.mrf.mxu0
        %v2607 = vadd.f32 0.0, %v2606
        %2608 = vmatmul.f32.gmra.mxu0 %v2398
        %v2609 = vpop.f32.mrf.mxu0
        %v2610 = vadd.f32 0.0, %v2609
        %2611 = vmatmul.f32.gmra.mxu0 %v2401
        %v2612 = vpop.f32.mrf.mxu0
        %v2613 = vadd.f32 0.0, %v2612
        %2614 = vmatmul.f32.gmra.mxu0 %v2404
        %v2615 = vpop.f32.mrf.mxu0
        %v2616 = vadd.f32 0.0, %v2615
        %2617 = vmatmul.f32.gmra.mxu0 %v2407
        %v2618 = vpop.f32.mrf.mxu0
        %v2619 = vadd.f32 0.0, %v2618
        %2620 = vmatmul.f32.gmra.mxu0 %v2410
        %v2621 = vpop.f32.mrf.mxu0
        %v2622 = vadd.f32 0.0, %v2621
        %2623 = vmatmul.f32.gmra.mxu0 %v2413
        %v2624 = vpop.f32.mrf.mxu0
        %v2625 = vadd.f32 0.0, %v2624
        %2626 = vmatmul.f32.gmra.mxu0 %v2416
        %v2627 = vpop.f32.mrf.mxu0
        %v2628 = vadd.f32 0.0, %v2627
        %2629 = vmatmul.f32.gmra.mxu0 %v2419
        %v2630 = vpop.f32.mrf.mxu0
        %v2631 = vadd.f32 0.0, %v2630
        %2632 = vmatmul.f32.gmra.mxu0 %v2422
        %v2633 = vpop.f32.mrf.mxu0
        %v2634 = vadd.f32 0.0, %v2633
        %2635 = vmatmul.f32.gmra.mxu0 %v2425
        %v2636 = vpop.f32.mrf.mxu0
        %v2637 = vadd.f32 0.0, %v2636
        %2638 = vmatmul.f32.gmra.mxu0 %v2428
        %v2639 = vpop.f32.mrf.mxu0
        %v2640 = vadd.f32 0.0, %v2639
        %2641 = vdwg.mxu0
        %v2642 = vadd.f32 %v2045, %v2451
        %v2643 = vadd.f32 %v2048, %v2454
        %v2644 = vadd.f32 %v2051, %v2457
        %v2645 = vadd.f32 %v2054, %v2460
        %v2646 = vadd.f32 %v2057, %v2463
        %v2647 = vadd.f32 %v2060, %v2466
        %v2648 = vadd.f32 %v2063, %v2469
        %v2649 = vadd.f32 %v2066, %v2472
        %v2650 = vadd.f32 %v2069, %v2475
        %v2651 = vadd.f32 %v2072, %v2478
        %v2652 = vadd.f32 %v2075, %v2481
        %v2653 = vadd.f32 %v2078, %v2484
        %v2654 = vadd.f32 %v2081, %v2487
        %v2655 = vadd.f32 %v2084, %v2490
        %v2656 = vadd.f32 %v2087, %v2493
        %v2657 = vadd.f32 %v2090, %v2496
        %v2658 = vadd.f32 %v2093, %v2499
        %v2659 = vadd.f32 %v2096, %v2502
        %v2660 = vadd.f32 %v2099, %v2505
        %v2661 = vadd.f32 %v2102, %v2508
        %v2662 = vadd.f32 %v2105, %v2511
        %v2663 = vadd.f32 %v2108, %v2514
        %v2664 = vadd.f32 %v2111, %v2517
        %v2665 = vadd.f32 %v2114, %v2520
        %v2666 = vadd.f32 %v2117, %v2523
        %v2667 = vadd.f32 %v2120, %v2526
        %v2668 = vadd.f32 %v2123, %v2529
        %v2669 = vadd.f32 %v2126, %v2532
        %v2670 = vadd.f32 %v2129, %v2535
        %v2671 = vadd.f32 %v2132, %v2538
        %v2672 = vadd.f32 %v2135, %v2541
        %v2673 = vadd.f32 %v2138, %v2544
        %v2674 = vadd.f32 %v2141, %v2547
        %v2675 = vadd.f32 %v2144, %v2550
        %v2676 = vadd.f32 %v2147, %v2553
        %v2677 = vadd.f32 %v2150, %v2556
        %v2678 = vadd.f32 %v2153, %v2559
        %v2679 = vadd.f32 %v2156, %v2562
        %v2680 = vadd.f32 %v2159, %v2565
        %v2681 = vadd.f32 %v2162, %v2568
        %v2682 = vadd.f32 %v2165, %v2571
        %v2683 = vadd.f32 %v2168, %v2574
        %v2684 = vadd.f32 %v2171, %v2577
        %v2685 = vadd.f32 %v2174, %v2580
        %v2686 = vadd.f32 %v2177, %v2583
        %v2687 = vadd.f32 %v2180, %v2586
        %v2688 = vadd.f32 %v2183, %v2589
        %v2689 = vadd.f32 %v2186, %v2592
        %v2690 = vadd.f32 %v2189, %v2595
        %v2691 = vadd.f32 %v2192, %v2598
        %v2692 = vadd.f32 %v2195, %v2601
        %v2693 = vadd.f32 %v2198, %v2604
        %v2694 = vadd.f32 %v2201, %v2607
        %v2695 = vadd.f32 %v2204, %v2610
        %v2696 = vadd.f32 %v2207, %v2613
        %v2697 = vadd.f32 %v2210, %v2616
        %v2698 = vadd.f32 %v2213, %v2619
        %v2699 = vadd.f32 %v2216, %v2622
        %v2700 = vadd.f32 %v2219, %v2625
        %v2701 = vadd.f32 %v2222, %v2628
        %v2702 = vadd.f32 %v2225, %v2631
        %v2703 = vadd.f32 %v2228, %v2634
        %v2704 = vadd.f32 %v2231, %v2637
        %v2705 = vadd.f32 %v2234, %v2640
        %v2706 = vld [vmem:[%s3] sm:$0xff]
        %v2707 = vld [vmem:[%s3 + $0x8] sm:$0xff]
        %v2708 = vld [vmem:[%s3 + $0x10] sm:$0xff]
        %v2709 = vld [vmem:[%s3 + $0x18] sm:$0xff]
        %v2710 = vld [vmem:[%s3 + $0x20] sm:$0xff]
        %v2711 = vld [vmem:[%s3 + $0x28] sm:$0xff]
        %v2712 = vld [vmem:[%s3 + $0x30] sm:$0xff]
        %v2713 = vld [vmem:[%s3 + $0x38] sm:$0xff]
        %v2714 = vld [vmem:[%s3 + $0x40] sm:$0xff]
        %v2715 = vld [vmem:[%s3 + $0x48] sm:$0xff]
        %v2716 = vld [vmem:[%s3 + $0x50] sm:$0xff]
        %v2717 = vld [vmem:[%s3 + $0x58] sm:$0xff]
        %v2718 = vld [vmem:[%s3 + $0x60] sm:$0xff]
        %v2719 = vld [vmem:[%s3 + $0x68] sm:$0xff]
        %v2720 = vld [vmem:[%s3 + $0x70] sm:$0xff]
        %v2721 = vld [vmem:[%s3 + $0x78] sm:$0xff]
        %v2722 = vld [vmem:[%s3 + $0x80] sm:$0xff]
        %v2723 = vld [vmem:[%s3 + $0x88] sm:$0xff]
        %v2724 = vld [vmem:[%s3 + $0x90] sm:$0xff]
        %v2725 = vld [vmem:[%s3 + $0x98] sm:$0xff]
        %v2726 = vld [vmem:[%s3 + $0xa0] sm:$0xff]
        %v2727 = vld [vmem:[%s3 + $0xa8] sm:$0xff]
        %v2728 = vld [vmem:[%s3 + $0xb0] sm:$0xff]
        %v2729 = vld [vmem:[%s3 + $0xb8] sm:$0xff]
        %v2730 = vld [vmem:[%s3 + $0xc0] sm:$0xff]
        %v2731 = vld [vmem:[%s3 + $0xc8] sm:$0xff]
        %v2732 = vld [vmem:[%s3 + $0xd0] sm:$0xff]
        %v2733 = vld [vmem:[%s3 + $0xd8] sm:$0xff]
        %v2734 = vld [vmem:[%s3 + $0xe0] sm:$0xff]
        %v2735 = vld [vmem:[%s3 + $0xe8] sm:$0xff]
        %v2736 = vld [vmem:[%s3 + $0xf0] sm:$0xff]
        %v2737 = vld [vmem:[%s3 + $0xf8] sm:$0xff]
        %v2738 = vld [vmem:[%s3 + $0x100] sm:$0xff]
        %v2739 = vld [vmem:[%s3 + $0x108] sm:$0xff]
        %v2740 = vld [vmem:[%s3 + $0x110] sm:$0xff]
        %v2741 = vld [vmem:[%s3 + $0x118] sm:$0xff]
        %v2742 = vld [vmem:[%s3 + $0x120] sm:$0xff]
        %v2743 = vld [vmem:[%s3 + $0x128] sm:$0xff]
        %v2744 = vld [vmem:[%s3 + $0x130] sm:$0xff]
        %v2745 = vld [vmem:[%s3 + $0x138] sm:$0xff]
        %v2746 = vld [vmem:[%s3 + $0x140] sm:$0xff]
        %v2747 = vld [vmem:[%s3 + $0x148] sm:$0xff]
        %v2748 = vld [vmem:[%s3 + $0x150] sm:$0xff]
        %v2749 = vld [vmem:[%s3 + $0x158] sm:$0xff]
        %v2750 = vld [vmem:[%s3 + $0x160] sm:$0xff]
        %v2751 = vld [vmem:[%s3 + $0x168] sm:$0xff]
        %v2752 = vld [vmem:[%s3 + $0x170] sm:$0xff]
        %v2753 = vld [vmem:[%s3 + $0x178] sm:$0xff]
        %v2754 = vld [vmem:[%s3 + $0x180] sm:$0xff]
        %v2755 = vld [vmem:[%s3 + $0x188] sm:$0xff]
        %v2756 = vld [vmem:[%s3 + $0x190] sm:$0xff]
        %v2757 = vld [vmem:[%s3 + $0x198] sm:$0xff]
        %v2758 = vld [vmem:[%s3 + $0x1a0] sm:$0xff]
        %v2759 = vld [vmem:[%s3 + $0x1a8] sm:$0xff]
        %v2760 = vld [vmem:[%s3 + $0x1b0] sm:$0xff]
        %v2761 = vld [vmem:[%s3 + $0x1b8] sm:$0xff]
        %v2762 = vld [vmem:[%s3 + $0x1c0] sm:$0xff]
        %v2763 = vld [vmem:[%s3 + $0x1c8] sm:$0xff]
        %v2764 = vld [vmem:[%s3 + $0x1d0] sm:$0xff]
        %v2765 = vld [vmem:[%s3 + $0x1d8] sm:$0xff]
        %v2766 = vld [vmem:[%s3 + $0x1e0] sm:$0xff]
        %v2767 = vld [vmem:[%s3 + $0x1e8] sm:$0xff]
        %v2768 = vld [vmem:[%s3 + $0x1f0] sm:$0xff]
        %v2769 = vld [vmem:[%s3 + $0x1f8] sm:$0xff]
        %v2770 = vadd.f32 %v2642, %v2706
        %v2771 = vadd.f32 %v2643, %v2707
        %v2772 = vadd.f32 %v2644, %v2708
        %v2773 = vadd.f32 %v2645, %v2709
        %v2774 = vadd.f32 %v2646, %v2710
        %v2775 = vadd.f32 %v2647, %v2711
        %v2776 = vadd.f32 %v2648, %v2712
        %v2777 = vadd.f32 %v2649, %v2713
        %v2778 = vadd.f32 %v2650, %v2714
        %v2779 = vadd.f32 %v2651, %v2715
        %v2780 = vadd.f32 %v2652, %v2716
        %v2781 = vadd.f32 %v2653, %v2717
        %v2782 = vadd.f32 %v2654, %v2718
        %v2783 = vadd.f32 %v2655, %v2719
        %v2784 = vadd.f32 %v2656, %v2720
        %v2785 = vadd.f32 %v2657, %v2721
        %v2786 = vadd.f32 %v2658, %v2722
        %v2787 = vadd.f32 %v2659, %v2723
        %v2788 = vadd.f32 %v2660, %v2724
        %v2789 = vadd.f32 %v2661, %v2725
        %v2790 = vadd.f32 %v2662, %v2726
        %v2791 = vadd.f32 %v2663, %v2727
        %v2792 = vadd.f32 %v2664, %v2728
        %v2793 = vadd.f32 %v2665, %v2729
        %v2794 = vadd.f32 %v2666, %v2730
        %v2795 = vadd.f32 %v2667, %v2731
        %v2796 = vadd.f32 %v2668, %v2732
        %v2797 = vadd.f32 %v2669, %v2733
        %v2798 = vadd.f32 %v2670, %v2734
        %v2799 = vadd.f32 %v2671, %v2735
        %v2800 = vadd.f32 %v2672, %v2736
        %v2801 = vadd.f32 %v2673, %v2737
        %v2802 = vadd.f32 %v2674, %v2738
        %v2803 = vadd.f32 %v2675, %v2739
        %v2804 = vadd.f32 %v2676, %v2740
        %v2805 = vadd.f32 %v2677, %v2741
        %v2806 = vadd.f32 %v2678, %v2742
        %v2807 = vadd.f32 %v2679, %v2743
        %v2808 = vadd.f32 %v2680, %v2744
        %v2809 = vadd.f32 %v2681, %v2745
        %v2810 = vadd.f32 %v2682, %v2746
        %v2811 = vadd.f32 %v2683, %v2747
        %v2812 = vadd.f32 %v2684, %v2748
        %v2813 = vadd.f32 %v2685, %v2749
        %v2814 = vadd.f32 %v2686, %v2750
        %v2815 = vadd.f32 %v2687, %v2751
        %v2816 = vadd.f32 %v2688, %v2752
        %v2817 = vadd.f32 %v2689, %v2753
        %v2818 = vadd.f32 %v2690, %v2754
        %v2819 = vadd.f32 %v2691, %v2755
        %v2820 = vadd.f32 %v2692, %v2756
        %v2821 = vadd.f32 %v2693, %v2757
        %v2822 = vadd.f32 %v2694, %v2758
        %v2823 = vadd.f32 %v2695, %v2759
        %v2824 = vadd.f32 %v2696, %v2760
        %v2825 = vadd.f32 %v2697, %v2761
        %v2826 = vadd.f32 %v2698, %v2762
        %v2827 = vadd.f32 %v2699, %v2763
        %v2828 = vadd.f32 %v2700, %v2764
        %v2829 = vadd.f32 %v2701, %v2765
        %v2830 = vadd.f32 %v2702, %v2766
        %v2831 = vadd.f32 %v2703, %v2767
        %v2832 = vadd.f32 %v2704, %v2768
        %v2833 = vadd.f32 %v2705, %v2769
        %v2834 = vmax.f32 %v2770, 0.0
        %v2835 = vmax.f32 %v2771, 0.0
        %v2836 = vmax.f32 %v2772, 0.0
        %v2837 = vmax.f32 %v2773, 0.0
        %v2838 = vmax.f32 %v2774, 0.0
        %v2839 = vmax.f32 %v2775, 0.0
        %v2840 = vmax.f32 %v2776, 0.0
        %v2841 = vmax.f32 %v2777, 0.0
        %v2842 = vmax.f32 %v2778, 0.0
        %v2843 = vmax.f32 %v2779, 0.0
        %v2844 = vmax.f32 %v2780, 0.0
        %v2845 = vmax.f32 %v2781, 0.0
        %v2846 = vmax.f32 %v2782, 0.0
        %v2847 = vmax.f32 %v2783, 0.0
        %v2848 = vmax.f32 %v2784, 0.0
        %v2849 = vmax.f32 %v2785, 0.0
        %v2850 = vmax.f32 %v2786, 0.0
        %v2851 = vmax.f32 %v2787, 0.0
        %v2852 = vmax.f32 %v2788, 0.0
        %v2853 = vmax.f32 %v2789, 0.0
        %v2854 = vmax.f32 %v2790, 0.0
        %v2855 = vmax.f32 %v2791, 0.0
        %v2856 = vmax.f32 %v2792, 0.0
        %v2857 = vmax.f32 %v2793, 0.0
        %v2858 = vmax.f32 %v2794, 0.0
        %v2859 = vmax.f32 %v2795, 0.0
        %v2860 = vmax.f32 %v2796, 0.0
        %v2861 = vmax.f32 %v2797, 0.0
        %v2862 = vmax.f32 %v2798, 0.0
        %v2863 = vmax.f32 %v2799, 0.0
        %v2864 = vmax.f32 %v2800, 0.0
        %v2865 = vmax.f32 %v2801, 0.0
        %v2866 = vmax.f32 %v2802, 0.0
        %v2867 = vmax.f32 %v2803, 0.0
        %v2868 = vmax.f32 %v2804, 0.0
        %v2869 = vmax.f32 %v2805, 0.0
        %v2870 = vmax.f32 %v2806, 0.0
        %v2871 = vmax.f32 %v2807, 0.0
        %v2872 = vmax.f32 %v2808, 0.0
        %v2873 = vmax.f32 %v2809, 0.0
        %v2874 = vmax.f32 %v2810, 0.0
        %v2875 = vmax.f32 %v2811, 0.0
        %v2876 = vmax.f32 %v2812, 0.0
        %v2877 = vmax.f32 %v2813, 0.0
        %v2878 = vmax.f32 %v2814, 0.0
        %v2879 = vmax.f32 %v2815, 0.0
        %v2880 = vmax.f32 %v2816, 0.0
        %v2881 = vmax.f32 %v2817, 0.0
        %v2882 = vmax.f32 %v2818, 0.0
        %v2883 = vmax.f32 %v2819, 0.0
        %v2884 = vmax.f32 %v2820, 0.0
        %v2885 = vmax.f32 %v2821, 0.0
        %v2886 = vmax.f32 %v2822, 0.0
        %v2887 = vmax.f32 %v2823, 0.0
        %v2888 = vmax.f32 %v2824, 0.0
        %v2889 = vmax.f32 %v2825, 0.0
        %v2890 = vmax.f32 %v2826, 0.0
        %v2891 = vmax.f32 %v2827, 0.0
        %v2892 = vmax.f32 %v2828, 0.0
        %v2893 = vmax.f32 %v2829, 0.0
        %v2894 = vmax.f32 %v2830, 0.0
        %v2895 = vmax.f32 %v2831, 0.0
        %v2896 = vmax.f32 %v2832, 0.0
        %v2897 = vmax.f32 %v2833, 0.0
        %v2898 = vrot.slane %v2834, 7
        %v2899 = vrot.slane %v2835, 7
        %v2900 = vrot.slane %v2836, 7
        %v2901 = vrot.slane %v2837, 7
        %v2902 = vrot.slane %v2838, 7
        %v2903 = vrot.slane %v2839, 7
        %v2904 = vrot.slane %v2840, 7
        %v2905 = vrot.slane %v2841, 7
        %v2906 = vrot.slane %v2842, 7
        %v2907 = vrot.slane %v2843, 7
        %v2908 = vrot.slane %v2844, 7
        %v2909 = vrot.slane %v2845, 7
        %v2910 = vrot.slane %v2846, 7
        %v2911 = vrot.slane %v2847, 7
        %v2912 = vrot.slane %v2848, 7
        %v2913 = vrot.slane %v2849, 7
        %v2914 = vrot.slane %v2850, 7
        %v2915 = vrot.slane %v2851, 7
        %v2916 = vrot.slane %v2852, 7
        %v2917 = vrot.slane %v2853, 7
        %v2918 = vrot.slane %v2854, 7
        %v2919 = vrot.slane %v2855, 7
        %v2920 = vrot.slane %v2856, 7
        %v2921 = vrot.slane %v2857, 7
        %v2922 = vrot.slane %v2858, 7
        %v2923 = vrot.slane %v2859, 7
        %v2924 = vrot.slane %v2860, 7
        %v2925 = vrot.slane %v2861, 7
        %v2926 = vrot.slane %v2862, 7
        %v2927 = vrot.slane %v2863, 7
        %v2928 = vrot.slane %v2864, 7
        %v2929 = vrot.slane %v2865, 7
        %v2930 = vrot.slane %v2866, 7
        %v2931 = vrot.slane %v2867, 7
        %v2932 = vrot.slane %v2868, 7
        %v2933 = vrot.slane %v2869, 7
        %v2934 = vrot.slane %v2870, 7
        %v2935 = vrot.slane %v2871, 7
        %v2936 = vrot.slane %v2872, 7
        %v2937 = vrot.slane %v2873, 7
        %v2938 = vrot.slane %v2874, 7
        %v2939 = vrot.slane %v2875, 7
        %v2940 = vrot.slane %v2876, 7
        %v2941 = vrot.slane %v2877, 7
        %v2942 = vrot.slane %v2878, 7
        %v2943 = vrot.slane %v2879, 7
        %v2944 = vrot.slane %v2880, 7
        %v2945 = vrot.slane %v2881, 7
        %v2946 = vrot.slane %v2882, 7
        %v2947 = vrot.slane %v2883, 7
        %v2948 = vrot.slane %v2884, 7
        %v2949 = vrot.slane %v2885, 7
        %v2950 = vrot.slane %v2886, 7
        %v2951 = vrot.slane %v2887, 7
        %v2952 = vrot.slane %v2888, 7
        %v2953 = vrot.slane %v2889, 7
        %v2954 = vrot.slane %v2890, 7
        %v2955 = vrot.slane %v2891, 7
        %v2956 = vrot.slane %v2892, 7
        %v2957 = vrot.slane %v2893, 7
        %v2958 = vrot.slane %v2894, 7
        %v2959 = vrot.slane %v2895, 7
        %v2960 = vrot.slane %v2896, 7
        %v2961 = vrot.slane %v2897, 7
        %v2962 = vsel %vm525, %v2960, %v2961
        %v2963 = vsel %vm525, %v2959, %v2960
        %v2964 = vsel %vm525, %v2958, %v2959
        %v2965 = vsel %vm525, %v2957, %v2958
        %v2966 = vsel %vm525, %v2956, %v2957
        %v2967 = vsel %vm525, %v2955, %v2956
        %v2968 = vsel %vm525, %v2954, %v2955
        %v2969 = vsel %vm525, %v2953, %v2954
        %v2970 = vsel %vm525, %v2952, %v2953
        %v2971 = vsel %vm525, %v2951, %v2952
        %v2972 = vsel %vm525, %v2950, %v2951
        %v2973 = vsel %vm525, %v2949, %v2950
        %v2974 = vsel %vm525, %v2948, %v2949
        %v2975 = vsel %vm525, %v2947, %v2948
        %v2976 = vsel %vm525, %v2946, %v2947
        %v2977 = vsel %vm525, %v2945, %v2946
        %v2978 = vsel %vm525, %v2944, %v2945
        %v2979 = vsel %vm525, %v2943, %v2944
        %v2980 = vsel %vm525, %v2942, %v2943
        %v2981 = vsel %vm525, %v2941, %v2942
        %v2982 = vsel %vm525, %v2940, %v2941
        %v2983 = vsel %vm525, %v2939, %v2940
        %v2984 = vsel %vm525, %v2938, %v2939
        %v2985 = vsel %vm525, %v2937, %v2938
        %v2986 = vsel %vm525, %v2936, %v2937
        %v2987 = vsel %vm525, %v2935, %v2936
        %v2988 = vsel %vm525, %v2934, %v2935
        %v2989 = vsel %vm525, %v2933, %v2934
        %v2990 = vsel %vm525, %v2932, %v2933
        %v2991 = vsel %vm525, %v2931, %v2932
        %v2992 = vsel %vm525, %v2930, %v2931
        %v2993 = vsel %vm525, %v2929, %v2930
        %v2994 = vsel %vm525, %v2928, %v2929
        %v2995 = vsel %vm525, %v2927, %v2928
        %v2996 = vsel %vm525, %v2926, %v2927
        %v2997 = vsel %vm525, %v2925, %v2926
        %v2998 = vsel %vm525, %v2924, %v2925
        %v2999 = vsel %vm525, %v2923, %v2924
        %v3000 = vsel %vm525, %v2922, %v2923
        %v3001 = vsel %vm525, %v2921, %v2922
        %v3002 = vsel %vm525, %v2920, %v2921
        %v3003 = vsel %vm525, %v2919, %v2920
        %v3004 = vsel %vm525, %v2918, %v2919
        %v3005 = vsel %vm525, %v2917, %v2918
        %v3006 = vsel %vm525, %v2916, %v2917
        %v3007 = vsel %vm525, %v2915, %v2916
        %v3008 = vsel %vm525, %v2914, %v2915
        %v3009 = vsel %vm525, %v2913, %v2914
        %v3010 = vsel %vm525, %v2912, %v2913
        %v3011 = vsel %vm525, %v2911, %v2912
        %v3012 = vsel %vm525, %v2910, %v2911
        %v3013 = vsel %vm525, %v2909, %v2910
        %v3014 = vsel %vm525, %v2908, %v2909
        %v3015 = vsel %vm525, %v2907, %v2908
        %v3016 = vsel %vm525, %v2906, %v2907
        %v3017 = vsel %vm525, %v2905, %v2906
        %v3018 = vsel %vm525, %v2904, %v2905
        %v3019 = vsel %vm525, %v2903, %v2904
        %v3020 = vsel %vm525, %v2902, %v2903
        %v3021 = vsel %vm525, %v2901, %v2902
        %v3022 = vsel %vm525, %v2900, %v2901
        %v3023 = vsel %vm525, %v2899, %v2900
        %v3024 = vsel %vm525, %v2898, %v2899
        %v3025 = vsel %vm525, %v2961, %v2898
        %v3026 = vmul.f32 %v3025, %v593
        %v3027 = vmul.f32 %v3024, %v598
        %v3028 = vmul.f32 %v3023, %v603
        %v3029 = vmul.f32 %v3022, %v608
        %v3030 = vmul.f32 %v3021, %v613
        %v3031 = vmul.f32 %v3020, %v618
        %v3032 = vmul.f32 %v3019, %v623
        %v3033 = vmul.f32 %v3018, %v628
        %v3034 = vmul.f32 %v3017, %v633
        %v3035 = vmul.f32 %v3016, %v638
        %v3036 = vmul.f32 %v3015, %v643
        %v3037 = vmul.f32 %v3014, %v648
        %v3038 = vmul.f32 %v3013, %v653
        %v3039 = vmul.f32 %v3012, %v658
        %v3040 = vmul.f32 %v3011, %v663
        %v3041 = vmul.f32 %v3010, %v668
        %v3042 = vmul.f32 %v3009, %v673
        %v3043 = vmul.f32 %v3008, %v678
        %v3044 = vmul.f32 %v3007, %v683
        %v3045 = vmul.f32 %v3006, %v688
        %v3046 = vmul.f32 %v3005, %v693
        %v3047 = vmul.f32 %v3004, %v698
        %v3048 = vmul.f32 %v3003, %v703
        %v3049 = vmul.f32 %v3002, %v708
        %v3050 = vmul.f32 %v3001, %v713
        %v3051 = vmul.f32 %v3000, %v718
        %v3052 = vmul.f32 %v2999, %v723
        %v3053 = vmul.f32 %v2998, %v728
        %v3054 = vmul.f32 %v2997, %v733
        %v3055 = vmul.f32 %v2996, %v738
        %v3056 = vmul.f32 %v2995, %v743
        %v3057 = vmul.f32 %v2994, %v748
        %v3058 = vmul.f32 %v2993, %v753
        %v3059 = vmul.f32 %v2992, %v758
        %v3060 = vmul.f32 %v2991, %v763
        %v3061 = vmul.f32 %v2990, %v768
        %v3062 = vmul.f32 %v2989, %v773
        %v3063 = vmul.f32 %v2988, %v778
        %v3064 = vmul.f32 %v2987, %v783
        %v3065 = vmul.f32 %v2986, %v788
        %v3066 = vmul.f32 %v2985, %v793
        %v3067 = vmul.f32 %v2984, %v798
        %v3068 = vmul.f32 %v2983, %v803
        %v3069 = vmul.f32 %v2982, %v808
        %v3070 = vmul.f32 %v2981, %v813
        %v3071 = vmul.f32 %v2980, %v818
        %v3072 = vmul.f32 %v2979, %v823
        %v3073 = vmul.f32 %v2978, %v828
        %v3074 = vmul.f32 %v2977, %v833
        %v3075 = vmul.f32 %v2976, %v838
        %v3076 = vmul.f32 %v2975, %v843
        %v3077 = vmul.f32 %v2974, %v848
        %v3078 = vmul.f32 %v2973, %v853
        %v3079 = vmul.f32 %v2972, %v858
        %v3080 = vmul.f32 %v2971, %v863
        %v3081 = vmul.f32 %v2970, %v868
        %v3082 = vmul.f32 %v2969, %v873
        %v3083 = vmul.f32 %v2968, %v878
        %v3084 = vmul.f32 %v2967, %v883
        %v3085 = vmul.f32 %v2966, %v888
        %v3086 = vmul.f32 %v2965, %v893
        %v3087 = vmul.f32 %v2964, %v898
        %v3088 = vmul.f32 %v2963, %v903
        %v3089 = vmul.f32 %v2962, %v908
        %v3090 = vrot.slane %v2834, 1
        %v3091 = vrot.slane %v2835, 1
        %v3092 = vrot.slane %v2836, 1
        %v3093 = vrot.slane %v2837, 1
        %v3094 = vrot.slane %v2838, 1
        %v3095 = vrot.slane %v2839, 1
        %v3096 = vrot.slane %v2840, 1
        %v3097 = vrot.slane %v2841, 1
        %v3098 = vrot.slane %v2842, 1
        %v3099 = vrot.slane %v2843, 1
        %v3100 = vrot.slane %v2844, 1
        %v3101 = vrot.slane %v2845, 1
        %v3102 = vrot.slane %v2846, 1
        %v3103 = vrot.slane %v2847, 1
        %v3104 = vrot.slane %v2848, 1
        %v3105 = vrot.slane %v2849, 1
        %v3106 = vrot.slane %v2850, 1
        %v3107 = vrot.slane %v2851, 1
        %v3108 = vrot.slane %v2852, 1
        %v3109 = vrot.slane %v2853, 1
        %v3110 = vrot.slane %v2854, 1
        %v3111 = vrot.slane %v2855, 1
        %v3112 = vrot.slane %v2856, 1
        %v3113 = vrot.slane %v2857, 1
        %v3114 = vrot.slane %v2858, 1
        %v3115 = vrot.slane %v2859, 1
        %v3116 = vrot.slane %v2860, 1
        %v3117 = vrot.slane %v2861, 1
        %v3118 = vrot.slane %v2862, 1
        %v3119 = vrot.slane %v2863, 1
        %v3120 = vrot.slane %v2864, 1
        %v3121 = vrot.slane %v2865, 1
        %v3122 = vrot.slane %v2866, 1
        %v3123 = vrot.slane %v2867, 1
        %v3124 = vrot.slane %v2868, 1
        %v3125 = vrot.slane %v2869, 1
        %v3126 = vrot.slane %v2870, 1
        %v3127 = vrot.slane %v2871, 1
        %v3128 = vrot.slane %v2872, 1
        %v3129 = vrot.slane %v2873, 1
        %v3130 = vrot.slane %v2874, 1
        %v3131 = vrot.slane %v2875, 1
        %v3132 = vrot.slane %v2876, 1
        %v3133 = vrot.slane %v2877, 1
        %v3134 = vrot.slane %v2878, 1
        %v3135 = vrot.slane %v2879, 1
        %v3136 = vrot.slane %v2880, 1
        %v3137 = vrot.slane %v2881, 1
        %v3138 = vrot.slane %v2882, 1
        %v3139 = vrot.slane %v2883, 1
        %v3140 = vrot.slane %v2884, 1
        %v3141 = vrot.slane %v2885, 1
        %v3142 = vrot.slane %v2886, 1
        %v3143 = vrot.slane %v2887, 1
        %v3144 = vrot.slane %v2888, 1
        %v3145 = vrot.slane %v2889, 1
        %v3146 = vrot.slane %v2890, 1
        %v3147 = vrot.slane %v2891, 1
        %v3148 = vrot.slane %v2892, 1
        %v3149 = vrot.slane %v2893, 1
        %v3150 = vrot.slane %v2894, 1
        %v3151 = vrot.slane %v2895, 1
        %v3152 = vrot.slane %v2896, 1
        %v3153 = vrot.slane %v2897, 1
        %v3154 = vsel %vm1038, %v3152, %v3153
        %v3155 = vsel %vm1038, %v3151, %v3152
        %v3156 = vsel %vm1038, %v3150, %v3151
        %v3157 = vsel %vm1038, %v3149, %v3150
        %v3158 = vsel %vm1038, %v3148, %v3149
        %v3159 = vsel %vm1038, %v3147, %v3148
        %v3160 = vsel %vm1038, %v3146, %v3147
        %v3161 = vsel %vm1038, %v3145, %v3146
        %v3162 = vsel %vm1038, %v3144, %v3145
        %v3163 = vsel %vm1038, %v3143, %v3144
        %v3164 = vsel %vm1038, %v3142, %v3143
        %v3165 = vsel %vm1038, %v3141, %v3142
        %v3166 = vsel %vm1038, %v3140, %v3141
        %v3167 = vsel %vm1038, %v3139, %v3140
        %v3168 = vsel %vm1038, %v3138, %v3139
        %v3169 = vsel %vm1038, %v3137, %v3138
        %v3170 = vsel %vm1038, %v3136, %v3137
        %v3171 = vsel %vm1038, %v3135, %v3136
        %v3172 = vsel %vm1038, %v3134, %v3135
        %v3173 = vsel %vm1038, %v3133, %v3134
        %v3174 = vsel %vm1038, %v3132, %v3133
        %v3175 = vsel %vm1038, %v3131, %v3132
        %v3176 = vsel %vm1038, %v3130, %v3131
        %v3177 = vsel %vm1038, %v3129, %v3130
        %v3178 = vsel %vm1038, %v3128, %v3129
        %v3179 = vsel %vm1038, %v3127, %v3128
        %v3180 = vsel %vm1038, %v3126, %v3127
        %v3181 = vsel %vm1038, %v3125, %v3126
        %v3182 = vsel %vm1038, %v3124, %v3125
        %v3183 = vsel %vm1038, %v3123, %v3124
        %v3184 = vsel %vm1038, %v3122, %v3123
        %v3185 = vsel %vm1038, %v3121, %v3122
        %v3186 = vsel %vm1038, %v3120, %v3121
        %v3187 = vsel %vm1038, %v3119, %v3120
        %v3188 = vsel %vm1038, %v3118, %v3119
        %v3189 = vsel %vm1038, %v3117, %v3118
        %v3190 = vsel %vm1038, %v3116, %v3117
        %v3191 = vsel %vm1038, %v3115, %v3116
        %v3192 = vsel %vm1038, %v3114, %v3115
        %v3193 = vsel %vm1038, %v3113, %v3114
        %v3194 = vsel %vm1038, %v3112, %v3113
        %v3195 = vsel %vm1038, %v3111, %v3112
        %v3196 = vsel %vm1038, %v3110, %v3111
        %v3197 = vsel %vm1038, %v3109, %v3110
        %v3198 = vsel %vm1038, %v3108, %v3109
        %v3199 = vsel %vm1038, %v3107, %v3108
        %v3200 = vsel %vm1038, %v3106, %v3107
        %v3201 = vsel %vm1038, %v3105, %v3106
        %v3202 = vsel %vm1038, %v3104, %v3105
        %v3203 = vsel %vm1038, %v3103, %v3104
        %v3204 = vsel %vm1038, %v3102, %v3103
        %v3205 = vsel %vm1038, %v3101, %v3102
        %v3206 = vsel %vm1038, %v3100, %v3101
        %v3207 = vsel %vm1038, %v3099, %v3100
        %v3208 = vsel %vm1038, %v3098, %v3099
        %v3209 = vsel %vm1038, %v3097, %v3098
        %v3210 = vsel %vm1038, %v3096, %v3097
        %v3211 = vsel %vm1038, %v3095, %v3096
        %v3212 = vsel %vm1038, %v3094, %v3095
        %v3213 = vsel %vm1038, %v3093, %v3094
        %v3214 = vsel %vm1038, %v3092, %v3093
        %v3215 = vsel %vm1038, %v3091, %v3092
        %v3216 = vsel %vm1038, %v3090, %v3091
        %v3217 = vsel %vm1038, %v3153, %v3090
        %v3218 = vmul.f32 %v3216, %v1105
        %v3219 = vmul.f32 %v3215, %v1109
        %v3220 = vmul.f32 %v3214, %v1113
        %v3221 = vmul.f32 %v3213, %v1117
        %v3222 = vmul.f32 %v3212, %v1121
        %v3223 = vmul.f32 %v3211, %v1125
        %v3224 = vmul.f32 %v3210, %v1129
        %v3225 = vmul.f32 %v3209, %v1133
        %v3226 = vmul.f32 %v3208, %v1137
        %v3227 = vmul.f32 %v3207, %v1141
        %v3228 = vmul.f32 %v3206, %v1145
        %v3229 = vmul.f32 %v3205, %v1149
        %v3230 = vmul.f32 %v3204, %v1153
        %v3231 = vmul.f32 %v3203, %v1157
        %v3232 = vmul.f32 %v3202, %v1161
        %v3233 = vmul.f32 %v3201, %v1165
        %v3234 = vmul.f32 %v3200, %v1169
        %v3235 = vmul.f32 %v3199, %v1173
        %v3236 = vmul.f32 %v3198, %v1177
        %v3237 = vmul.f32 %v3197, %v1181
        %v3238 = vmul.f32 %v3196, %v1185
        %v3239 = vmul.f32 %v3195, %v1189
        %v3240 = vmul.f32 %v3194, %v1193
        %v3241 = vmul.f32 %v3193, %v1197
        %v3242 = vmul.f32 %v3192, %v1201
        %v3243 = vmul.f32 %v3191, %v1205
        %v3244 = vmul.f32 %v3190, %v1209
        %v3245 = vmul.f32 %v3189, %v1213
        %v3246 = vmul.f32 %v3188, %v1217
        %v3247 = vmul.f32 %v3187, %v1221
        %v3248 = vmul.f32 %v3186, %v1225
        %v3249 = vmul.f32 %v3185, %v1229
        %v3250 = vmul.f32 %v3184, %v1233
        %v3251 = vmul.f32 %v3183, %v1237
        %v3252 = vmul.f32 %v3182, %v1241
        %v3253 = vmul.f32 %v3181, %v1245
        %v3254 = vmul.f32 %v3180, %v1249
        %v3255 = vmul.f32 %v3179, %v1253
        %v3256 = vmul.f32 %v3178, %v1257
        %v3257 = vmul.f32 %v3177, %v1261
        %v3258 = vmul.f32 %v3176, %v1265
        %v3259 = vmul.f32 %v3175, %v1269
        %v3260 = vmul.f32 %v3174, %v1273
        %v3261 = vmul.f32 %v3173, %v1277
        %v3262 = vmul.f32 %v3172, %v1281
        %v3263 = vmul.f32 %v3171, %v1285
        %v3264 = vmul.f32 %v3170, %v1289
        %v3265 = vmul.f32 %v3169, %v1293
        %v3266 = vmul.f32 %v3168, %v1297
        %v3267 = vmul.f32 %v3167, %v1301
        %v3268 = vmul.f32 %v3166, %v1305
        %v3269 = vmul.f32 %v3165, %v1309
        %v3270 = vmul.f32 %v3164, %v1313
        %v3271 = vmul.f32 %v3163, %v1317
        %v3272 = vmul.f32 %v3162, %v1321
        %v3273 = vmul.f32 %v3161, %v1325
        %v3274 = vmul.f32 %v3160, %v1329
        %v3275 = vmul.f32 %v3159, %v1333
        %v3276 = vmul.f32 %v3158, %v1337
        %v3277 = vmul.f32 %v3157, %v1341
        %v3278 = vmul.f32 %v3156, %v1345
        %v3279 = vmul.f32 %v3155, %v1349
        %v3280 = vmul.f32 %v3154, %v1353
        %v3281 = vmul.f32 %v3217, %v1357
        %3346 = vrot.lane.b32.xlu0 %v2834, 64
        %v3347 = vpop.permute.xlu0 %3346
        %3348 = vrot.lane.b32.xlu0 %v2835, 64
        %v3349 = vpop.permute.xlu0 %3348
        %3350 = vrot.lane.b32.xlu0 %v2836, 64
        %v3351 = vpop.permute.xlu0 %3350
        %3352 = vrot.lane.b32.xlu0 %v2837, 64
        %v3353 = vpop.permute.xlu0 %3352
        %3354 = vrot.lane.b32.xlu0 %v2838, 64
        %v3355 = vpop.permute.xlu0 %3354
        %3356 = vrot.lane.b32.xlu0 %v2839, 64
        %v3357 = vpop.permute.xlu0 %3356
        %3358 = vrot.lane.b32.xlu0 %v2840, 64
        %v3359 = vpop.permute.xlu0 %3358
        %3360 = vrot.lane.b32.xlu0 %v2841, 64
        %v3361 = vpop.permute.xlu0 %3360
        %3362 = vrot.lane.b32.xlu0 %v2842, 64
        %v3363 = vpop.permute.xlu0 %3362
        %3364 = vrot.lane.b32.xlu0 %v2843, 64
        %v3365 = vpop.permute.xlu0 %3364
        %3366 = vrot.lane.b32.xlu0 %v2844, 64
        %v3367 = vpop.permute.xlu0 %3366
        %3368 = vrot.lane.b32.xlu0 %v2845, 64
        %v3369 = vpop.permute.xlu0 %3368
        %3370 = vrot.lane.b32.xlu0 %v2846, 64
        %v3371 = vpop.permute.xlu0 %3370
        %3372 = vrot.lane.b32.xlu0 %v2847, 64
        %v3373 = vpop.permute.xlu0 %3372
        %3374 = vrot.lane.b32.xlu0 %v2848, 64
        %v3375 = vpop.permute.xlu0 %3374
        %3376 = vrot.lane.b32.xlu0 %v2849, 64
        %v3377 = vpop.permute.xlu0 %3376
        %3378 = vrot.lane.b32.xlu0 %v2850, 64
        %v3379 = vpop.permute.xlu0 %3378
        %3380 = vrot.lane.b32.xlu0 %v2851, 64
        %v3381 = vpop.permute.xlu0 %3380
        %3382 = vrot.lane.b32.xlu0 %v2852, 64
        %v3383 = vpop.permute.xlu0 %3382
        %3384 = vrot.lane.b32.xlu0 %v2853, 64
        %v3385 = vpop.permute.xlu0 %3384
        %3386 = vrot.lane.b32.xlu0 %v2854, 64
        %v3387 = vpop.permute.xlu0 %3386
        %3388 = vrot.lane.b32.xlu0 %v2855, 64
        %v3389 = vpop.permute.xlu0 %3388
        %3390 = vrot.lane.b32.xlu0 %v2856, 64
        %v3391 = vpop.permute.xlu0 %3390
        %3392 = vrot.lane.b32.xlu0 %v2857, 64
        %v3393 = vpop.permute.xlu0 %3392
        %3394 = vrot.lane.b32.xlu0 %v2858, 64
        %v3395 = vpop.permute.xlu0 %3394
        %3396 = vrot.lane.b32.xlu0 %v2859, 64
        %v3397 = vpop.permute.xlu0 %3396
        %3398 = vrot.lane.b32.xlu0 %v2860, 64
        %v3399 = vpop.permute.xlu0 %3398
        %3400 = vrot.lane.b32.xlu0 %v2861, 64
        %v3401 = vpop.permute.xlu0 %3400
        %3402 = vrot.lane.b32.xlu0 %v2862, 64
        %v3403 = vpop.permute.xlu0 %3402
        %3404 = vrot.lane.b32.xlu0 %v2863, 64
        %v3405 = vpop.permute.xlu0 %3404
        %3406 = vrot.lane.b32.xlu0 %v2864, 64
        %v3407 = vpop.permute.xlu0 %3406
        %3408 = vrot.lane.b32.xlu0 %v2865, 64
        %v3409 = vpop.permute.xlu0 %3408
        %3410 = vrot.lane.b32.xlu0 %v2866, 64
        %v3411 = vpop.permute.xlu0 %3410
        %3412 = vrot.lane.b32.xlu0 %v2867, 64
        %v3413 = vpop.permute.xlu0 %3412
        %3414 = vrot.lane.b32.xlu0 %v2868, 64
        %v3415 = vpop.permute.xlu0 %3414
        %3416 = vrot.lane.b32.xlu0 %v2869, 64
        %v3417 = vpop.permute.xlu0 %3416
        %3418 = vrot.lane.b32.xlu0 %v2870, 64
        %v3419 = vpop.permute.xlu0 %3418
        %3420 = vrot.lane.b32.xlu0 %v2871, 64
        %v3421 = vpop.permute.xlu0 %3420
        %3422 = vrot.lane.b32.xlu0 %v2872, 64
        %v3423 = vpop.permute.xlu0 %3422
        %3424 = vrot.lane.b32.xlu0 %v2873, 64
        %v3425 = vpop.permute.xlu0 %3424
        %3426 = vrot.lane.b32.xlu0 %v2874, 64
        %v3427 = vpop.permute.xlu0 %3426
        %3428 = vrot.lane.b32.xlu0 %v2875, 64
        %v3429 = vpop.permute.xlu0 %3428
        %3430 = vrot.lane.b32.xlu0 %v2876, 64
        %v3431 = vpop.permute.xlu0 %3430
        %3432 = vrot.lane.b32.xlu0 %v2877, 64
        %v3433 = vpop.permute.xlu0 %3432
        %3434 = vrot.lane.b32.xlu0 %v2878, 64
        %v3435 = vpop.permute.xlu0 %3434
        %3436 = vrot.lane.b32.xlu0 %v2879, 64
        %v3437 = vpop.permute.xlu0 %3436
        %3438 = vrot.lane.b32.xlu0 %v2880, 64
        %v3439 = vpop.permute.xlu0 %3438
        %3440 = vrot.lane.b32.xlu0 %v2881, 64
        %v3441 = vpop.permute.xlu0 %3440
        %3442 = vrot.lane.b32.xlu0 %v2882, 64
        %v3443 = vpop.permute.xlu0 %3442
        %3444 = vrot.lane.b32.xlu0 %v2883, 64
        %v3445 = vpop.permute.xlu0 %3444
        %3446 = vrot.lane.b32.xlu0 %v2884, 64
        %v3447 = vpop.permute.xlu0 %3446
        %3448 = vrot.lane.b32.xlu0 %v2885, 64
        %v3449 = vpop.permute.xlu0 %3448
        %3450 = vrot.lane.b32.xlu0 %v2886, 64
        %v3451 = vpop.permute.xlu0 %3450
        %3452 = vrot.lane.b32.xlu0 %v2887, 64
        %v3453 = vpop.permute.xlu0 %3452
        %3454 = vrot.lane.b32.xlu0 %v2888, 64
        %v3455 = vpop.permute.xlu0 %3454
        %3456 = vrot.lane.b32.xlu0 %v2889, 64
        %v3457 = vpop.permute.xlu0 %3456
        %3458 = vrot.lane.b32.xlu0 %v2890, 64
        %v3459 = vpop.permute.xlu0 %3458
        %3460 = vrot.lane.b32.xlu0 %v2891, 64
        %v3461 = vpop.permute.xlu0 %3460
        %3462 = vrot.lane.b32.xlu0 %v2892, 64
        %v3463 = vpop.permute.xlu0 %3462
        %3464 = vrot.lane.b32.xlu0 %v2893, 64
        %v3465 = vpop.permute.xlu0 %3464
        %3466 = vrot.lane.b32.xlu0 %v2894, 64
        %v3467 = vpop.permute.xlu0 %3466
        %3468 = vrot.lane.b32.xlu0 %v2895, 64
        %v3469 = vpop.permute.xlu0 %3468
        %3470 = vrot.lane.b32.xlu0 %v2896, 64
        %v3471 = vpop.permute.xlu0 %3470
        %3472 = vrot.lane.b32.xlu0 %v2897, 64
        %v3473 = vpop.permute.xlu0 %3472
        %vm3538 = vcmask 523264
        %v3539 = vsel %vm3538, %v3026, %v3347
        %v3540 = vsel %vm3538, %v3027, %v3349
        %v3541 = vsel %vm3538, %v3028, %v3351
        %v3542 = vsel %vm3538, %v3029, %v3353
        %v3543 = vsel %vm3538, %v3030, %v3355
        %v3544 = vsel %vm3538, %v3031, %v3357
        %v3545 = vsel %vm3538, %v3032, %v3359
        %v3546 = vsel %vm3538, %v3033, %v3361
        %v3547 = vsel %vm3538, %v3034, %v3363
        %v3548 = vsel %vm3538, %v3035, %v3365
        %v3549 = vsel %vm3538, %v3036, %v3367
        %v3550 = vsel %vm3538, %v3037, %v3369
        %v3551 = vsel %vm3538, %v3038, %v3371
        %v3552 = vsel %vm3538, %v3039, %v3373
        %v3553 = vsel %vm3538, %v3040, %v3375
        %v3554 = vsel %vm3538, %v3041, %v3377
        %v3555 = vsel %vm3538, %v3042, %v3379
        %v3556 = vsel %vm3538, %v3043, %v3381
        %v3557 = vsel %vm3538, %v3044, %v3383
        %v3558 = vsel %vm3538, %v3045, %v3385
        %v3559 = vsel %vm3538, %v3046, %v3387
        %v3560 = vsel %vm3538, %v3047, %v3389
        %v3561 = vsel %vm3538, %v3048, %v3391
        %v3562 = vsel %vm3538, %v3049, %v3393
        %v3563 = vsel %vm3538, %v3050, %v3395
        %v3564 = vsel %vm3538, %v3051, %v3397
        %v3565 = vsel %vm3538, %v3052, %v3399
        %v3566 = vsel %vm3538, %v3053, %v3401
        %v3567 = vsel %vm3538, %v3054, %v3403
        %v3568 = vsel %vm3538, %v3055, %v3405
        %v3569 = vsel %vm3538, %v3056, %v3407
        %v3570 = vsel %vm3538, %v3057, %v3409
        %v3571 = vsel %vm3538, %v3058, %v3411
        %v3572 = vsel %vm3538, %v3059, %v3413
        %v3573 = vsel %vm3538, %v3060, %v3415
        %v3574 = vsel %vm3538, %v3061, %v3417
        %v3575 = vsel %vm3538, %v3062, %v3419
        %v3576 = vsel %vm3538, %v3063, %v3421
        %v3577 = vsel %vm3538, %v3064, %v3423
        %v3578 = vsel %vm3538, %v3065, %v3425
        %v3579 = vsel %vm3538, %v3066, %v3427
        %v3580 = vsel %vm3538, %v3067, %v3429
        %v3581 = vsel %vm3538, %v3068, %v3431
        %v3582 = vsel %vm3538, %v3069, %v3433
        %v3583 = vsel %vm3538, %v3070, %v3435
        %v3584 = vsel %vm3538, %v3071, %v3437
        %v3585 = vsel %vm3538, %v3072, %v3439
        %v3586 = vsel %vm3538, %v3073, %v3441
        %v3587 = vsel %vm3538, %v3074, %v3443
        %v3588 = vsel %vm3538, %v3075, %v3445
        %v3589 = vsel %vm3538, %v3076, %v3447
        %v3590 = vsel %vm3538, %v3077, %v3449
        %v3591 = vsel %vm3538, %v3078, %v3451
        %v3592 = vsel %vm3538, %v3079, %v3453
        %v3593 = vsel %vm3538, %v3080, %v3455
        %v3594 = vsel %vm3538, %v3081, %v3457
        %v3595 = vsel %vm3538, %v3082, %v3459
        %v3596 = vsel %vm3538, %v3083, %v3461
        %v3597 = vsel %vm3538, %v3084, %v3463
        %v3598 = vsel %vm3538, %v3085, %v3465
        %v3599 = vsel %vm3538, %v3086, %v3467
        %v3600 = vsel %vm3538, %v3087, %v3469
        %v3601 = vsel %vm3538, %v3088, %v3471
        %v3602 = vsel %vm3538, %v3089, %v3473
        %v3603 = vld [vmem:[%s4] sm:$0xff]
        %v3604 = vld [vmem:[%s4 + $0x8] sm:$0xff]
        %v3605 = vld [vmem:[%s4 + $0x10] sm:$0xff]
        %v3606 = vld [vmem:[%s4 + $0x18] sm:$0xff]
        %v3607 = vld [vmem:[%s4 + $0x20] sm:$0xff]
        %v3608 = vld [vmem:[%s4 + $0x28] sm:$0xff]
        %v3609 = vld [vmem:[%s4 + $0x30] sm:$0xff]
        %v3610 = vld [vmem:[%s4 + $0x38] sm:$0xff]
        %v3611 = vld [vmem:[%s4 + $0x40] sm:$0xff]
        %v3612 = vld [vmem:[%s4 + $0x48] sm:$0xff]
        %v3613 = vld [vmem:[%s4 + $0x50] sm:$0xff]
        %v3614 = vld [vmem:[%s4 + $0x58] sm:$0xff]
        %v3615 = vld [vmem:[%s4 + $0x60] sm:$0xff]
        %v3616 = vld [vmem:[%s4 + $0x68] sm:$0xff]
        %v3617 = vld [vmem:[%s4 + $0x70] sm:$0xff]
        %v3618 = vld [vmem:[%s4 + $0x78] sm:$0xff]
        %v3619 = vld [vmem:[%s4 + $0x80] sm:$0xff]
        %v3620 = vld [vmem:[%s4 + $0x88] sm:$0xff]
        %v3621 = vld [vmem:[%s4 + $0x90] sm:$0xff]
        %v3622 = vld [vmem:[%s4 + $0x98] sm:$0xff]
        %v3623 = vld [vmem:[%s4 + $0xa0] sm:$0xff]
        %v3624 = vld [vmem:[%s4 + $0xa8] sm:$0xff]
        %v3625 = vld [vmem:[%s4 + $0xb0] sm:$0xff]
        %v3626 = vld [vmem:[%s4 + $0xb8] sm:$0xff]
        %v3627 = vld [vmem:[%s6] sm:$0x1]
        %v3628 = vperm.slane %v3627, 0
        %v3630 = vsel %vm3538, %v3218, 0
        %v3633 = vsel %vm3538, %v3219, 0
        %v3636 = vsel %vm3538, %v3220, 0
        %v3639 = vsel %vm3538, %v3221, 0
        %v3642 = vsel %vm3538, %v3222, 0
        %v3645 = vsel %vm3538, %v3223, 0
        %v3648 = vsel %vm3538, %v3224, 0
        %v3651 = vsel %vm3538, %v3225, 0
        %v3654 = vsel %vm3538, %v3226, 0
        %v3657 = vsel %vm3538, %v3227, 0
        %v3660 = vsel %vm3538, %v3228, 0
        %v3663 = vsel %vm3538, %v3229, 0
        %v3666 = vsel %vm3538, %v3230, 0
        %v3669 = vsel %vm3538, %v3231, 0
        %v3672 = vsel %vm3538, %v3232, 0
        %v3675 = vsel %vm3538, %v3233, 0
        %v3678 = vsel %vm3538, %v3234, 0
        %v3681 = vsel %vm3538, %v3235, 0
        %v3684 = vsel %vm3538, %v3236, 0
        %v3687 = vsel %vm3538, %v3237, 0
        %v3690 = vsel %vm3538, %v3238, 0
        %v3693 = vsel %vm3538, %v3239, 0
        %v3696 = vsel %vm3538, %v3240, 0
        %v3699 = vsel %vm3538, %v3241, 0
        %v3702 = vsel %vm3538, %v3242, 0
        %v3705 = vsel %vm3538, %v3243, 0
        %v3708 = vsel %vm3538, %v3244, 0
        %v3711 = vsel %vm3538, %v3245, 0
        %v3714 = vsel %vm3538, %v3246, 0
        %v3717 = vsel %vm3538, %v3247, 0
        %v3720 = vsel %vm3538, %v3248, 0
        %v3723 = vsel %vm3538, %v3249, 0
        %v3726 = vsel %vm3538, %v3250, 0
        %v3729 = vsel %vm3538, %v3251, 0
        %v3732 = vsel %vm3538, %v3252, 0
        %v3735 = vsel %vm3538, %v3253, 0
        %v3738 = vsel %vm3538, %v3254, 0
        %v3741 = vsel %vm3538, %v3255, 0
        %v3744 = vsel %vm3538, %v3256, 0
        %v3747 = vsel %vm3538, %v3257, 0
        %v3750 = vsel %vm3538, %v3258, 0
        %v3753 = vsel %vm3538, %v3259, 0
        %v3756 = vsel %vm3538, %v3260, 0
        %v3759 = vsel %vm3538, %v3261, 0
        %v3762 = vsel %vm3538, %v3262, 0
        %v3765 = vsel %vm3538, %v3263, 0
        %v3768 = vsel %vm3538, %v3264, 0
        %v3771 = vsel %vm3538, %v3265, 0
        %v3774 = vsel %vm3538, %v3266, 0
        %v3777 = vsel %vm3538, %v3267, 0
        %v3780 = vsel %vm3538, %v3268, 0
        %v3783 = vsel %vm3538, %v3269, 0
        %v3786 = vsel %vm3538, %v3270, 0
        %v3789 = vsel %vm3538, %v3271, 0
        %v3792 = vsel %vm3538, %v3272, 0
        %v3795 = vsel %vm3538, %v3273, 0
        %v3798 = vsel %vm3538, %v3274, 0
        %v3801 = vsel %vm3538, %v3275, 0
        %v3804 = vsel %vm3538, %v3276, 0
        %v3807 = vsel %vm3538, %v3277, 0
        %v3810 = vsel %vm3538, %v3278, 0
        %v3813 = vsel %vm3538, %v3279, 0
        %v3816 = vsel %vm3538, %v3280, 0
        %v3819 = vsel %vm3538, %v3281, 0
        %3821 = vmatpush.msra.mxu0 %v3618
        %3822 = vmatpush.msra.mxu0 %v3617
        %3823 = vmatpush.msra.mxu0 %v3616
        %3824 = vmatpush.msra.mxu0 %v3615
        %3825 = vmatpush.msra.mxu0 %v3614
        %3826 = vmatpush.msra.mxu0 %v3613
        %3827 = vmatpush.msra.mxu0 %v3612
        %3828 = vmatpush.msra.mxu0 %v3611
        %3829 = vmatpush.msra.mxu0 %v3610
        %3830 = vmatpush.msra.mxu0 %v3609
        %3831 = vmatpush.msra.mxu0 %v3608
        %3832 = vmatpush.msra.mxu0 %v3607
        %3833 = vmatpush.msra.mxu0 %v3606
        %3834 = vmatpush.msra.mxu0 %v3605
        %3835 = vmatpush.msra.mxu0 %v3604
        %3836 = vmatpush.msra.mxu0 %v3603
        %3837 = vmatmul.f32.gmra.mxu0 %v3539
        %v3838 = vpop.f32.mrf.mxu0
        %v3839 = vadd.f32 %v3628, %v3838
        %3840 = vmatmul.f32.gmra.mxu0 %v3540
        %v3841 = vpop.f32.mrf.mxu0
        %v3842 = vadd.f32 %v3628, %v3841
        %3843 = vmatmul.f32.gmra.mxu0 %v3541
        %v3844 = vpop.f32.mrf.mxu0
        %v3845 = vadd.f32 %v3628, %v3844
        %3846 = vmatmul.f32.gmra.mxu0 %v3542
        %v3847 = vpop.f32.mrf.mxu0
        %v3848 = vadd.f32 %v3628, %v3847
        %3849 = vmatmul.f32.gmra.mxu0 %v3543
        %v3850 = vpop.f32.mrf.mxu0
        %v3851 = vadd.f32 %v3628, %v3850
        %3852 = vmatmul.f32.gmra.mxu0 %v3544
        %v3853 = vpop.f32.mrf.mxu0
        %v3854 = vadd.f32 %v3628, %v3853
        %3855 = vmatmul.f32.gmra.mxu0 %v3545
        %v3856 = vpop.f32.mrf.mxu0
        %v3857 = vadd.f32 %v3628, %v3856
        %3858 = vmatmul.f32.gmra.mxu0 %v3546
        %v3859 = vpop.f32.mrf.mxu0
        %v3860 = vadd.f32 %v3628, %v3859
        %3861 = vmatmul.f32.gmra.mxu0 %v3547
        %v3862 = vpop.f32.mrf.mxu0
        %v3863 = vadd.f32 %v3628, %v3862
        %3864 = vmatmul.f32.gmra.mxu0 %v3548
        %v3865 = vpop.f32.mrf.mxu0
        %v3866 = vadd.f32 %v3628, %v3865
        %3867 = vmatmul.f32.gmra.mxu0 %v3549
        %v3868 = vpop.f32.mrf.mxu0
        %v3869 = vadd.f32 %v3628, %v3868
        %3870 = vmatmul.f32.gmra.mxu0 %v3550
        %v3871 = vpop.f32.mrf.mxu0
        %v3872 = vadd.f32 %v3628, %v3871
        %3873 = vmatmul.f32.gmra.mxu0 %v3551
        %v3874 = vpop.f32.mrf.mxu0
        %v3875 = vadd.f32 %v3628, %v3874
        %3876 = vmatmul.f32.gmra.mxu0 %v3552
        %v3877 = vpop.f32.mrf.mxu0
        %v3878 = vadd.f32 %v3628, %v3877
        %3879 = vmatmul.f32.gmra.mxu0 %v3553
        %v3880 = vpop.f32.mrf.mxu0
        %v3881 = vadd.f32 %v3628, %v3880
        %3882 = vmatmul.f32.gmra.mxu0 %v3554
        %v3883 = vpop.f32.mrf.mxu0
        %v3884 = vadd.f32 %v3628, %v3883
        %3885 = vmatmul.f32.gmra.mxu0 %v3555
        %v3886 = vpop.f32.mrf.mxu0
        %v3887 = vadd.f32 %v3628, %v3886
        %3888 = vmatmul.f32.gmra.mxu0 %v3556
        %v3889 = vpop.f32.mrf.mxu0
        %v3890 = vadd.f32 %v3628, %v3889
        %3891 = vmatmul.f32.gmra.mxu0 %v3557
        %v3892 = vpop.f32.mrf.mxu0
        %v3893 = vadd.f32 %v3628, %v3892
        %3894 = vmatmul.f32.gmra.mxu0 %v3558
        %v3895 = vpop.f32.mrf.mxu0
        %v3896 = vadd.f32 %v3628, %v3895
        %3897 = vmatmul.f32.gmra.mxu0 %v3559
        %v3898 = vpop.f32.mrf.mxu0
        %v3899 = vadd.f32 %v3628, %v3898
        %3900 = vmatmul.f32.gmra.mxu0 %v3560
        %v3901 = vpop.f32.mrf.mxu0
        %v3902 = vadd.f32 %v3628, %v3901
        %3903 = vmatmul.f32.gmra.mxu0 %v3561
        %v3904 = vpop.f32.mrf.mxu0
        %v3905 = vadd.f32 %v3628, %v3904
        %3906 = vmatmul.f32.gmra.mxu0 %v3562
        %v3907 = vpop.f32.mrf.mxu0
        %v3908 = vadd.f32 %v3628, %v3907
        %3909 = vmatmul.f32.gmra.mxu0 %v3563
        %v3910 = vpop.f32.mrf.mxu0
        %v3911 = vadd.f32 %v3628, %v3910
        %3912 = vmatmul.f32.gmra.mxu0 %v3564
        %v3913 = vpop.f32.mrf.mxu0
        %v3914 = vadd.f32 %v3628, %v3913
        %3915 = vmatmul.f32.gmra.mxu0 %v3565
        %v3916 = vpop.f32.mrf.mxu0
        %v3917 = vadd.f32 %v3628, %v3916
        %3918 = vmatmul.f32.gmra.mxu0 %v3566
        %v3919 = vpop.f32.mrf.mxu0
        %v3920 = vadd.f32 %v3628, %v3919
        %3921 = vmatmul.f32.gmra.mxu0 %v3567
        %v3922 = vpop.f32.mrf.mxu0
        %v3923 = vadd.f32 %v3628, %v3922
        %3924 = vmatmul.f32.gmra.mxu0 %v3568
        %v3925 = vpop.f32.mrf.mxu0
        %v3926 = vadd.f32 %v3628, %v3925
        %3927 = vmatmul.f32.gmra.mxu0 %v3569
        %v3928 = vpop.f32.mrf.mxu0
        %v3929 = vadd.f32 %v3628, %v3928
        %3930 = vmatmul.f32.gmra.mxu0 %v3570
        %v3931 = vpop.f32.mrf.mxu0
        %v3932 = vadd.f32 %v3628, %v3931
        %3933 = vmatmul.f32.gmra.mxu0 %v3571
        %v3934 = vpop.f32.mrf.mxu0
        %v3935 = vadd.f32 %v3628, %v3934
        %3936 = vmatmul.f32.gmra.mxu0 %v3572
        %v3937 = vpop.f32.mrf.mxu0
        %v3938 = vadd.f32 %v3628, %v3937
        %3939 = vmatmul.f32.gmra.mxu0 %v3573
        %v3940 = vpop.f32.mrf.mxu0
        %v3941 = vadd.f32 %v3628, %v3940
        %3942 = vmatmul.f32.gmra.mxu0 %v3574
        %v3943 = vpop.f32.mrf.mxu0
        %v3944 = vadd.f32 %v3628, %v3943
        %3945 = vmatmul.f32.gmra.mxu0 %v3575
        %v3946 = vpop.f32.mrf.mxu0
        %v3947 = vadd.f32 %v3628, %v3946
        %3948 = vmatmul.f32.gmra.mxu0 %v3576
        %v3949 = vpop.f32.mrf.mxu0
        %v3950 = vadd.f32 %v3628, %v3949
        %3951 = vmatmul.f32.gmra.mxu0 %v3577
        %v3952 = vpop.f32.mrf.mxu0
        %v3953 = vadd.f32 %v3628, %v3952
        %3954 = vmatmul.f32.gmra.mxu0 %v3578
        %v3955 = vpop.f32.mrf.mxu0
        %v3956 = vadd.f32 %v3628, %v3955
        %3957 = vmatmul.f32.gmra.mxu0 %v3579
        %v3958 = vpop.f32.mrf.mxu0
        %v3959 = vadd.f32 %v3628, %v3958
        %3960 = vmatmul.f32.gmra.mxu0 %v3580
        %v3961 = vpop.f32.mrf.mxu0
        %v3962 = vadd.f32 %v3628, %v3961
        %3963 = vmatmul.f32.gmra.mxu0 %v3581
        %v3964 = vpop.f32.mrf.mxu0
        %v3965 = vadd.f32 %v3628, %v3964
        %3966 = vmatmul.f32.gmra.mxu0 %v3582
        %v3967 = vpop.f32.mrf.mxu0
        %v3968 = vadd.f32 %v3628, %v3967
        %3969 = vmatmul.f32.gmra.mxu0 %v3583
        %v3970 = vpop.f32.mrf.mxu0
        %v3971 = vadd.f32 %v3628, %v3970
        %3972 = vmatmul.f32.gmra.mxu0 %v3584
        %v3973 = vpop.f32.mrf.mxu0
        %v3974 = vadd.f32 %v3628, %v3973
        %3975 = vmatmul.f32.gmra.mxu0 %v3585
        %v3976 = vpop.f32.mrf.mxu0
        %v3977 = vadd.f32 %v3628, %v3976
        %3978 = vmatmul.f32.gmra.mxu0 %v3586
        %v3979 = vpop.f32.mrf.mxu0
        %v3980 = vadd.f32 %v3628, %v3979
        %3981 = vmatmul.f32.gmra.mxu0 %v3587
        %v3982 = vpop.f32.mrf.mxu0
        %v3983 = vadd.f32 %v3628, %v3982
        %3984 = vmatmul.f32.gmra.mxu0 %v3588
        %v3985 = vpop.f32.mrf.mxu0
        %v3986 = vadd.f32 %v3628, %v3985
        %3987 = vmatmul.f32.gmra.mxu0 %v3589
        %v3988 = vpop.f32.mrf.mxu0
        %v3989 = vadd.f32 %v3628, %v3988
        %3990 = vmatmul.f32.gmra.mxu0 %v3590
        %v3991 = vpop.f32.mrf.mxu0
        %v3992 = vadd.f32 %v3628, %v3991
        %3993 = vmatmul.f32.gmra.mxu0 %v3591
        %v3994 = vpop.f32.mrf.mxu0
        %v3995 = vadd.f32 %v3628, %v3994
        %3996 = vmatmul.f32.gmra.mxu0 %v3592
        %v3997 = vpop.f32.mrf.mxu0
        %v3998 = vadd.f32 %v3628, %v3997
        %3999 = vmatmul.f32.gmra.mxu0 %v3593
        %v4000 = vpop.f32.mrf.mxu0
        %v4001 = vadd.f32 %v3628, %v4000
        %4002 = vmatmul.f32.gmra.mxu0 %v3594
        %v4003 = vpop.f32.mrf.mxu0
        %v4004 = vadd.f32 %v3628, %v4003
        %4005 = vmatmul.f32.gmra.mxu0 %v3595
        %v4006 = vpop.f32.mrf.mxu0
        %v4007 = vadd.f32 %v3628, %v4006
        %4008 = vmatmul.f32.gmra.mxu0 %v3596
        %v4009 = vpop.f32.mrf.mxu0
        %v4010 = vadd.f32 %v3628, %v4009
        %4011 = vmatmul.f32.gmra.mxu0 %v3597
        %v4012 = vpop.f32.mrf.mxu0
        %v4013 = vadd.f32 %v3628, %v4012
        %4014 = vmatmul.f32.gmra.mxu0 %v3598
        %v4015 = vpop.f32.mrf.mxu0
        %v4016 = vadd.f32 %v3628, %v4015
        %4017 = vmatmul.f32.gmra.mxu0 %v3599
        %v4018 = vpop.f32.mrf.mxu0
        %v4019 = vadd.f32 %v3628, %v4018
        %4020 = vmatmul.f32.gmra.mxu0 %v3600
        %v4021 = vpop.f32.mrf.mxu0
        %v4022 = vadd.f32 %v3628, %v4021
        %4023 = vmatmul.f32.gmra.mxu0 %v3601
        %v4024 = vpop.f32.mrf.mxu0
        %v4025 = vadd.f32 %v3628, %v4024
        %4026 = vmatmul.f32.gmra.mxu0 %v3602
        %v4027 = vpop.f32.mrf.mxu0
        %v4028 = vadd.f32 %v3628, %v4027
        %4029 = vdwg.mxu0
        %4030 = vmatpush.msra.mxu0 0.0
        %4031 = vmatpush.msra.mxu0 0.0
        %4032 = vmatpush.msra.mxu0 0.0
        %4033 = vmatpush.msra.mxu0 0.0
        %4034 = vmatpush.msra.mxu0 0.0
        %4035 = vmatpush.msra.mxu0 0.0
        %4036 = vmatpush.msra.mxu0 0.0
        %4037 = vmatpush.msra.mxu0 0.0
        %4038 = vmatpush.msra.mxu0 %v3626
        %4039 = vmatpush.msra.mxu0 %v3625
        %4040 = vmatpush.msra.mxu0 %v3624
        %4041 = vmatpush.msra.mxu0 %v3623
        %4042 = vmatpush.msra.mxu0 %v3622
        %4043 = vmatpush.msra.mxu0 %v3621
        %4044 = vmatpush.msra.mxu0 %v3620
        %4045 = vmatpush.msra.mxu0 %v3619
        %4046 = vmatmul.f32.gmra.mxu0 %v3630
        %v4047 = vpop.f32.mrf.mxu0
        %v4048 = vadd.f32 %v3839, %v4047
        %4049 = vmatmul.f32.gmra.mxu0 %v3633
        %v4050 = vpop.f32.mrf.mxu0
        %v4051 = vadd.f32 %v3842, %v4050
        %4052 = vmatmul.f32.gmra.mxu0 %v3636
        %v4053 = vpop.f32.mrf.mxu0
        %v4054 = vadd.f32 %v3845, %v4053
        %4055 = vmatmul.f32.gmra.mxu0 %v3639
        %v4056 = vpop.f32.mrf.mxu0
        %v4057 = vadd.f32 %v3848, %v4056
        %4058 = vmatmul.f32.gmra.mxu0 %v3642
        %v4059 = vpop.f32.mrf.mxu0
        %v4060 = vadd.f32 %v3851, %v4059
        %4061 = vmatmul.f32.gmra.mxu0 %v3645
        %v4062 = vpop.f32.mrf.mxu0
        %v4063 = vadd.f32 %v3854, %v4062
        %4064 = vmatmul.f32.gmra.mxu0 %v3648
        %v4065 = vpop.f32.mrf.mxu0
        %v4066 = vadd.f32 %v3857, %v4065
        %4067 = vmatmul.f32.gmra.mxu0 %v3651
        %v4068 = vpop.f32.mrf.mxu0
        %v4069 = vadd.f32 %v3860, %v4068
        %4070 = vmatmul.f32.gmra.mxu0 %v3654
        %v4071 = vpop.f32.mrf.mxu0
        %v4072 = vadd.f32 %v3863, %v4071
        %4073 = vmatmul.f32.gmra.mxu0 %v3657
        %v4074 = vpop.f32.mrf.mxu0
        %v4075 = vadd.f32 %v3866, %v4074
        %4076 = vmatmul.f32.gmra.mxu0 %v3660
        %v4077 = vpop.f32.mrf.mxu0
        %v4078 = vadd.f32 %v3869, %v4077
        %4079 = vmatmul.f32.gmra.mxu0 %v3663
        %v4080 = vpop.f32.mrf.mxu0
        %v4081 = vadd.f32 %v3872, %v4080
        %4082 = vmatmul.f32.gmra.mxu0 %v3666
        %v4083 = vpop.f32.mrf.mxu0
        %v4084 = vadd.f32 %v3875, %v4083
        %4085 = vmatmul.f32.gmra.mxu0 %v3669
        %v4086 = vpop.f32.mrf.mxu0
        %v4087 = vadd.f32 %v3878, %v4086
        %4088 = vmatmul.f32.gmra.mxu0 %v3672
        %v4089 = vpop.f32.mrf.mxu0
        %v4090 = vadd.f32 %v3881, %v4089
        %4091 = vmatmul.f32.gmra.mxu0 %v3675
        %v4092 = vpop.f32.mrf.mxu0
        %v4093 = vadd.f32 %v3884, %v4092
        %4094 = vmatmul.f32.gmra.mxu0 %v3678
        %v4095 = vpop.f32.mrf.mxu0
        %v4096 = vadd.f32 %v3887, %v4095
        %4097 = vmatmul.f32.gmra.mxu0 %v3681
        %v4098 = vpop.f32.mrf.mxu0
        %v4099 = vadd.f32 %v3890, %v4098
        %4100 = vmatmul.f32.gmra.mxu0 %v3684
        %v4101 = vpop.f32.mrf.mxu0
        %v4102 = vadd.f32 %v3893, %v4101
        %4103 = vmatmul.f32.gmra.mxu0 %v3687
        %v4104 = vpop.f32.mrf.mxu0
        %v4105 = vadd.f32 %v3896, %v4104
        %4106 = vmatmul.f32.gmra.mxu0 %v3690
        %v4107 = vpop.f32.mrf.mxu0
        %v4108 = vadd.f32 %v3899, %v4107
        %4109 = vmatmul.f32.gmra.mxu0 %v3693
        %v4110 = vpop.f32.mrf.mxu0
        %v4111 = vadd.f32 %v3902, %v4110
        %4112 = vmatmul.f32.gmra.mxu0 %v3696
        %v4113 = vpop.f32.mrf.mxu0
        %v4114 = vadd.f32 %v3905, %v4113
        %4115 = vmatmul.f32.gmra.mxu0 %v3699
        %v4116 = vpop.f32.mrf.mxu0
        %v4117 = vadd.f32 %v3908, %v4116
        %4118 = vmatmul.f32.gmra.mxu0 %v3702
        %v4119 = vpop.f32.mrf.mxu0
        %v4120 = vadd.f32 %v3911, %v4119
        %4121 = vmatmul.f32.gmra.mxu0 %v3705
        %v4122 = vpop.f32.mrf.mxu0
        %v4123 = vadd.f32 %v3914, %v4122
        %4124 = vmatmul.f32.gmra.mxu0 %v3708
        %v4125 = vpop.f32.mrf.mxu0
        %v4126 = vadd.f32 %v3917, %v4125
        %4127 = vmatmul.f32.gmra.mxu0 %v3711
        %v4128 = vpop.f32.mrf.mxu0
        %v4129 = vadd.f32 %v3920, %v4128
        %4130 = vmatmul.f32.gmra.mxu0 %v3714
        %v4131 = vpop.f32.mrf.mxu0
        %v4132 = vadd.f32 %v3923, %v4131
        %4133 = vmatmul.f32.gmra.mxu0 %v3717
        %v4134 = vpop.f32.mrf.mxu0
        %v4135 = vadd.f32 %v3926, %v4134
        %4136 = vmatmul.f32.gmra.mxu0 %v3720
        %v4137 = vpop.f32.mrf.mxu0
        %v4138 = vadd.f32 %v3929, %v4137
        %4139 = vmatmul.f32.gmra.mxu0 %v3723
        %v4140 = vpop.f32.mrf.mxu0
        %v4141 = vadd.f32 %v3932, %v4140
        %4142 = vmatmul.f32.gmra.mxu0 %v3726
        %v4143 = vpop.f32.mrf.mxu0
        %v4144 = vadd.f32 %v3935, %v4143
        %4145 = vmatmul.f32.gmra.mxu0 %v3729
        %v4146 = vpop.f32.mrf.mxu0
        %v4147 = vadd.f32 %v3938, %v4146
        %4148 = vmatmul.f32.gmra.mxu0 %v3732
        %v4149 = vpop.f32.mrf.mxu0
        %v4150 = vadd.f32 %v3941, %v4149
        %4151 = vmatmul.f32.gmra.mxu0 %v3735
        %v4152 = vpop.f32.mrf.mxu0
        %v4153 = vadd.f32 %v3944, %v4152
        %4154 = vmatmul.f32.gmra.mxu0 %v3738
        %v4155 = vpop.f32.mrf.mxu0
        %v4156 = vadd.f32 %v3947, %v4155
        %4157 = vmatmul.f32.gmra.mxu0 %v3741
        %v4158 = vpop.f32.mrf.mxu0
        %v4159 = vadd.f32 %v3950, %v4158
        %4160 = vmatmul.f32.gmra.mxu0 %v3744
        %v4161 = vpop.f32.mrf.mxu0
        %v4162 = vadd.f32 %v3953, %v4161
        %4163 = vmatmul.f32.gmra.mxu0 %v3747
        %v4164 = vpop.f32.mrf.mxu0
        %v4165 = vadd.f32 %v3956, %v4164
        %4166 = vmatmul.f32.gmra.mxu0 %v3750
        %v4167 = vpop.f32.mrf.mxu0
        %v4168 = vadd.f32 %v3959, %v4167
        %4169 = vmatmul.f32.gmra.mxu0 %v3753
        %v4170 = vpop.f32.mrf.mxu0
        %v4171 = vadd.f32 %v3962, %v4170
        %4172 = vmatmul.f32.gmra.mxu0 %v3756
        %v4173 = vpop.f32.mrf.mxu0
        %v4174 = vadd.f32 %v3965, %v4173
        %4175 = vmatmul.f32.gmra.mxu0 %v3759
        %v4176 = vpop.f32.mrf.mxu0
        %v4177 = vadd.f32 %v3968, %v4176
        %4178 = vmatmul.f32.gmra.mxu0 %v3762
        %v4179 = vpop.f32.mrf.mxu0
        %v4180 = vadd.f32 %v3971, %v4179
        %4181 = vmatmul.f32.gmra.mxu0 %v3765
        %v4182 = vpop.f32.mrf.mxu0
        %v4183 = vadd.f32 %v3974, %v4182
        %4184 = vmatmul.f32.gmra.mxu0 %v3768
        %v4185 = vpop.f32.mrf.mxu0
        %v4186 = vadd.f32 %v3977, %v4185
        %4187 = vmatmul.f32.gmra.mxu0 %v3771
        %v4188 = vpop.f32.mrf.mxu0
        %v4189 = vadd.f32 %v3980, %v4188
        %4190 = vmatmul.f32.gmra.mxu0 %v3774
        %v4191 = vpop.f32.mrf.mxu0
        %v4192 = vadd.f32 %v3983, %v4191
        %4193 = vmatmul.f32.gmra.mxu0 %v3777
        %v4194 = vpop.f32.mrf.mxu0
        %v4195 = vadd.f32 %v3986, %v4194
        %4196 = vmatmul.f32.gmra.mxu0 %v3780
        %v4197 = vpop.f32.mrf.mxu0
        %v4198 = vadd.f32 %v3989, %v4197
        %4199 = vmatmul.f32.gmra.mxu0 %v3783
        %v4200 = vpop.f32.mrf.mxu0
        %v4201 = vadd.f32 %v3992, %v4200
        %4202 = vmatmul.f32.gmra.mxu0 %v3786
        %v4203 = vpop.f32.mrf.mxu0
        %v4204 = vadd.f32 %v3995, %v4203
        %4205 = vmatmul.f32.gmra.mxu0 %v3789
        %v4206 = vpop.f32.mrf.mxu0
        %v4207 = vadd.f32 %v3998, %v4206
        %4208 = vmatmul.f32.gmra.mxu0 %v3792
        %v4209 = vpop.f32.mrf.mxu0
        %v4210 = vadd.f32 %v4001, %v4209
        %4211 = vmatmul.f32.gmra.mxu0 %v3795
        %v4212 = vpop.f32.mrf.mxu0
        %v4213 = vadd.f32 %v4004, %v4212
        %4214 = vmatmul.f32.gmra.mxu0 %v3798
        %v4215 = vpop.f32.mrf.mxu0
        %v4216 = vadd.f32 %v4007, %v4215
        %4217 = vmatmul.f32.gmra.mxu0 %v3801
        %v4218 = vpop.f32.mrf.mxu0
        %v4219 = vadd.f32 %v4010, %v4218
        %4220 = vmatmul.f32.gmra.mxu0 %v3804
        %v4221 = vpop.f32.mrf.mxu0
        %v4222 = vadd.f32 %v4013, %v4221
        %4223 = vmatmul.f32.gmra.mxu0 %v3807
        %v4224 = vpop.f32.mrf.mxu0
        %v4225 = vadd.f32 %v4016, %v4224
        %4226 = vmatmul.f32.gmra.mxu0 %v3810
        %v4227 = vpop.f32.mrf.mxu0
        %v4228 = vadd.f32 %v4019, %v4227
        %4229 = vmatmul.f32.gmra.mxu0 %v3813
        %v4230 = vpop.f32.mrf.mxu0
        %v4231 = vadd.f32 %v4022, %v4230
        %4232 = vmatmul.f32.gmra.mxu0 %v3816
        %v4233 = vpop.f32.mrf.mxu0
        %v4234 = vadd.f32 %v4025, %v4233
        %4235 = vmatmul.f32.gmra.mxu0 %v3819
        %v4236 = vpop.f32.mrf.mxu0
        %v4237 = vadd.f32 %v4028, %v4236
        %4238 = vdwg.mxu0
        %v4239 = vld [vmem:[%s5] sm:$0xff]
        %v4240 = vld [vmem:[%s5 + $0x8] sm:$0xff]
        %v4241 = vld [vmem:[%s5 + $0x10] sm:$0xff]
        %v4242 = vld [vmem:[%s5 + $0x18] sm:$0xff]
        %v4243 = vld [vmem:[%s5 + $0x20] sm:$0xff]
        %v4244 = vld [vmem:[%s5 + $0x28] sm:$0xff]
        %v4245 = vld [vmem:[%s5 + $0x30] sm:$0xff]
        %v4246 = vld [vmem:[%s5 + $0x38] sm:$0xff]
        %v4247 = vld [vmem:[%s5 + $0x40] sm:$0xff]
        %v4248 = vld [vmem:[%s5 + $0x48] sm:$0xff]
        %v4249 = vld [vmem:[%s5 + $0x50] sm:$0xff]
        %v4250 = vld [vmem:[%s5 + $0x58] sm:$0xff]
        %v4251 = vld [vmem:[%s5 + $0x60] sm:$0xff]
        %v4252 = vld [vmem:[%s5 + $0x68] sm:$0xff]
        %v4253 = vld [vmem:[%s5 + $0x70] sm:$0xff]
        %v4254 = vld [vmem:[%s5 + $0x78] sm:$0xff]
        %4255 = vmatpush.msra.mxu0 %v4093
        %4256 = vmatpush.msra.mxu0 %v4090
        %4257 = vmatpush.msra.mxu0 %v4087
        %4258 = vmatpush.msra.mxu0 %v4084
        %4259 = vmatpush.msra.mxu0 %v4081
        %4260 = vmatpush.msra.mxu0 %v4078
        %4261 = vmatpush.msra.mxu0 %v4075
        %4262 = vmatpush.msra.mxu0 %v4072
        %4263 = vmatpush.msra.mxu0 %v4069
        %4264 = vmatpush.msra.mxu0 %v4066
        %4265 = vmatpush.msra.mxu0 %v4063
        %4266 = vmatpush.msra.mxu0 %v4060
        %4267 = vmatpush.msra.mxu0 %v4057
        %4268 = vmatpush.msra.mxu0 %v4054
        %4269 = vmatpush.msra.mxu0 %v4051
        %4270 = vmatpush.msra.mxu0 %v4048
        %4271 = vmatmul.f32.gmra.mxu0 %v4239
        %v4272 = vpop.f32.mrf.mxu0
        %v4273 = vadd.f32 0.0, %v4272
        %4274 = vmatmul.f32.gmra.mxu0 %v4243
        %v4275 = vpop.f32.mrf.mxu0
        %v4276 = vadd.f32 0.0, %v4275
        %4277 = vmatmul.f32.gmra.mxu0 %v4247
        %v4278 = vpop.f32.mrf.mxu0
        %v4279 = vadd.f32 0.0, %v4278
        %4280 = vmatmul.f32.gmra.mxu0 %v4251
        %v4281 = vpop.f32.mrf.mxu0
        %v4282 = vadd.f32 0.0, %v4281
        %4283 = vdwg.mxu0
        %4284 = vmatpush.msra.mxu0 %v4141
        %4285 = vmatpush.msra.mxu0 %v4138
        %4286 = vmatpush.msra.mxu0 %v4135
        %4287 = vmatpush.msra.mxu0 %v4132
        %4288 = vmatpush.msra.mxu0 %v4129
        %4289 = vmatpush.msra.mxu0 %v4126
        %4290 = vmatpush.msra.mxu0 %v4123
        %4291 = vmatpush.msra.mxu0 %v4120
        %4292 = vmatpush.msra.mxu0 %v4117
        %4293 = vmatpush.msra.mxu0 %v4114
        %4294 = vmatpush.msra.mxu0 %v4111
        %4295 = vmatpush.msra.mxu0 %v4108
        %4296 = vmatpush.msra.mxu0 %v4105
        %4297 = vmatpush.msra.mxu0 %v4102
        %4298 = vmatpush.msra.mxu0 %v4099
        %4299 = vmatpush.msra.mxu0 %v4096
        %4300 = vmatmul.f32.gmra.mxu0 %v4240
        %v4301 = vpop.f32.mrf.mxu0
        %v4302 = vadd.f32 %v4273, %v4301
        %4303 = vmatmul.f32.gmra.mxu0 %v4244
        %v4304 = vpop.f32.mrf.mxu0
        %v4305 = vadd.f32 %v4276, %v4304
        %4306 = vmatmul.f32.gmra.mxu0 %v4248
        %v4307 = vpop.f32.mrf.mxu0
        %v4308 = vadd.f32 %v4279, %v4307
        %4309 = vmatmul.f32.gmra.mxu0 %v4252
        %v4310 = vpop.f32.mrf.mxu0
        %v4311 = vadd.f32 %v4282, %v4310
        %4312 = vdwg.mxu0
        %4313 = vmatpush.msra.mxu0 %v4189
        %4314 = vmatpush.msra.mxu0 %v4186
        %4315 = vmatpush.msra.mxu0 %v4183
        %4316 = vmatpush.msra.mxu0 %v4180
        %4317 = vmatpush.msra.mxu0 %v4177
        %4318 = vmatpush.msra.mxu0 %v4174
        %4319 = vmatpush.msra.mxu0 %v4171
        %4320 = vmatpush.msra.mxu0 %v4168
        %4321 = vmatpush.msra.mxu0 %v4165
        %4322 = vmatpush.msra.mxu0 %v4162
        %4323 = vmatpush.msra.mxu0 %v4159
        %4324 = vmatpush.msra.mxu0 %v4156
        %4325 = vmatpush.msra.mxu0 %v4153
        %4326 = vmatpush.msra.mxu0 %v4150
        %4327 = vmatpush.msra.mxu0 %v4147
        %4328 = vmatpush.msra.mxu0 %v4144
        %4329 = vmatmul.f32.gmra.mxu0 %v4241
        %v4330 = vpop.f32.mrf.mxu0
        %v4331 = vadd.f32 %v4302, %v4330
        %4332 = vmatmul.f32.gmra.mxu0 %v4245
        %v4333 = vpop.f32.mrf.mxu0
        %v4334 = vadd.f32 %v4305, %v4333
        %4335 = vmatmul.f32.gmra.mxu0 %v4249
        %v4336 = vpop.f32.mrf.mxu0
        %v4337 = vadd.f32 %v4308, %v4336
        %4338 = vmatmul.f32.gmra.mxu0 %v4253
        %v4339 = vpop.f32.mrf.mxu0
        %v4340 = vadd.f32 %v4311, %v4339
        %4341 = vdwg.mxu0
        %4342 = vmatpush.msra.mxu0 %v4237
        %4343 = vmatpush.msra.mxu0 %v4234
        %4344 = vmatpush.msra.mxu0 %v4231
        %4345 = vmatpush.msra.mxu0 %v4228
        %4346 = vmatpush.msra.mxu0 %v4225
        %4347 = vmatpush.msra.mxu0 %v4222
        %4348 = vmatpush.msra.mxu0 %v4219
        %4349 = vmatpush.msra.mxu0 %v4216
        %4350 = vmatpush.msra.mxu0 %v4213
        %4351 = vmatpush.msra.mxu0 %v4210
        %4352 = vmatpush.msra.mxu0 %v4207
        %4353 = vmatpush.msra.mxu0 %v4204
        %4354 = vmatpush.msra.mxu0 %v4201
        %4355 = vmatpush.msra.mxu0 %v4198
        %4356 = vmatpush.msra.mxu0 %v4195
        %4357 = vmatpush.msra.mxu0 %v4192
        %4358 = vmatmul.f32.gmra.mxu0 %v4242
        %v4359 = vpop.f32.mrf.mxu0
        %v4360 = vadd.f32 %v4331, %v4359
        %4361 = vmatmul.f32.gmra.mxu0 %v4246
        %v4362 = vpop.f32.mrf.mxu0
        %v4363 = vadd.f32 %v4334, %v4362
        %4364 = vmatmul.f32.gmra.mxu0 %v4250
        %v4365 = vpop.f32.mrf.mxu0
        %v4366 = vadd.f32 %v4337, %v4365
        %4367 = vmatmul.f32.gmra.mxu0 %v4254
        %v4368 = vpop.f32.mrf.mxu0
        %v4369 = vadd.f32 %v4340, %v4368
        %4370 = vdwg.mxu0
        %v4371 = vld [vmem:[%s6 + $0x1] sm:$0x1]
        %v4372 = vperm.slane %v4371, 0
        %v4373 = vmul.f32 %v4360, %v4372
        %v4374 = vmul.f32 %v4363, %v4372
        %v4375 = vmul.f32 %v4366, %v4372
        %v4376 = vmul.f32 %v4369, %v4372
        %4377 = vadd.xlane.f32.xlu0 %v4373
        %v4378 = vpop.xlane.xlu0 %4377
        %4379 = vadd.xlane.f32.xlu0 %v4374
        %v4380 = vpop.xlane.xlu0 %4379
        %4381 = vadd.xlane.f32.xlu0 %v4375
        %v4382 = vpop.xlane.xlu0 %4381
        %4383 = vadd.xlane.f32.xlu0 %v4376
        %v4384 = vpop.xlane.xlu0 %4383
        %v4385 = vrot.slane %v4378, 4
        %v4386 = vmax.f32 %v4378, %v4385
        %v4387 = vrot.slane %v4386, 2
        %v4388 = vmax.f32 %v4386, %v4387
        %v4389 = vrot.slane %v4388, 1
        %v4390 = vmax.f32 %v4388, %v4389
        %v4391 = vrot.slane %v4380, 4
        %v4392 = vmax.f32 %v4380, %v4391
        %v4393 = vrot.slane %v4392, 2
        %v4394 = vmax.f32 %v4392, %v4393
        %v4395 = vrot.slane %v4394, 1
        %v4396 = vmax.f32 %v4394, %v4395
        %v4397 = vrot.slane %v4382, 4
        %v4398 = vmax.f32 %v4382, %v4397
        %v4399 = vrot.slane %v4398, 2
        %v4400 = vmax.f32 %v4398, %v4399
        %v4401 = vrot.slane %v4400, 1
        %v4402 = vmax.f32 %v4400, %v4401
        %v4403 = vrot.slane %v4384, 4
        %v4404 = vmax.f32 %v4384, %v4403
        %v4405 = vrot.slane %v4404, 2
        %v4406 = vmax.f32 %v4404, %v4405
        %v4407 = vrot.slane %v4406, 1
        %v4408 = vmax.f32 %v4406, %v4407
        %v4409 = vsub.f32 %v4378, %v4390
        %v4410 = vsub.f32 %v4380, %v4396
        %v4411 = vsub.f32 %v4382, %v4402
        %v4412 = vsub.f32 %v4384, %v4408
        %v4413 = vmul.f32 %v4409, 1.442695
        %v4414 = vpow.pop %v4413
        %v4415 = vmul.f32 %v4410, 1.442695
        %v4416 = vpow.pop %v4415
        %v4417 = vmul.f32 %v4411, 1.442695
        %v4418 = vpow.pop %v4417
        %v4419 = vmul.f32 %v4412, 1.442695
        %v4420 = vpow.pop %v4419
        %v4421 = vrot.slane %v4414, 4
        %v4422 = vadd.f32 %v4414, %v4421
        %v4423 = vrot.slane %v4422, 2
        %v4424 = vadd.f32 %v4422, %v4423
        %v4425 = vrot.slane %v4424, 1
        %v4426 = vadd.f32 %v4424, %v4425
        %v4427 = vrot.slane %v4416, 4
        %v4428 = vadd.f32 %v4416, %v4427
        %v4429 = vrot.slane %v4428, 2
        %v4430 = vadd.f32 %v4428, %v4429
        %v4431 = vrot.slane %v4430, 1
        %v4432 = vadd.f32 %v4430, %v4431
        %v4433 = vrot.slane %v4418, 4
        %v4434 = vadd.f32 %v4418, %v4433
        %v4435 = vrot.slane %v4434, 2
        %v4436 = vadd.f32 %v4434, %v4435
        %v4437 = vrot.slane %v4436, 1
        %v4438 = vadd.f32 %v4436, %v4437
        %v4439 = vrot.slane %v4420, 4
        %v4440 = vadd.f32 %v4420, %v4439
        %v4441 = vrot.slane %v4440, 2
        %v4442 = vadd.f32 %v4440, %v4441
        %v4443 = vrot.slane %v4442, 1
        %v4444 = vadd.f32 %v4442, %v4443
        %v4445 = vrcp.pop %v4426
        %v4446 = vmul.f32 %v4426, %v4445
        %v4447 = vsub.f32 1.0, %v4446
        %v4448 = vmul.f32 %v4445, %v4447
        %v4449 = vadd.f32 %v4445, %v4448
        %vm4450 = vweird.f32 %v4426
        %vm4451 = vweird.f32 %v4445
        %vm4452 = vmor %vm4450, %vm4451
        %v4453 = vsel %vm4452, %v4445, %v4449
        %v4454 = vand.u32 2147483647, %v4426
        %vm4455 = vcmp.eq.f32.partialorder %v4454, 8.507059e+37
        %v4456 = vand.u32 %v4426, 2147483648
        %v4457 = vor.u32 1.1754944e-38, %v4456
        %v4458 = vsel %vm4455, %v4457, %v4453
        %v4459 = vmul.f32 %v4414, %v4458
        %v4460 = vrcp.pop %v4432
        %v4461 = vmul.f32 %v4432, %v4460
        %v4462 = vsub.f32 1.0, %v4461
        %v4463 = vmul.f32 %v4460, %v4462
        %v4464 = vadd.f32 %v4460, %v4463
        %vm4465 = vweird.f32 %v4432
        %vm4466 = vweird.f32 %v4460
        %vm4467 = vmor %vm4465, %vm4466
        %v4468 = vsel %vm4467, %v4460, %v4464
        %v4469 = vand.u32 2147483647, %v4432
        %vm4470 = vcmp.eq.f32.partialorder %v4469, 8.507059e+37
        %v4471 = vand.u32 %v4432, 2147483648
        %v4472 = vor.u32 1.1754944e-38, %v4471
        %v4473 = vsel %vm4470, %v4472, %v4468
        %v4474 = vmul.f32 %v4416, %v4473
        %v4475 = vrcp.pop %v4438
        %v4476 = vmul.f32 %v4438, %v4475
        %v4477 = vsub.f32 1.0, %v4476
        %v4478 = vmul.f32 %v4475, %v4477
        %v4479 = vadd.f32 %v4475, %v4478
        %vm4480 = vweird.f32 %v4438
        %vm4481 = vweird.f32 %v4475
        %vm4482 = vmor %vm4480, %vm4481
        %v4483 = vsel %vm4482, %v4475, %v4479
        %v4484 = vand.u32 2147483647, %v4438
        %vm4485 = vcmp.eq.f32.partialorder %v4484, 8.507059e+37
        %v4486 = vand.u32 %v4438, 2147483648
        %v4487 = vor.u32 1.1754944e-38, %v4486
        %v4488 = vsel %vm4485, %v4487, %v4483
        %v4489 = vmul.f32 %v4418, %v4488
        %v4490 = vrcp.pop %v4444
        %v4491 = vmul.f32 %v4444, %v4490
        %v4492 = vsub.f32 1.0, %v4491
        %v4493 = vmul.f32 %v4490, %v4492
        %v4494 = vadd.f32 %v4490, %v4493
        %vm4495 = vweird.f32 %v4444
        %vm4496 = vweird.f32 %v4490
        %vm4497 = vmor %vm4495, %vm4496
        %v4498 = vsel %vm4497, %v4490, %v4494
        %v4499 = vand.u32 2147483647, %v4444
        %vm4500 = vcmp.eq.f32.partialorder %v4499, 8.507059e+37
        %v4501 = vand.u32 %v4444, 2147483648
        %v4502 = vor.u32 1.1754944e-38, %v4501
        %v4503 = vsel %vm4500, %v4502, %v4498
        %v4504 = vmul.f32 %v4420, %v4503
        %v4505 = vmul.f32 %v4360, %v4459
        %v4506 = vmul.f32 %v4363, %v4474
        %v4507 = vmul.f32 %v4366, %v4489
        %v4508 = vmul.f32 %v4369, %v4504
        %v4509 = vrot.slane %v4505, 4
        %v4510 = vadd.f32 %v4505, %v4509
        %v4511 = vrot.slane %v4510, 2
        %v4512 = vadd.f32 %v4510, %v4511
        %v4513 = vrot.slane %v4512, 1
        %v4514 = vadd.f32 %v4512, %v4513
        %v4515 = vrot.slane %v4506, 4
        %v4516 = vadd.f32 %v4506, %v4515
        %v4517 = vrot.slane %v4516, 2
        %v4518 = vadd.f32 %v4516, %v4517
        %v4519 = vrot.slane %v4518, 1
        %v4520 = vadd.f32 %v4518, %v4519
        %v4521 = vrot.slane %v4507, 4
        %v4522 = vadd.f32 %v4507, %v4521
        %v4523 = vrot.slane %v4522, 2
        %v4524 = vadd.f32 %v4522, %v4523
        %v4525 = vrot.slane %v4524, 1
        %v4526 = vadd.f32 %v4524, %v4525
        %v4527 = vrot.slane %v4508, 4
        %v4528 = vadd.f32 %v4508, %v4527
        %v4529 = vrot.slane %v4528, 2
        %v4530 = vadd.f32 %v4528, %v4529
        %v4531 = vrot.slane %v4530, 1
        %v4532 = vadd.f32 %v4530, %v4531
        %v4533 = vld [vmem:[%s7] sm:$0xff]
        %v4534 = vld [vmem:[%s7 + $0x8] sm:$0xff]
        %v4535 = vld [vmem:[%s7 + $0x10] sm:$0xff]
        %v4536 = vld [vmem:[%s7 + $0x18] sm:$0xff]
        %v4537 = vld [vmem:[%s7 + $0x20] sm:$0xff]
        %v4538 = vld [vmem:[%s7 + $0x28] sm:$0xff]
        %v4539 = vld [vmem:[%s7 + $0x30] sm:$0xff]
        %v4540 = vld [vmem:[%s7 + $0x38] sm:$0xff]
        %v4541 = vld [vmem:[%s7 + $0x40] sm:$0xff]
        %v4542 = vld [vmem:[%s7 + $0x48] sm:$0xff]
        %v4543 = vld [vmem:[%s7 + $0x50] sm:$0xff]
        %v4544 = vld [vmem:[%s7 + $0x58] sm:$0xff]
        %v4545 = vld [vmem:[%s7 + $0x60] sm:$0xff]
        %v4546 = vld [vmem:[%s7 + $0x68] sm:$0xff]
        %v4547 = vld [vmem:[%s7 + $0x70] sm:$0xff]
        %v4548 = vld [vmem:[%s7 + $0x78] sm:$0xff]
        %v4549 = vld [vmem:[%s6 + $0x2] sm:$0x1]
        %v4550 = vperm.slane %v4549, 0
        %vm4555 = vcmask 1041409
        %v4556 = vsel %vm4555, %v4520, %v4514
        %vm4557 = vcmask 1042434
        %v4558 = vsel %vm4557, %v4526, %v4556
        %vm4559 = vcmask 1043459
        %v4560 = vsel %vm4559, %v4532, %v4558
        %4562 = vmatpush.msra.mxu0 %v4548
        %4563 = vmatpush.msra.mxu0 %v4547
        %4564 = vmatpush.msra.mxu0 %v4546
        %4565 = vmatpush.msra.mxu0 %v4545
        %4566 = vmatpush.msra.mxu0 %v4544
        %4567 = vmatpush.msra.mxu0 %v4543
        %4568 = vmatpush.msra.mxu0 %v4542
        %4569 = vmatpush.msra.mxu0 %v4541
        %4570 = vmatpush.msra.mxu0 %v4540
        %4571 = vmatpush.msra.mxu0 %v4539
        %4572 = vmatpush.msra.mxu0 %v4538
        %4573 = vmatpush.msra.mxu0 %v4537
        %4574 = vmatpush.msra.mxu0 %v4536
        %4575 = vmatpush.msra.mxu0 %v4535
        %4576 = vmatpush.msra.mxu0 %v4534
        %4577 = vmatpush.msra.mxu0 %v4533
        %4578 = vmatmul.f32.gmra.mxu0 %v4560
        %v4579 = vpop.f32.mrf.mxu0
        %v4580 = vadd.f32 %v4550, %v4579
        %4581 = vdwg.mxu0
        %v4582 = vmax.f32 %v4580, 0.0
        %v4583 = vld [vmem:[%s8] sm:$0xff]
        %v4584 = vld [vmem:[%s8 + $0x8] sm:$0xff]
        %v4585 = vld [vmem:[%s8 + $0x10] sm:$0xff]
        %v4586 = vld [vmem:[%s8 + $0x18] sm:$0xff]
        %v4587 = vld [vmem:[%s8 + $0x20] sm:$0xff]
        %v4588 = vld [vmem:[%s8 + $0x28] sm:$0xff]
        %v4589 = vld [vmem:[%s8 + $0x30] sm:$0xff]
        %v4590 = vld [vmem:[%s8 + $0x38] sm:$0xff]
        %v4591 = vld [vmem:[%s6 + $0x3] sm:$0x1]
        %v4592 = vperm.slane %v4591, 0
        %v4594 = vsel %vm3538, %v4582, 0
        %4596 = vmatpush.msra.mxu0 0.0
        %4597 = vmatpush.msra.mxu0 0.0
        %4598 = vmatpush.msra.mxu0 0.0
        %4599 = vmatpush.msra.mxu0 0.0
        %4600 = vmatpush.msra.mxu0 0.0
        %4601 = vmatpush.msra.mxu0 0.0
        %4602 = vmatpush.msra.mxu0 0.0
        %4603 = vmatpush.msra.mxu0 0.0
        %4604 = vmatpush.msra.mxu0 %v4590
        %4605 = vmatpush.msra.mxu0 %v4589
        %4606 = vmatpush.msra.mxu0 %v4588
        %4607 = vmatpush.msra.mxu0 %v4587
        %4608 = vmatpush.msra.mxu0 %v4586
        %4609 = vmatpush.msra.mxu0 %v4585
        %4610 = vmatpush.msra.mxu0 %v4584
        %4611 = vmatpush.msra.mxu0 %v4583
        %4612 = vmatmul.f32.gmra.mxu0 %v4594
        %v4613 = vpop.f32.mrf.mxu0
        %v4614 = vadd.f32 %v4592, %v4613
        %4615 = vdwg.mxu0
        %4616 = vst [vmem:[%s325] sm:$0xf] %v4614
        %s4617 = sand.u32 %s225, 1
        %s4618 = scalar_lea.sflag [#allocation3], %s4617
        %s4619 = sand.u32 %s225, 1
        %s4620 = smul.addr %s4619, 4
        %s4621 = scalar_lea.vmem [#allocation2], %s4620
        // Predicated region
        $region57: #{tpu_custom_call.1} parent=55 // pred_check
          %p4622 = pneg %p235
        $region58: #{tpu_custom_call.1} parent=55 // pred_check_branch
          %4624 = sbr.rel (%p4622) target = $region60
        $region59: #{tpu_custom_call.1} parent=55 // pred_region
          %4626 = vsyncadd %s4618, 0
          %s4627 = smul.addr %s23, 4
          %s4628 = scalar_lea.hbm %s9, %s4627
          %s4630 = sshll.u32 %s4621, 4
          %s4631 = int_to_ptr.vmem [resolvable:$true] %s4630
          %s4632 = sshll.u32 %s4628, 4
          %s4633 = int_to_ptr.hbm [resolvable:$true] %s4632
          %4635 = dma.vmem_to_hbm [thread:$0]  %s4631, 64, %s4633, %s4618
        $region60: #{tpu_custom_call.1} parent=55 // pred_fallthru
          _
      $region56: #{tpu_custom_call.1} parent=5 // pred_fallthru
        _
      %p4636 = scmp.le.s32.totalorder 2, %s18
      // Predicated region
      $region61: #{tpu_custom_call.1} parent=5 // pred_check
        %p4637 = pneg %p4636
      $region62: #{tpu_custom_call.1} parent=5 // pred_check_branch
        %4639 = sbr.rel (%p4637) target = $region64
      $region63: #{tpu_custom_call.1} parent=5 // pred_region
        %s4640 = ssub.s32 %s18, 2
        // Predicated region
        $region65: #{tpu_custom_call.1} parent=63 // pred_check
          %p4641 = pneg %p241
        $region66: #{tpu_custom_call.1} parent=63 // pred_check_branch
          %4643 = sbr.rel (%p4641) target = $region68
        $region67: #{tpu_custom_call.1} parent=63 // pred_region
          %s4644 = sand.u32 %s226, 1
          %s4645 = scalar_lea.sflag [#allocation3], %s4644
          %s4646 = sand.u32 %s226, 1
          %s4647 = smul.addr %s4646, 4
          %s4648 = scalar_lea.vmem [#allocation2], %s4647
          %4650 = dma.done %s4645, 64
        $region68: #{tpu_custom_call.1} parent=63 // pred_fallthru
          _
      $region64: #{tpu_custom_call.1} parent=5 // pred_fallthru
        _
    $region6: #{tpu_custom_call.1} parent=1 // loop_footer
      %s22 = sadd.s32 1, %s18
    $region7: #{tpu_custom_call.1} parent=1 // loop_footer_branch
      %17 = sbr.rel target = $region3
    $region8: #{tpu_custom_call.1} parent=1 // loop_exit
      _
    %4651 = vsyncpa [#allocation3], 1
    %s4652 = scalar_lea.sflag [#allocation3], 1
    %4653 = vsyncpa %s4652, 1

</llo_original>
